<compile_context>
chip_gen: v6e
topology: v6e:2x2x1
jax: 0.10.0
libtpu: 0.0.40
codegen_flags: <defaults>
</compile_context>

<pallas_src>
import functools

import numpy as np
import jax
import jax.numpy as jnp
from jax.experimental import pallas as pl
from jax.experimental.pallas import tpu as pltpu

# ---------------- static config (mirrors cmd_args.hidden_dim etc.) ----------------
H = 32           # cmd_args.hidden_dim
H2 = H // 2      # hidden_dim / 2 inside the score MLPs
N = 8            # max nodes per graph; unused nodes are masked out
NH = 3           # score heads used by forward(): var1, attr_or_rela, var2
LANES = 128      # lane width of the packed weight blob and the packed output slab

# ---- row offsets inside the single packed bf16 weight blob (one DMA, all params).
#      All row offsets are multiples of 16 (bf16 sublane tile) so every static ref
#      slice is tile-aligned. ----
R_WIH = 0                        # (H, 3H)  GRU W_ih^T
R_WHH = H                        # (H, 3H)  GRU W_hh^T
R_GRU_B = 2 * H                  # 2 rows: b_ih (lanes 0:3H), b_hh (lanes 0:3H)
R_W1T = 80                       # (H, NH*H) layer-1 weights, local-embedding half
R_W1S = 112                      # (H, NH*H) layer-1 weights, state half
R_B1 = 144                       # (1, NH*H) layer-1 biases (all heads)
R_HEAD0 = 160                    # per-head tail: W2 (H,H2) then one row [b2|w3|b3]
HEAD_STRIDE = 48
R_TOTAL = R_HEAD0 + NH * HEAD_STRIDE   # 304 rows


# ----------------------------------- kernel ---------------------------------------
def _decoder_kernel(local_ref, state_ref, meta_ref, w_ref, out_ref, *, eps):
    f32 = jnp.float32
    bf16 = jnp.bfloat16

    local = local_ref[...]                       # (Bt, N, H) bf16 node-local embeds
    state0 = state_ref[...]                      # (Bt, H)    f32 global embedding
    meta = meta_ref[...]                         # (Bt, 4, N) f32 graph structure
    Bt = local.shape[0]

    var_mask = meta[:, 0, :]                     # 1.0 where node is a variable
    aor_mask = meta[:, 1, :]                     # 1.0 where node is attr-or-rela
    attr_mask = meta[:, 2, :]                    # 1.0 where node is an attribute
    attr_op = meta[:, 3, :]                      # operation id of each attribute node

    col = jax.lax.broadcasted_iota(jnp.int32, (Bt, N), 1)
    local_f32 = local.astype(f32)                # hoisted: reused by all 3 gathers

    # ---- shared weights: load each slice exactly once (hoisted) ----
    Wih = w_ref[R_WIH:R_WIH + H, 0:3 * H]                    # (H, 3H) bf16
    Whh = w_ref[R_WHH:R_WHH + H, 0:3 * H]                    # (H, 3H) bf16
    b_g = w_ref[R_GRU_B:R_GRU_B + 2, 0:3 * H].astype(f32)    # (2, 3H) [b_ih; b_hh]
    w1t = w_ref[R_W1T:R_W1T + H, 0:NH * H]                   # (H, NH*H) bf16
    b1_all = w_ref[R_B1:R_B1 + 1, 0:NH * H].astype(f32)      # (1, NH*H)

    # Layer-1 "local" half of ALL heads in one MXU push, off the serial chain
    # (local embeddings do not change across the three decode steps).
    local2d = local.reshape(Bt * N, H)                       # layout no-op (N = 8)
    l1_all = jnp.dot(local2d, w1t,
                     preferred_element_type=f32).reshape(Bt, N, NH * H)

    def gru(x_bf16, h):
        # torch.nn.GRUCell, gate order [r, z, n]; two K=32 bf16 matmuls.
        gi = jnp.dot(x_bf16, Wih, preferred_element_type=f32) + b_g[0:1]     # (Bt,3H)
        gh = jnp.dot(h.astype(bf16), Whh, preferred_element_type=f32) + b_g[1:2]
        r = jax.nn.sigmoid(gi[:, 0:H] + gh[:, 0:H])
        z = jax.nn.sigmoid(gi[:, H:2 * H] + gh[:, H:2 * H])
        n = jnp.tanh(gi[:, 2 * H:3 * H] + r * gh[:, 2 * H:3 * H])
        return (1.0 - z) * n + z * h

    def score_head(k, state, mask):
        # score layer k on node_embeddings=[local|state], restricted to `mask`,
        # softmax over the masked nodes (Softmax(dim=0) in the torch module).
        w1s = w_ref[R_W1S:R_W1S + H, k * H:(k + 1) * H]                 # (H, H) bf16
        b1 = b1_all[:, k * H:(k + 1) * H]                               # (1, H)
        base = R_HEAD0 + k * HEAD_STRIDE
        W2 = w_ref[base:base + H, 0:H2]                                 # (H, H2) bf16
        tail = w_ref[base + H:base + H + 1, :].astype(f32)              # (1, 128)
        b2 = tail[:, 0:H2]                                              # (1, H2)
        w3 = tail[:, H2:2 * H2]                                         # (1, H2)
        b3 = tail[:, 2 * H2:2 * H2 + 1]                                 # (1, 1)

        s1 = jnp.dot(state.astype(bf16), w1s,
                     preferred_element_type=f32) + b1                   # (Bt, H)
        h1 = jnp.maximum(l1_all[:, :, k * H:(k + 1) * H] + s1[:, None, :], 0.0)
        h2 = jnp.dot(h1.reshape(Bt * N, H).astype(bf16), W2,
                     preferred_element_type=f32) + b2
        h2 = jnp.maximum(h2, 0.0).reshape(Bt, N, H2)
        # final Linear(H2 -> 1) as VPU mul + lane reduce (no 1-wide MXU matmul)
        s = jnp.sum(h2 * w3[None, :, :], axis=2) + b3                   # (Bt, N)

        sel_mask = mask > 0.0
        s = jnp.where(sel_mask, s, -1e30)
        m = jnp.max(s, axis=1, keepdims=True)
        e = jnp.where(sel_mask, jnp.exp(s - m), 0.0)
        denom = jnp.maximum(jnp.sum(e, axis=1, keepdims=True), 1e-30)   # empty-mask guard
        p = e / denom                                                   # softmax(dim=0)
        if eps is not None:                                             # eps smoothing
            nsel = jnp.maximum(jnp.sum(mask, axis=1, keepdims=True), 1.0)
            p = jnp.where(sel_mask, p * (1.0 - float(eps)) + float(eps) / nsel, 0.0)

        # deterministic first-occurrence argmax over the masked probs
        pm = jnp.max(p, axis=1, keepdims=True)                          # selected prob
        sel = jnp.min(jnp.where(p >= pm, col, jnp.int32(2 ** 30)),
                      axis=1, keepdims=True)                            # node index
        onehot = (col == sel).astype(f32)                               # (Bt, N)
        # gather the selected node's LOCAL embedding with mask + sublane-sum
        emb = jnp.sum(local_f32 * onehot[:, :, None], axis=1)           # (Bt, H)
        return pm, sel, onehot, emb.astype(bf16)

    # ---- step 1: var1 ----
    p1, sel1, oh1, emb1 = score_head(0, state0, var_mask)
    state1 = gru(emb1, state0)

    # ---- step 2: attr-or-rela ----
    p2, sel2, oh2, emb2 = score_head(1, state1, aor_mask)
    state2 = gru(emb2, state1)

    is_attr = jnp.sum(attr_mask * oh2, axis=1, keepdims=True) > 0.0     # (Bt, 1)
    op_id = jnp.sum(attr_op * oh2, axis=1, keepdims=True)               # (Bt, 1) f32

    # ---- step 3: var2 (relation branch only in the torch code; computed
    # unconditionally here — a single tiny head + GRU — and selected away below) ----
    var2_mask = var_mask * (1.0 - oh1)
    p3, sel3, _oh3, emb3 = score_head(2, state2, var2_mask)
    state3 = gru(emb3, state2)

    prob12 = p1 * p2
    prob = jnp.where(is_attr, prob12, prob12 * p3)                      # (Bt, 1)
    h_new = jnp.where(is_attr, state2, state3)                          # (Bt, H)

    # clause ids (as f32 values; small ints, exact): [is_attr_flag, c0, c1, c2]
    #   attr branch: [1, operation_id, attr_node_idx, var1_node_idx]
    #   rela branch: [0, rela_node_idx, var1_node_idx, var2_node_idx]
    sel1f, sel2f, sel3f = sel1.astype(f32), sel2.astype(f32), sel3.astype(f32)
    flag = is_attr.astype(f32)
    c0 = jnp.where(is_attr, op_id, sel2f)
    c1 = jnp.where(is_attr, sel2f, sel1f)
    c2 = jnp.where(is_attr, sel1f, sel3f)

    # ONE lane-dense packed output slab: [prob | state(32) | flag | c0 | c1 | c2 | 0...]
    pad = jnp.zeros((Bt, LANES - (1 + H + 4)), f32)
    out_ref[...] = jnp.concatenate([prob, h_new, flag, c0, c1, c2, pad], axis=1)


# --------------------------------- wrapper -----------------------------------------
def node_decoder_forward(local_embeddings, global_embedding, meta, w_blob,
                         eps=None, block_b=None):
    """Batched NodeDecoder.forward.
    local_embeddings: (B, N, H); global_embedding: (B, H);
    meta: (B, 4, N) f32 [var_mask, attr_or_rela_mask, attr_mask, attr_op_id];
    w_blob: (R_TOTAL, 128) bf16 packed parameters (see pack_weights).
    block_b: batch tile — tuning knob. Default auto = min(B, 512); on v7x keep
             B/block_b >= 2 so both TensorCores are used, on v5e/v6e prefer
             block_b=B (grid of 1) when it fits VMEM.
    Returns (prob (B,1) f32, clause_ids (B,4) int32, new_state (B,H) f32)."""
    B = local_embeddings.shape[0]
    assert local_embeddings.shape[1:] == (N, H)
    if block_b is None:
        block_b = min(B, 512)
    assert B % block_b == 0
    grid = (B // block_b,)

    local_bf16 = local_embeddings.astype(jnp.bfloat16)   # halves HBM->VMEM bytes
    state_f32 = global_embedding.astype(jnp.float32)
    meta_f32 = meta.astype(jnp.float32)

    # Advisory cost estimate (helps XLA schedule the custom call in a larger graph).
    flops_per_sample = 2 * (
        N * H * (NH * H)                               # layer-1 local half, all heads
        + NH * (H * H + N * H * H2 + N * H2)           # per-head state matmul, W2, w3
        + NH * 2 * H * 3 * H)                          # 3 GRU updates, 2 matmuls each
    trans_per_sample = NH * N + NH * 3 * H             # softmax exps + gate sig/tanh
    bytes_accessed = (local_bf16.size * 2 + state_f32.size * 4 + meta_f32.size * 4
                      + int(np.prod(w_blob.shape)) * 2 + B * LANES * 4)
    cost = pl.CostEstimate(flops=B * flops_per_sample,
                           transcendentals=B * trans_per_sample,
                           bytes_accessed=bytes_accessed)

    kernel = functools.partial(_decoder_kernel, eps=eps)
    packed = pl.pallas_call(
        kernel,
        grid=grid,
        in_specs=[
            pl.BlockSpec((block_b, N, H), lambda b: (b, 0, 0)),     # local embeddings
            pl.BlockSpec((block_b, H), lambda b: (b, 0)),           # state
            pl.BlockSpec((block_b, 4, N), lambda b: (b, 0, 0)),     # graph meta
            pl.BlockSpec((R_TOTAL, LANES), lambda b: (0, 0)),       # packed weights
        ],
        out_specs=pl.BlockSpec((block_b, LANES), lambda b: (b, 0)),
        out_shape=jax.ShapeDtypeStruct((B, LANES), jnp.float32),
        compiler_params=pltpu.CompilerParams(
            dimension_semantics=("parallel",),          # shards over both TCs on v7x
            vmem_limit_bytes=32 * 1024 * 1024),         # lifts v5e's 16 MiB default
        cost_estimate=cost,
    )(local_bf16, state_f32, meta_f32, w_blob)

    prob = packed[:, 0:1]
    new_state = packed[:, 1:1 + H]
    clause = packed[:, 1 + H:1 + H + 4].astype(jnp.int32)   # [flag, c0, c1, c2]
    return prob, clause, new_state


def pack_weights(gru, heads):
    """Pack all parameters into one (R_TOTAL, 128) bf16 blob (single DMA).
    gru: dict with torch-layout w_ih (3H,H), w_hh (3H,H), b_ih (3H,), b_hh (3H,).
    heads: NH dicts (var1, attr_or_rela, var2 score layers) with torch-layout
           W1 (H,2H), b1 (H,), W2 (H2,H), b2 (H2,), W3 (1,H2), b3 (1,)."""
    blob = np.zeros((R_TOTAL, LANES), np.float32)
    wih = np.asarray(gru["w_ih"], np.float32)
    whh = np.asarray(gru["w_hh"], np.float32)
    blob[R_WIH:R_WIH + H, 0:3 * H] = wih.T
    blob[R_WHH:R_WHH + H, 0:3 * H] = whh.T
    blob[R_GRU_B, 0:3 * H] = np.asarray(gru["b_ih"], np.float32)
    blob[R_GRU_B + 1, 0:3 * H] = np.asarray(gru["b_hh"], np.float32)
    for k, hd in enumerate(heads):
        W1t = np.asarray(hd["W1"], np.float32).T                # (2H, H)
        blob[R_W1T:R_W1T + H, k * H:(k + 1) * H] = W1t[0:H]     # local-embedding half
        blob[R_W1S:R_W1S + H, k * H:(k + 1) * H] = W1t[H:2 * H]  # state half
        blob[R_B1, k * H:(k + 1) * H] = np.asarray(hd["b1"], np.float32)
        base = R_HEAD0 + k * HEAD_STRIDE
        blob[base:base + H, 0:H2] = np.asarray(hd["W2"], np.float32).T
        blob[base + H, 0:H2] = np.asarray(hd["b2"], np.float32)
        blob[base + H, H2:2 * H2] = np.asarray(hd["W3"], np.float32).reshape(H2)
        blob[base + H, 2 * H2] = float(np.asarray(hd["b3"], np.float32).reshape(()))
    return jnp.asarray(blob, dtype=jnp.bfloat16)


# ----------------------------------- demo ------------------------------------------
if __name__ == "__main__":
    B = 16                                       # independent graph decodes (batched)
    key = jax.random.PRNGKey(0)
    ks = iter(jax.random.split(key, 32))

    def nrm(shape, scale=0.1):
        return (scale * jax.random.normal(next(ks), shape)).astype(jnp.float32)

    gru_params = dict(w_ih=nrm((3 * H, H)), w_hh=nrm((3 * H, H)),
                      b_ih=nrm((3 * H,)), b_hh=nrm((3 * H,)))
    head_params = [dict(W1=nrm((H, 2 * H)), b1=nrm((H,)),
                        W2=nrm((H2, H)), b2=nrm((H2,)),
                        W3=nrm((1, H2)), b3=nrm((1,))) for _ in range(NH)]
    w_blob = pack_weights(gru_params, head_params)

    local = nrm((B, N, H), scale=0.5)            # graph_embedding[0] per graph
    state = nrm((B, H), scale=0.5)               # graph_embedding[1] per graph

    # graph structure: nodes 0..3 are variables, nodes 4..7 attr-or-rela nodes;
    # a random per-graph subset of the attr-or-rela nodes are attribute nodes.
    node = jnp.arange(N)
    var_mask = jnp.broadcast_to((node < 4).astype(jnp.float32), (B, N))
    aor_mask = jnp.broadcast_to((node >= 4).astype(jnp.float32), (B, N))
    attr_mask = (jax.random.uniform(next(ks), (B, N)) < 0.5).astype(jnp.float32) * aor_mask
    attr_op = jnp.broadcast_to(jnp.maximum(node - 4, 0).astype(jnp.float32), (B, N))
    meta = jnp.stack([var_mask, aor_mask, attr_mask, attr_op], axis=1)   # (B, 4, N)

    prob, clause, new_state = node_decoder_forward(local, state, meta, w_blob, eps=0.05)
    jax.block_until_ready((prob, clause, new_state))

    assert prob.shape == (B, 1) and new_state.shape == (B, H) and clause.shape == (B, 4)
    assert clause.dtype == jnp.int32
    assert bool(jnp.all(jnp.isfinite(prob))) and bool(jnp.all(jnp.isfinite(new_state)))
    assert bool(jnp.all((prob > 0.0) & (prob <= 1.0)))
    print("KERNEL_OK")
</pallas_src>

<mosaic_0001>
module attributes {stable_mosaic.version = 11 : i64} {
  func.func @_decoder_kernel(%arg0: i32, %arg1: memref<16x8x32xbf16, #tpu.memory_space<vmem>>, %arg2: memref<16x32xf32, #tpu.memory_space<vmem>>, %arg3: memref<16x4x8xf32, #tpu.memory_space<vmem>>, %arg4: memref<304x128xbf16, #tpu.memory_space<vmem>>, %arg5: memref<16x128xf32, #tpu.memory_space<vmem>>) attributes {dimension_semantics = [#tpu.dimension_semantics<parallel>], iteration_bounds = array<i64: 1>, scalar_prefetch = 0 : i64, scratch_operands = 0 : i64, tpu.core_type = #tpu.core_type<tc>, window_params = [{transform_indices = @transform_0, window_bounds = array<i64: 16, 8, 32>}, {transform_indices = @transform_1, window_bounds = array<i64: 16, 32>}, {transform_indices = @transform_2, window_bounds = array<i64: 16, 4, 8>}, {pipeline_mode = #tpu.pipeline_mode<synchronous>, transform_indices = @transform_3, window_bounds = array<i64: 304, 128>}, {transform_indices = @transform_4, window_bounds = array<i64: 16, 128>}]} {
    %c0 = arith.constant 0 : index
    %c0_0 = arith.constant 0 : index
    %c0_1 = arith.constant 0 : index
    %0 = vector.load %arg1[%c0, %c0_0, %c0_1] : memref<16x8x32xbf16, #tpu.memory_space<vmem>>, vector<16x8x32xbf16>
    %c0_2 = arith.constant 0 : index
    %c0_3 = arith.constant 0 : index
    %1 = vector.load %arg2[%c0_2, %c0_3] : memref<16x32xf32, #tpu.memory_space<vmem>>, vector<16x32xf32>
    %c0_4 = arith.constant 0 : index
    %c0_5 = arith.constant 0 : index
    %c0_6 = arith.constant 0 : index
    %2 = vector.load %arg3[%c0_4, %c0_5, %c0_6] : memref<16x4x8xf32, #tpu.memory_space<vmem>>, vector<16x4x8xf32>
    %3 = vector.extract_strided_slice %2 {offsets = [0, 0, 0], sizes = [16, 1, 8], strides = [1, 1, 1]} : vector<16x4x8xf32> to vector<16x1x8xf32>
    %4 = vector.shape_cast %3 : vector<16x1x8xf32> to vector<16x8xf32>
    %5 = vector.extract_strided_slice %2 {offsets = [0, 1, 0], sizes = [16, 1, 8], strides = [1, 1, 1]} : vector<16x4x8xf32> to vector<16x1x8xf32>
    %6 = vector.shape_cast %5 : vector<16x1x8xf32> to vector<16x8xf32>
    %7 = vector.extract_strided_slice %2 {offsets = [0, 2, 0], sizes = [16, 1, 8], strides = [1, 1, 1]} : vector<16x4x8xf32> to vector<16x1x8xf32>
    %8 = vector.shape_cast %7 : vector<16x1x8xf32> to vector<16x8xf32>
    %9 = vector.extract_strided_slice %2 {offsets = [0, 3, 0], sizes = [16, 1, 8], strides = [1, 1, 1]} : vector<16x4x8xf32> to vector<16x1x8xf32>
    %10 = vector.shape_cast %9 : vector<16x1x8xf32> to vector<16x8xf32>
    %11 = tpu.iota {dimensions = array<i32: 1>} : vector<16x8xi32>
    %12 = arith.extf %0 : vector<16x8x32xbf16> to vector<16x8x32xf32>
    %c0_7 = arith.constant 0 : index
    %c0_8 = arith.constant 0 : index
    %13 = vector.load %arg4[%c0_7, %c0_8] : memref<304x128xbf16, #tpu.memory_space<vmem>>, vector<32x96xbf16>
    %c32 = arith.constant 32 : index
    %c0_9 = arith.constant 0 : index
    %14 = vector.load %arg4[%c32, %c0_9] : memref<304x128xbf16, #tpu.memory_space<vmem>>, vector<32x96xbf16>
    %c64 = arith.constant 64 : index
    %c0_10 = arith.constant 0 : index
    %15 = vector.load %arg4[%c64, %c0_10] : memref<304x128xbf16, #tpu.memory_space<vmem>>, vector<2x96xbf16>
    %16 = arith.extf %15 : vector<2x96xbf16> to vector<2x96xf32>
    %c80 = arith.constant 80 : index
    %c0_11 = arith.constant 0 : index
    %17 = vector.load %arg4[%c80, %c0_11] : memref<304x128xbf16, #tpu.memory_space<vmem>>, vector<32x96xbf16>
    %c144 = arith.constant 144 : index
    %c0_12 = arith.constant 0 : index
    %18 = vector.load %arg4[%c144, %c0_12] : memref<304x128xbf16, #tpu.memory_space<vmem>>, vector<1x96xbf16>
    %19 = arith.extf %18 : vector<1x96xbf16> to vector<1x96xf32>
    %20 = vector.shape_cast %0 : vector<16x8x32xbf16> to vector<128x32xbf16>
    %cst = arith.constant dense<0.000000e+00> : vector<128x96xf32>
    %21 = tpu.matmul %20, %17, %cst {dimension_numbers = #tpu.dot_dimension_numbers<[1], [0], [0], [1], [0, 0, 1, 1], [], []>} : vector<128x32xbf16>, vector<32x96xbf16>, vector<128x96xf32> -> vector<128x96xf32>
    %22 = vector.shape_cast %21 : vector<128x96xf32> to vector<16x8x96xf32>
    %c112 = arith.constant 112 : index
    %c0_13 = arith.constant 0 : index
    %23 = vector.load %arg4[%c112, %c0_13] : memref<304x128xbf16, #tpu.memory_space<vmem>>, vector<32x32xbf16>
    %24 = vector.extract_strided_slice %19 {offsets = [0, 0], sizes = [1, 32], strides = [1, 1]} : vector<1x96xf32> to vector<1x32xf32>
    %c160 = arith.constant 160 : index
    %c0_14 = arith.constant 0 : index
    %25 = vector.load %arg4[%c160, %c0_14] : memref<304x128xbf16, #tpu.memory_space<vmem>>, vector<32x16xbf16>
    %c192 = arith.constant 192 : index
    %c0_15 = arith.constant 0 : index
    %26 = vector.load %arg4[%c192, %c0_15] : memref<304x128xbf16, #tpu.memory_space<vmem>>, vector<1x128xbf16>
    %27 = arith.extf %26 : vector<1x128xbf16> to vector<1x128xf32>
    %28 = vector.extract_strided_slice %27 {offsets = [0, 0], sizes = [1, 16], strides = [1, 1]} : vector<1x128xf32> to vector<1x16xf32>
    %29 = vector.extract_strided_slice %27 {offsets = [0, 16], sizes = [1, 16], strides = [1, 1]} : vector<1x128xf32> to vector<1x16xf32>
    %30 = vector.extract_strided_slice %27 {offsets = [0, 32], sizes = [1, 1], strides = [1, 1]} : vector<1x128xf32> to vector<1x1xf32>
    %31 = arith.truncf %1 : vector<16x32xf32> to vector<16x32xbf16>
    %cst_16 = arith.constant dense<0.000000e+00> : vector<16x32xf32>
    %32 = tpu.matmul %31, %23, %cst_16 {dimension_numbers = #tpu.dot_dimension_numbers<[1], [0], [0], [1], [0, 0, 1, 1], [], []>} : vector<16x32xbf16>, vector<32x32xbf16>, vector<16x32xf32> -> vector<16x32xf32>
    %33 = vector.broadcast %24 : vector<1x32xf32> to vector<16x32xf32>
    %34 = arith.addf %32, %33 : vector<16x32xf32>
    %35 = vector.extract_strided_slice %22 {offsets = [0, 0, 0], sizes = [16, 8, 32], strides = [1, 1, 1]} : vector<16x8x96xf32> to vector<16x8x32xf32>
    %36 = vector.shape_cast %34 : vector<16x32xf32> to vector<16x1x32xf32>
    %37 = vector.broadcast %36 : vector<16x1x32xf32> to vector<16x8x32xf32>
    %38 = arith.addf %35, %37 : vector<16x8x32xf32>
    %cst_17 = arith.constant 0.000000e+00 : f32
    %39 = vector.broadcast %cst_17 : f32 to vector<16x8x32xf32>
    %40 = arith.maximumf %38, %39 : vector<16x8x32xf32>
    %41 = vector.shape_cast %40 : vector<16x8x32xf32> to vector<128x32xf32>
    %42 = arith.truncf %41 : vector<128x32xf32> to vector<128x32xbf16>
    %cst_18 = arith.constant dense<0.000000e+00> : vector<128x16xf32>
    %43 = tpu.matmul %42, %25, %cst_18 {dimension_numbers = #tpu.dot_dimension_numbers<[1], [0], [0], [1], [0, 0, 1, 1], [], []>} : vector<128x32xbf16>, vector<32x16xbf16>, vector<128x16xf32> -> vector<128x16xf32>
    %44 = vector.broadcast %28 : vector<1x16xf32> to vector<128x16xf32>
    %45 = arith.addf %43, %44 : vector<128x16xf32>
    %cst_19 = arith.constant 0.000000e+00 : f32
    %46 = vector.broadcast %cst_19 : f32 to vector<128x16xf32>
    %47 = arith.maximumf %45, %46 : vector<128x16xf32>
    %48 = vector.shape_cast %47 : vector<128x16xf32> to vector<16x8x16xf32>
    %49 = vector.shape_cast %29 : vector<1x16xf32> to vector<1x1x16xf32>
    %50 = vector.broadcast %49 : vector<1x1x16xf32> to vector<16x8x16xf32>
    %51 = arith.mulf %48, %50 : vector<16x8x16xf32>
    %cst_20 = arith.constant dense<0.000000e+00> : vector<16x8xf32>
    %52 = vector.multi_reduction <add>, %51, %cst_20 [2] : vector<16x8x16xf32> to vector<16x8xf32>
    %53 = vector.broadcast %30 : vector<1x1xf32> to vector<16x8xf32>
    %54 = arith.addf %52, %53 : vector<16x8xf32>
    %cst_21 = arith.constant 0.000000e+00 : f32
    %55 = vector.broadcast %cst_21 : f32 to vector<16x8xf32>
    %56 = arith.cmpf ogt, %4, %55 : vector<16x8xf32>
    %cst_22 = arith.constant -1.000000e+30 : f32
    %57 = vector.broadcast %cst_22 : f32 to vector<16x8xf32>
    %58 = arith.select %56, %54, %57 : vector<16x8xi1>, vector<16x8xf32>
    %cst_23 = arith.constant dense<0xFF800000> : vector<16xf32>
    %59 = vector.multi_reduction <maximumf>, %58, %cst_23 [1] : vector<16x8xf32> to vector<16xf32>
    %60 = vector.shape_cast %59 : vector<16xf32> to vector<16x1xf32>
    %61 = vector.broadcast %60 : vector<16x1xf32> to vector<16x8xf32>
    %62 = arith.subf %58, %61 : vector<16x8xf32>
    %63 = math.exp %62 : vector<16x8xf32>
    %cst_24 = arith.constant 0.000000e+00 : f32
    %64 = vector.broadcast %cst_24 : f32 to vector<16x8xf32>
    %65 = arith.select %56, %63, %64 : vector<16x8xi1>, vector<16x8xf32>
    %cst_25 = arith.constant dense<0.000000e+00> : vector<16xf32>
    %66 = vector.multi_reduction <add>, %65, %cst_25 [1] : vector<16x8xf32> to vector<16xf32>
    %67 = vector.shape_cast %66 : vector<16xf32> to vector<16x1xf32>
    %cst_26 = arith.constant 1.000000e-30 : f32
    %68 = vector.broadcast %cst_26 : f32 to vector<16x1xf32>
    %69 = arith.maximumf %67, %68 : vector<16x1xf32>
    %70 = vector.broadcast %69 : vector<16x1xf32> to vector<16x8xf32>
    %71 = arith.divf %65, %70 : vector<16x8xf32>
    %cst_27 = arith.constant dense<0.000000e+00> : vector<16xf32>
    %72 = vector.multi_reduction <add>, %4, %cst_27 [1] : vector<16x8xf32> to vector<16xf32>
    %73 = vector.shape_cast %72 : vector<16xf32> to vector<16x1xf32>
    %cst_28 = arith.constant 1.000000e+00 : f32
    %74 = vector.broadcast %cst_28 : f32 to vector<16x1xf32>
    %75 = arith.maximumf %73, %74 : vector<16x1xf32>
    %cst_29 = arith.constant 0.949999988 : f32
    %76 = vector.broadcast %cst_29 : f32 to vector<16x8xf32>
    %77 = arith.mulf %71, %76 : vector<16x8xf32>
    %cst_30 = arith.constant 5.000000e-02 : f32
    %78 = vector.broadcast %cst_30 : f32 to vector<16x1xf32>
    %79 = arith.divf %78, %75 : vector<16x1xf32>
    %80 = vector.broadcast %79 : vector<16x1xf32> to vector<16x8xf32>
    %81 = arith.addf %77, %80 : vector<16x8xf32>
    %cst_31 = arith.constant 0.000000e+00 : f32
    %82 = vector.broadcast %cst_31 : f32 to vector<16x8xf32>
    %83 = arith.select %56, %81, %82 : vector<16x8xi1>, vector<16x8xf32>
    %cst_32 = arith.constant dense<0xFF800000> : vector<16xf32>
    %84 = vector.multi_reduction <maximumf>, %83, %cst_32 [1] : vector<16x8xf32> to vector<16xf32>
    %85 = vector.shape_cast %84 : vector<16xf32> to vector<16x1xf32>
    %86 = vector.broadcast %85 : vector<16x1xf32> to vector<16x8xf32>
    %87 = arith.cmpf oge, %83, %86 : vector<16x8xf32>
    %c1073741824_i32 = arith.constant 1073741824 : i32
    %88 = vector.broadcast %c1073741824_i32 : i32 to vector<16x8xi32>
    %89 = arith.select %87, %11, %88 : vector<16x8xi1>, vector<16x8xi32>
    %cst_33 = arith.constant dense<2147483647> : vector<16xi32>
    %90 = vector.multi_reduction <minsi>, %89, %cst_33 [1] : vector<16x8xi32> to vector<16xi32>
    %91 = vector.shape_cast %90 : vector<16xi32> to vector<16x1xi32>
    %92 = vector.broadcast %91 : vector<16x1xi32> to vector<16x8xi32>
    %93 = arith.cmpi eq, %11, %92 : vector<16x8xi32>
    %94 = arith.extui %93 : vector<16x8xi1> to vector<16x8xi32>
    %95 = arith.sitofp %94 : vector<16x8xi32> to vector<16x8xf32>
    %96 = vector.shape_cast %95 : vector<16x8xf32> to vector<16x8x1xf32>
    %97 = vector.broadcast %96 : vector<16x8x1xf32> to vector<16x8x32xf32>
    %98 = arith.mulf %12, %97 : vector<16x8x32xf32>
    %cst_34 = arith.constant dense<0.000000e+00> : vector<16x32xf32>
    %99 = vector.multi_reduction <add>, %98, %cst_34 [1] : vector<16x8x32xf32> to vector<16x32xf32>
    %100 = arith.truncf %99 : vector<16x32xf32> to vector<16x32xbf16>
    %cst_35 = arith.constant dense<0.000000e+00> : vector<16x96xf32>
    %101 = tpu.matmul %100, %13, %cst_35 {dimension_numbers = #tpu.dot_dimension_numbers<[1], [0], [0], [1], [0, 0, 1, 1], [], []>} : vector<16x32xbf16>, vector<32x96xbf16>, vector<16x96xf32> -> vector<16x96xf32>
    %102 = vector.extract_strided_slice %16 {offsets = [0, 0], sizes = [1, 96], strides = [1, 1]} : vector<2x96xf32> to vector<1x96xf32>
    %103 = vector.broadcast %102 : vector<1x96xf32> to vector<16x96xf32>
    %104 = arith.addf %101, %103 : vector<16x96xf32>
    %105 = arith.truncf %1 : vector<16x32xf32> to vector<16x32xbf16>
    %cst_36 = arith.constant dense<0.000000e+00> : vector<16x96xf32>
    %106 = tpu.matmul %105, %14, %cst_36 {dimension_numbers = #tpu.dot_dimension_numbers<[1], [0], [0], [1], [0, 0, 1, 1], [], []>} : vector<16x32xbf16>, vector<32x96xbf16>, vector<16x96xf32> -> vector<16x96xf32>
    %107 = vector.extract_strided_slice %16 {offsets = [1, 0], sizes = [1, 96], strides = [1, 1]} : vector<2x96xf32> to vector<1x96xf32>
    %108 = vector.broadcast %107 : vector<1x96xf32> to vector<16x96xf32>
    %109 = arith.addf %106, %108 : vector<16x96xf32>
    %110 = vector.extract_strided_slice %104 {offsets = [0, 0], sizes = [16, 32], strides = [1, 1]} : vector<16x96xf32> to vector<16x32xf32>
    %111 = vector.extract_strided_slice %109 {offsets = [0, 0], sizes = [16, 32], strides = [1, 1]} : vector<16x96xf32> to vector<16x32xf32>
    %112 = arith.addf %110, %111 : vector<16x32xf32>
    %113 = arith.negf %112 : vector<16x32xf32>
    %114 = math.exp %113 : vector<16x32xf32>
    %cst_37 = arith.constant 1.000000e+00 : f32
    %115 = vector.broadcast %cst_37 : f32 to vector<16x32xf32>
    %116 = arith.addf %115, %114 : vector<16x32xf32>
    %117 = arith.divf %115, %116 : vector<16x32xf32>
    %118 = vector.extract_strided_slice %104 {offsets = [0, 32], sizes = [16, 32], strides = [1, 1]} : vector<16x96xf32> to vector<16x32xf32>
    %119 = vector.extract_strided_slice %109 {offsets = [0, 32], sizes = [16, 32], strides = [1, 1]} : vector<16x96xf32> to vector<16x32xf32>
    %120 = arith.addf %118, %119 : vector<16x32xf32>
    %121 = arith.negf %120 : vector<16x32xf32>
    %122 = math.exp %121 : vector<16x32xf32>
    %cst_38 = arith.constant 1.000000e+00 : f32
    %123 = vector.broadcast %cst_38 : f32 to vector<16x32xf32>
    %124 = arith.addf %123, %122 : vector<16x32xf32>
    %125 = arith.divf %123, %124 : vector<16x32xf32>
    %126 = vector.extract_strided_slice %104 {offsets = [0, 64], sizes = [16, 32], strides = [1, 1]} : vector<16x96xf32> to vector<16x32xf32>
    %127 = vector.extract_strided_slice %109 {offsets = [0, 64], sizes = [16, 32], strides = [1, 1]} : vector<16x96xf32> to vector<16x32xf32>
    %128 = arith.mulf %117, %127 : vector<16x32xf32>
    %129 = arith.addf %126, %128 : vector<16x32xf32>
    %130 = math.tanh %129 : vector<16x32xf32>
    %cst_39 = arith.constant 1.000000e+00 : f32
    %131 = vector.broadcast %cst_39 : f32 to vector<16x32xf32>
    %132 = arith.subf %131, %125 : vector<16x32xf32>
    %133 = arith.mulf %132, %130 : vector<16x32xf32>
    %134 = arith.mulf %125, %1 : vector<16x32xf32>
    %135 = arith.addf %133, %134 : vector<16x32xf32>
    %c112_40 = arith.constant 112 : index
    %c32_41 = arith.constant 32 : index
    %136 = vector.load %arg4[%c112_40, %c32_41] : memref<304x128xbf16, #tpu.memory_space<vmem>>, vector<32x32xbf16>
    %137 = vector.extract_strided_slice %19 {offsets = [0, 32], sizes = [1, 32], strides = [1, 1]} : vector<1x96xf32> to vector<1x32xf32>
    %c208 = arith.constant 208 : index
    %c0_42 = arith.constant 0 : index
    %138 = vector.load %arg4[%c208, %c0_42] : memref<304x128xbf16, #tpu.memory_space<vmem>>, vector<32x16xbf16>
    %c240 = arith.constant 240 : index
    %c0_43 = arith.constant 0 : index
    %139 = vector.load %arg4[%c240, %c0_43] : memref<304x128xbf16, #tpu.memory_space<vmem>>, vector<1x128xbf16>
    %140 = arith.extf %139 : vector<1x128xbf16> to vector<1x128xf32>
    %141 = vector.extract_strided_slice %140 {offsets = [0, 0], sizes = [1, 16], strides = [1, 1]} : vector<1x128xf32> to vector<1x16xf32>
    %142 = vector.extract_strided_slice %140 {offsets = [0, 16], sizes = [1, 16], strides = [1, 1]} : vector<1x128xf32> to vector<1x16xf32>
    %143 = vector.extract_strided_slice %140 {offsets = [0, 32], sizes = [1, 1], strides = [1, 1]} : vector<1x128xf32> to vector<1x1xf32>
    %144 = arith.truncf %135 : vector<16x32xf32> to vector<16x32xbf16>
    %cst_44 = arith.constant dense<0.000000e+00> : vector<16x32xf32>
    %145 = tpu.matmul %144, %136, %cst_44 {dimension_numbers = #tpu.dot_dimension_numbers<[1], [0], [0], [1], [0, 0, 1, 1], [], []>} : vector<16x32xbf16>, vector<32x32xbf16>, vector<16x32xf32> -> vector<16x32xf32>
    %146 = vector.broadcast %137 : vector<1x32xf32> to vector<16x32xf32>
    %147 = arith.addf %145, %146 : vector<16x32xf32>
    %148 = vector.extract_strided_slice %22 {offsets = [0, 0, 32], sizes = [16, 8, 32], strides = [1, 1, 1]} : vector<16x8x96xf32> to vector<16x8x32xf32>
    %149 = vector.shape_cast %147 : vector<16x32xf32> to vector<16x1x32xf32>
    %150 = vector.broadcast %149 : vector<16x1x32xf32> to vector<16x8x32xf32>
    %151 = arith.addf %148, %150 : vector<16x8x32xf32>
    %cst_45 = arith.constant 0.000000e+00 : f32
    %152 = vector.broadcast %cst_45 : f32 to vector<16x8x32xf32>
    %153 = arith.maximumf %151, %152 : vector<16x8x32xf32>
    %154 = vector.shape_cast %153 : vector<16x8x32xf32> to vector<128x32xf32>
    %155 = arith.truncf %154 : vector<128x32xf32> to vector<128x32xbf16>
    %cst_46 = arith.constant dense<0.000000e+00> : vector<128x16xf32>
    %156 = tpu.matmul %155, %138, %cst_46 {dimension_numbers = #tpu.dot_dimension_numbers<[1], [0], [0], [1], [0, 0, 1, 1], [], []>} : vector<128x32xbf16>, vector<32x16xbf16>, vector<128x16xf32> -> vector<128x16xf32>
    %157 = vector.broadcast %141 : vector<1x16xf32> to vector<128x16xf32>
    %158 = arith.addf %156, %157 : vector<128x16xf32>
    %cst_47 = arith.constant 0.000000e+00 : f32
    %159 = vector.broadcast %cst_47 : f32 to vector<128x16xf32>
    %160 = arith.maximumf %158, %159 : vector<128x16xf32>
    %161 = vector.shape_cast %160 : vector<128x16xf32> to vector<16x8x16xf32>
    %162 = vector.shape_cast %142 : vector<1x16xf32> to vector<1x1x16xf32>
    %163 = vector.broadcast %162 : vector<1x1x16xf32> to vector<16x8x16xf32>
    %164 = arith.mulf %161, %163 : vector<16x8x16xf32>
    %cst_48 = arith.constant dense<0.000000e+00> : vector<16x8xf32>
    %165 = vector.multi_reduction <add>, %164, %cst_48 [2] : vector<16x8x16xf32> to vector<16x8xf32>
    %166 = vector.broadcast %143 : vector<1x1xf32> to vector<16x8xf32>
    %167 = arith.addf %165, %166 : vector<16x8xf32>
    %cst_49 = arith.constant 0.000000e+00 : f32
    %168 = vector.broadcast %cst_49 : f32 to vector<16x8xf32>
    %169 = arith.cmpf ogt, %6, %168 : vector<16x8xf32>
    %cst_50 = arith.constant -1.000000e+30 : f32
    %170 = vector.broadcast %cst_50 : f32 to vector<16x8xf32>
    %171 = arith.select %169, %167, %170 : vector<16x8xi1>, vector<16x8xf32>
    %cst_51 = arith.constant dense<0xFF800000> : vector<16xf32>
    %172 = vector.multi_reduction <maximumf>, %171, %cst_51 [1] : vector<16x8xf32> to vector<16xf32>
    %173 = vector.shape_cast %172 : vector<16xf32> to vector<16x1xf32>
    %174 = vector.broadcast %173 : vector<16x1xf32> to vector<16x8xf32>
    %175 = arith.subf %171, %174 : vector<16x8xf32>
    %176 = math.exp %175 : vector<16x8xf32>
    %cst_52 = arith.constant 0.000000e+00 : f32
    %177 = vector.broadcast %cst_52 : f32 to vector<16x8xf32>
    %178 = arith.select %169, %176, %177 : vector<16x8xi1>, vector<16x8xf32>
    %cst_53 = arith.constant dense<0.000000e+00> : vector<16xf32>
    %179 = vector.multi_reduction <add>, %178, %cst_53 [1] : vector<16x8xf32> to vector<16xf32>
    %180 = vector.shape_cast %179 : vector<16xf32> to vector<16x1xf32>
    %cst_54 = arith.constant 1.000000e-30 : f32
    %181 = vector.broadcast %cst_54 : f32 to vector<16x1xf32>
    %182 = arith.maximumf %180, %181 : vector<16x1xf32>
    %183 = vector.broadcast %182 : vector<16x1xf32> to vector<16x8xf32>
    %184 = arith.divf %178, %183 : vector<16x8xf32>
    %cst_55 = arith.constant dense<0.000000e+00> : vector<16xf32>
    %185 = vector.multi_reduction <add>, %6, %cst_55 [1] : vector<16x8xf32> to vector<16xf32>
    %186 = vector.shape_cast %185 : vector<16xf32> to vector<16x1xf32>
    %cst_56 = arith.constant 1.000000e+00 : f32
    %187 = vector.broadcast %cst_56 : f32 to vector<16x1xf32>
    %188 = arith.maximumf %186, %187 : vector<16x1xf32>
    %cst_57 = arith.constant 0.949999988 : f32
    %189 = vector.broadcast %cst_57 : f32 to vector<16x8xf32>
    %190 = arith.mulf %184, %189 : vector<16x8xf32>
    %cst_58 = arith.constant 5.000000e-02 : f32
    %191 = vector.broadcast %cst_58 : f32 to vector<16x1xf32>
    %192 = arith.divf %191, %188 : vector<16x1xf32>
    %193 = vector.broadcast %192 : vector<16x1xf32> to vector<16x8xf32>
    %194 = arith.addf %190, %193 : vector<16x8xf32>
    %cst_59 = arith.constant 0.000000e+00 : f32
    %195 = vector.broadcast %cst_59 : f32 to vector<16x8xf32>
    %196 = arith.select %169, %194, %195 : vector<16x8xi1>, vector<16x8xf32>
    %cst_60 = arith.constant dense<0xFF800000> : vector<16xf32>
    %197 = vector.multi_reduction <maximumf>, %196, %cst_60 [1] : vector<16x8xf32> to vector<16xf32>
    %198 = vector.shape_cast %197 : vector<16xf32> to vector<16x1xf32>
    %199 = vector.broadcast %198 : vector<16x1xf32> to vector<16x8xf32>
    %200 = arith.cmpf oge, %196, %199 : vector<16x8xf32>
    %c1073741824_i32_61 = arith.constant 1073741824 : i32
    %201 = vector.broadcast %c1073741824_i32_61 : i32 to vector<16x8xi32>
    %202 = arith.select %200, %11, %201 : vector<16x8xi1>, vector<16x8xi32>
    %cst_62 = arith.constant dense<2147483647> : vector<16xi32>
    %203 = vector.multi_reduction <minsi>, %202, %cst_62 [1] : vector<16x8xi32> to vector<16xi32>
    %204 = vector.shape_cast %203 : vector<16xi32> to vector<16x1xi32>
    %205 = vector.broadcast %204 : vector<16x1xi32> to vector<16x8xi32>
    %206 = arith.cmpi eq, %11, %205 : vector<16x8xi32>
    %207 = arith.extui %206 : vector<16x8xi1> to vector<16x8xi32>
    %208 = arith.sitofp %207 : vector<16x8xi32> to vector<16x8xf32>
    %209 = vector.shape_cast %208 : vector<16x8xf32> to vector<16x8x1xf32>
    %210 = vector.broadcast %209 : vector<16x8x1xf32> to vector<16x8x32xf32>
    %211 = arith.mulf %12, %210 : vector<16x8x32xf32>
    %cst_63 = arith.constant dense<0.000000e+00> : vector<16x32xf32>
    %212 = vector.multi_reduction <add>, %211, %cst_63 [1] : vector<16x8x32xf32> to vector<16x32xf32>
    %213 = arith.truncf %212 : vector<16x32xf32> to vector<16x32xbf16>
    %cst_64 = arith.constant dense<0.000000e+00> : vector<16x96xf32>
    %214 = tpu.matmul %213, %13, %cst_64 {dimension_numbers = #tpu.dot_dimension_numbers<[1], [0], [0], [1], [0, 0, 1, 1], [], []>} : vector<16x32xbf16>, vector<32x96xbf16>, vector<16x96xf32> -> vector<16x96xf32>
    %215 = vector.extract_strided_slice %16 {offsets = [0, 0], sizes = [1, 96], strides = [1, 1]} : vector<2x96xf32> to vector<1x96xf32>
    %216 = vector.broadcast %215 : vector<1x96xf32> to vector<16x96xf32>
    %217 = arith.addf %214, %216 : vector<16x96xf32>
    %218 = arith.truncf %135 : vector<16x32xf32> to vector<16x32xbf16>
    %cst_65 = arith.constant dense<0.000000e+00> : vector<16x96xf32>
    %219 = tpu.matmul %218, %14, %cst_65 {dimension_numbers = #tpu.dot_dimension_numbers<[1], [0], [0], [1], [0, 0, 1, 1], [], []>} : vector<16x32xbf16>, vector<32x96xbf16>, vector<16x96xf32> -> vector<16x96xf32>
    %220 = vector.extract_strided_slice %16 {offsets = [1, 0], sizes = [1, 96], strides = [1, 1]} : vector<2x96xf32> to vector<1x96xf32>
    %221 = vector.broadcast %220 : vector<1x96xf32> to vector<16x96xf32>
    %222 = arith.addf %219, %221 : vector<16x96xf32>
    %223 = vector.extract_strided_slice %217 {offsets = [0, 0], sizes = [16, 32], strides = [1, 1]} : vector<16x96xf32> to vector<16x32xf32>
    %224 = vector.extract_strided_slice %222 {offsets = [0, 0], sizes = [16, 32], strides = [1, 1]} : vector<16x96xf32> to vector<16x32xf32>
    %225 = arith.addf %223, %224 : vector<16x32xf32>
    %226 = arith.negf %225 : vector<16x32xf32>
    %227 = math.exp %226 : vector<16x32xf32>
    %cst_66 = arith.constant 1.000000e+00 : f32
    %228 = vector.broadcast %cst_66 : f32 to vector<16x32xf32>
    %229 = arith.addf %228, %227 : vector<16x32xf32>
    %230 = arith.divf %228, %229 : vector<16x32xf32>
    %231 = vector.extract_strided_slice %217 {offsets = [0, 32], sizes = [16, 32], strides = [1, 1]} : vector<16x96xf32> to vector<16x32xf32>
    %232 = vector.extract_strided_slice %222 {offsets = [0, 32], sizes = [16, 32], strides = [1, 1]} : vector<16x96xf32> to vector<16x32xf32>
    %233 = arith.addf %231, %232 : vector<16x32xf32>
    %234 = arith.negf %233 : vector<16x32xf32>
    %235 = math.exp %234 : vector<16x32xf32>
    %cst_67 = arith.constant 1.000000e+00 : f32
    %236 = vector.broadcast %cst_67 : f32 to vector<16x32xf32>
    %237 = arith.addf %236, %235 : vector<16x32xf32>
    %238 = arith.divf %236, %237 : vector<16x32xf32>
    %239 = vector.extract_strided_slice %217 {offsets = [0, 64], sizes = [16, 32], strides = [1, 1]} : vector<16x96xf32> to vector<16x32xf32>
    %240 = vector.extract_strided_slice %222 {offsets = [0, 64], sizes = [16, 32], strides = [1, 1]} : vector<16x96xf32> to vector<16x32xf32>
    %241 = arith.mulf %230, %240 : vector<16x32xf32>
    %242 = arith.addf %239, %241 : vector<16x32xf32>
    %243 = math.tanh %242 : vector<16x32xf32>
    %cst_68 = arith.constant 1.000000e+00 : f32
    %244 = vector.broadcast %cst_68 : f32 to vector<16x32xf32>
    %245 = arith.subf %244, %238 : vector<16x32xf32>
    %246 = arith.mulf %245, %243 : vector<16x32xf32>
    %247 = arith.mulf %238, %135 : vector<16x32xf32>
    %248 = arith.addf %246, %247 : vector<16x32xf32>
    %249 = arith.mulf %8, %208 : vector<16x8xf32>
    %cst_69 = arith.constant dense<0.000000e+00> : vector<16xf32>
    %250 = vector.multi_reduction <add>, %249, %cst_69 [1] : vector<16x8xf32> to vector<16xf32>
    %251 = vector.shape_cast %250 : vector<16xf32> to vector<16x1xf32>
    %cst_70 = arith.constant 0.000000e+00 : f32
    %252 = vector.broadcast %cst_70 : f32 to vector<16x1xf32>
    %253 = arith.cmpf ogt, %251, %252 : vector<16x1xf32>
    %254 = arith.mulf %10, %208 : vector<16x8xf32>
    %cst_71 = arith.constant dense<0.000000e+00> : vector<16xf32>
    %255 = vector.multi_reduction <add>, %254, %cst_71 [1] : vector<16x8xf32> to vector<16xf32>
    %256 = vector.shape_cast %255 : vector<16xf32> to vector<16x1xf32>
    %cst_72 = arith.constant 1.000000e+00 : f32
    %257 = vector.broadcast %cst_72 : f32 to vector<16x8xf32>
    %258 = arith.subf %257, %95 : vector<16x8xf32>
    %259 = arith.mulf %4, %258 : vector<16x8xf32>
    %c112_73 = arith.constant 112 : index
    %c64_74 = arith.constant 64 : index
    %260 = vector.load %arg4[%c112_73, %c64_74] : memref<304x128xbf16, #tpu.memory_space<vmem>>, vector<32x32xbf16>
    %261 = vector.extract_strided_slice %19 {offsets = [0, 64], sizes = [1, 32], strides = [1, 1]} : vector<1x96xf32> to vector<1x32xf32>
    %c256 = arith.constant 256 : index
    %c0_75 = arith.constant 0 : index
    %262 = vector.load %arg4[%c256, %c0_75] : memref<304x128xbf16, #tpu.memory_space<vmem>>, vector<32x16xbf16>
    %c288 = arith.constant 288 : index
    %c0_76 = arith.constant 0 : index
    %263 = vector.load %arg4[%c288, %c0_76] : memref<304x128xbf16, #tpu.memory_space<vmem>>, vector<1x128xbf16>
    %264 = arith.extf %263 : vector<1x128xbf16> to vector<1x128xf32>
    %265 = vector.extract_strided_slice %264 {offsets = [0, 0], sizes = [1, 16], strides = [1, 1]} : vector<1x128xf32> to vector<1x16xf32>
    %266 = vector.extract_strided_slice %264 {offsets = [0, 16], sizes = [1, 16], strides = [1, 1]} : vector<1x128xf32> to vector<1x16xf32>
    %267 = vector.extract_strided_slice %264 {offsets = [0, 32], sizes = [1, 1], strides = [1, 1]} : vector<1x128xf32> to vector<1x1xf32>
    %268 = arith.truncf %248 : vector<16x32xf32> to vector<16x32xbf16>
    %cst_77 = arith.constant dense<0.000000e+00> : vector<16x32xf32>
    %269 = tpu.matmul %268, %260, %cst_77 {dimension_numbers = #tpu.dot_dimension_numbers<[1], [0], [0], [1], [0, 0, 1, 1], [], []>} : vector<16x32xbf16>, vector<32x32xbf16>, vector<16x32xf32> -> vector<16x32xf32>
    %270 = vector.broadcast %261 : vector<1x32xf32> to vector<16x32xf32>
    %271 = arith.addf %269, %270 : vector<16x32xf32>
    %272 = vector.extract_strided_slice %22 {offsets = [0, 0, 64], sizes = [16, 8, 32], strides = [1, 1, 1]} : vector<16x8x96xf32> to vector<16x8x32xf32>
    %273 = vector.shape_cast %271 : vector<16x32xf32> to vector<16x1x32xf32>
    %274 = vector.broadcast %273 : vector<16x1x32xf32> to vector<16x8x32xf32>
    %275 = arith.addf %272, %274 : vector<16x8x32xf32>
    %cst_78 = arith.constant 0.000000e+00 : f32
    %276 = vector.broadcast %cst_78 : f32 to vector<16x8x32xf32>
    %277 = arith.maximumf %275, %276 : vector<16x8x32xf32>
    %278 = vector.shape_cast %277 : vector<16x8x32xf32> to vector<128x32xf32>
    %279 = arith.truncf %278 : vector<128x32xf32> to vector<128x32xbf16>
    %cst_79 = arith.constant dense<0.000000e+00> : vector<128x16xf32>
    %280 = tpu.matmul %279, %262, %cst_79 {dimension_numbers = #tpu.dot_dimension_numbers<[1], [0], [0], [1], [0, 0, 1, 1], [], []>} : vector<128x32xbf16>, vector<32x16xbf16>, vector<128x16xf32> -> vector<128x16xf32>
    %281 = vector.broadcast %265 : vector<1x16xf32> to vector<128x16xf32>
    %282 = arith.addf %280, %281 : vector<128x16xf32>
    %cst_80 = arith.constant 0.000000e+00 : f32
    %283 = vector.broadcast %cst_80 : f32 to vector<128x16xf32>
    %284 = arith.maximumf %282, %283 : vector<128x16xf32>
    %285 = vector.shape_cast %284 : vector<128x16xf32> to vector<16x8x16xf32>
    %286 = vector.shape_cast %266 : vector<1x16xf32> to vector<1x1x16xf32>
    %287 = vector.broadcast %286 : vector<1x1x16xf32> to vector<16x8x16xf32>
    %288 = arith.mulf %285, %287 : vector<16x8x16xf32>
    %cst_81 = arith.constant dense<0.000000e+00> : vector<16x8xf32>
    %289 = vector.multi_reduction <add>, %288, %cst_81 [2] : vector<16x8x16xf32> to vector<16x8xf32>
    %290 = vector.broadcast %267 : vector<1x1xf32> to vector<16x8xf32>
    %291 = arith.addf %289, %290 : vector<16x8xf32>
    %cst_82 = arith.constant 0.000000e+00 : f32
    %292 = vector.broadcast %cst_82 : f32 to vector<16x8xf32>
    %293 = arith.cmpf ogt, %259, %292 : vector<16x8xf32>
    %cst_83 = arith.constant -1.000000e+30 : f32
    %294 = vector.broadcast %cst_83 : f32 to vector<16x8xf32>
    %295 = arith.select %293, %291, %294 : vector<16x8xi1>, vector<16x8xf32>
    %cst_84 = arith.constant dense<0xFF800000> : vector<16xf32>
    %296 = vector.multi_reduction <maximumf>, %295, %cst_84 [1] : vector<16x8xf32> to vector<16xf32>
    %297 = vector.shape_cast %296 : vector<16xf32> to vector<16x1xf32>
    %298 = vector.broadcast %297 : vector<16x1xf32> to vector<16x8xf32>
    %299 = arith.subf %295, %298 : vector<16x8xf32>
    %300 = math.exp %299 : vector<16x8xf32>
    %cst_85 = arith.constant 0.000000e+00 : f32
    %301 = vector.broadcast %cst_85 : f32 to vector<16x8xf32>
    %302 = arith.select %293, %300, %301 : vector<16x8xi1>, vector<16x8xf32>
    %cst_86 = arith.constant dense<0.000000e+00> : vector<16xf32>
    %303 = vector.multi_reduction <add>, %302, %cst_86 [1] : vector<16x8xf32> to vector<16xf32>
    %304 = vector.shape_cast %303 : vector<16xf32> to vector<16x1xf32>
    %cst_87 = arith.constant 1.000000e-30 : f32
    %305 = vector.broadcast %cst_87 : f32 to vector<16x1xf32>
    %306 = arith.maximumf %304, %305 : vector<16x1xf32>
    %307 = vector.broadcast %306 : vector<16x1xf32> to vector<16x8xf32>
    %308 = arith.divf %302, %307 : vector<16x8xf32>
    %cst_88 = arith.constant dense<0.000000e+00> : vector<16xf32>
    %309 = vector.multi_reduction <add>, %259, %cst_88 [1] : vector<16x8xf32> to vector<16xf32>
    %310 = vector.shape_cast %309 : vector<16xf32> to vector<16x1xf32>
    %cst_89 = arith.constant 1.000000e+00 : f32
    %311 = vector.broadcast %cst_89 : f32 to vector<16x1xf32>
    %312 = arith.maximumf %310, %311 : vector<16x1xf32>
    %cst_90 = arith.constant 0.949999988 : f32
    %313 = vector.broadcast %cst_90 : f32 to vector<16x8xf32>
    %314 = arith.mulf %308, %313 : vector<16x8xf32>
    %cst_91 = arith.constant 5.000000e-02 : f32
    %315 = vector.broadcast %cst_91 : f32 to vector<16x1xf32>
    %316 = arith.divf %315, %312 : vector<16x1xf32>
    %317 = vector.broadcast %316 : vector<16x1xf32> to vector<16x8xf32>
    %318 = arith.addf %314, %317 : vector<16x8xf32>
    %cst_92 = arith.constant 0.000000e+00 : f32
    %319 = vector.broadcast %cst_92 : f32 to vector<16x8xf32>
    %320 = arith.select %293, %318, %319 : vector<16x8xi1>, vector<16x8xf32>
    %cst_93 = arith.constant dense<0xFF800000> : vector<16xf32>
    %321 = vector.multi_reduction <maximumf>, %320, %cst_93 [1] : vector<16x8xf32> to vector<16xf32>
    %322 = vector.shape_cast %321 : vector<16xf32> to vector<16x1xf32>
    %323 = vector.broadcast %322 : vector<16x1xf32> to vector<16x8xf32>
    %324 = arith.cmpf oge, %320, %323 : vector<16x8xf32>
    %c1073741824_i32_94 = arith.constant 1073741824 : i32
    %325 = vector.broadcast %c1073741824_i32_94 : i32 to vector<16x8xi32>
    %326 = arith.select %324, %11, %325 : vector<16x8xi1>, vector<16x8xi32>
    %cst_95 = arith.constant dense<2147483647> : vector<16xi32>
    %327 = vector.multi_reduction <minsi>, %326, %cst_95 [1] : vector<16x8xi32> to vector<16xi32>
    %328 = vector.shape_cast %327 : vector<16xi32> to vector<16x1xi32>
    %329 = vector.broadcast %328 : vector<16x1xi32> to vector<16x8xi32>
    %330 = arith.cmpi eq, %11, %329 : vector<16x8xi32>
    %331 = arith.extui %330 : vector<16x8xi1> to vector<16x8xi32>
    %332 = arith.sitofp %331 : vector<16x8xi32> to vector<16x8xf32>
    %333 = vector.shape_cast %332 : vector<16x8xf32> to vector<16x8x1xf32>
    %334 = vector.broadcast %333 : vector<16x8x1xf32> to vector<16x8x32xf32>
    %335 = arith.mulf %12, %334 : vector<16x8x32xf32>
    %cst_96 = arith.constant dense<0.000000e+00> : vector<16x32xf32>
    %336 = vector.multi_reduction <add>, %335, %cst_96 [1] : vector<16x8x32xf32> to vector<16x32xf32>
    %337 = arith.truncf %336 : vector<16x32xf32> to vector<16x32xbf16>
    %cst_97 = arith.constant dense<0.000000e+00> : vector<16x96xf32>
    %338 = tpu.matmul %337, %13, %cst_97 {dimension_numbers = #tpu.dot_dimension_numbers<[1], [0], [0], [1], [0, 0, 1, 1], [], []>} : vector<16x32xbf16>, vector<32x96xbf16>, vector<16x96xf32> -> vector<16x96xf32>
    %339 = vector.extract_strided_slice %16 {offsets = [0, 0], sizes = [1, 96], strides = [1, 1]} : vector<2x96xf32> to vector<1x96xf32>
    %340 = vector.broadcast %339 : vector<1x96xf32> to vector<16x96xf32>
    %341 = arith.addf %338, %340 : vector<16x96xf32>
    %342 = arith.truncf %248 : vector<16x32xf32> to vector<16x32xbf16>
    %cst_98 = arith.constant dense<0.000000e+00> : vector<16x96xf32>
    %343 = tpu.matmul %342, %14, %cst_98 {dimension_numbers = #tpu.dot_dimension_numbers<[1], [0], [0], [1], [0, 0, 1, 1], [], []>} : vector<16x32xbf16>, vector<32x96xbf16>, vector<16x96xf32> -> vector<16x96xf32>
    %344 = vector.extract_strided_slice %16 {offsets = [1, 0], sizes = [1, 96], strides = [1, 1]} : vector<2x96xf32> to vector<1x96xf32>
    %345 = vector.broadcast %344 : vector<1x96xf32> to vector<16x96xf32>
    %346 = arith.addf %343, %345 : vector<16x96xf32>
    %347 = vector.extract_strided_slice %341 {offsets = [0, 0], sizes = [16, 32], strides = [1, 1]} : vector<16x96xf32> to vector<16x32xf32>
    %348 = vector.extract_strided_slice %346 {offsets = [0, 0], sizes = [16, 32], strides = [1, 1]} : vector<16x96xf32> to vector<16x32xf32>
    %349 = arith.addf %347, %348 : vector<16x32xf32>
    %350 = arith.negf %349 : vector<16x32xf32>
    %351 = math.exp %350 : vector<16x32xf32>
    %cst_99 = arith.constant 1.000000e+00 : f32
    %352 = vector.broadcast %cst_99 : f32 to vector<16x32xf32>
    %353 = arith.addf %352, %351 : vector<16x32xf32>
    %354 = arith.divf %352, %353 : vector<16x32xf32>
    %355 = vector.extract_strided_slice %341 {offsets = [0, 32], sizes = [16, 32], strides = [1, 1]} : vector<16x96xf32> to vector<16x32xf32>
    %356 = vector.extract_strided_slice %346 {offsets = [0, 32], sizes = [16, 32], strides = [1, 1]} : vector<16x96xf32> to vector<16x32xf32>
    %357 = arith.addf %355, %356 : vector<16x32xf32>
    %358 = arith.negf %357 : vector<16x32xf32>
    %359 = math.exp %358 : vector<16x32xf32>
    %cst_100 = arith.constant 1.000000e+00 : f32
    %360 = vector.broadcast %cst_100 : f32 to vector<16x32xf32>
    %361 = arith.addf %360, %359 : vector<16x32xf32>
    %362 = arith.divf %360, %361 : vector<16x32xf32>
    %363 = vector.extract_strided_slice %341 {offsets = [0, 64], sizes = [16, 32], strides = [1, 1]} : vector<16x96xf32> to vector<16x32xf32>
    %364 = vector.extract_strided_slice %346 {offsets = [0, 64], sizes = [16, 32], strides = [1, 1]} : vector<16x96xf32> to vector<16x32xf32>
    %365 = arith.mulf %354, %364 : vector<16x32xf32>
    %366 = arith.addf %363, %365 : vector<16x32xf32>
    %367 = math.tanh %366 : vector<16x32xf32>
    %cst_101 = arith.constant 1.000000e+00 : f32
    %368 = vector.broadcast %cst_101 : f32 to vector<16x32xf32>
    %369 = arith.subf %368, %362 : vector<16x32xf32>
    %370 = arith.mulf %369, %367 : vector<16x32xf32>
    %371 = arith.mulf %362, %248 : vector<16x32xf32>
    %372 = arith.addf %370, %371 : vector<16x32xf32>
    %373 = arith.mulf %85, %198 : vector<16x1xf32>
    %374 = arith.mulf %373, %322 : vector<16x1xf32>
    %375 = arith.select %253, %373, %374 : vector<16x1xi1>, vector<16x1xf32>
    %376 = vector.shape_cast %253 : vector<16x1xi1> to vector<16x1xi1>
    %377 = vector.broadcast %376 : vector<16x1xi1> to vector<16x32xi1>
    %378 = arith.select %377, %248, %372 : vector<16x32xi1>, vector<16x32xf32>
    %379 = arith.sitofp %91 : vector<16x1xi32> to vector<16x1xf32>
    %380 = arith.sitofp %204 : vector<16x1xi32> to vector<16x1xf32>
    %381 = arith.sitofp %328 : vector<16x1xi32> to vector<16x1xf32>
    %382 = arith.extui %253 : vector<16x1xi1> to vector<16x1xi32>
    %383 = arith.sitofp %382 : vector<16x1xi32> to vector<16x1xf32>
    %384 = arith.select %253, %256, %380 : vector<16x1xi1>, vector<16x1xf32>
    %385 = arith.select %253, %380, %379 : vector<16x1xi1>, vector<16x1xf32>
    %386 = arith.select %253, %379, %381 : vector<16x1xi1>, vector<16x1xf32>
    %cst_102 = arith.constant 0.000000e+00 : f32
    %387 = vector.broadcast %cst_102 : f32 to vector<16x91xf32>
    %388 = tpu.concatenate %375, %378, %383, %384, %385, %386, %387 in 1 : vector<16x1xf32>, vector<16x32xf32>, vector<16x1xf32>, vector<16x1xf32>, vector<16x1xf32>, vector<16x1xf32>, vector<16x91xf32> -> vector<16x128xf32>
    %c0_103 = arith.constant 0 : index
    %c0_104 = arith.constant 0 : index
    %389 = vector.load %arg5[%c0_103, %c0_104] : memref<16x128xf32, #tpu.memory_space<vmem>>, vector<16x128xf32>
    tpu.vector_store %arg5[%c0_103, %c0_104], %388 {strides = array<i32>} : memref<16x128xf32, #tpu.memory_space<vmem>>, vector<16x128xf32>,
    return
  }
  func.func @transform_0(%arg0: i32) -> (i32, i32, i32) {
    %c0_i32 = arith.constant 0 : i32
    %c0_i32_0 = arith.constant 0 : i32
    %c0_i32_1 = arith.constant 0 : i32
    return %arg0, %c0_i32, %c0_i32_0 : i32, i32, i32
  }
  func.func @transform_1(%arg0: i32) -> (i32, i32) {
    %c0_i32 = arith.constant 0 : i32
    %c0_i32_0 = arith.constant 0 : i32
    return %arg0, %c0_i32 : i32, i32
  }
  func.func @transform_2(%arg0: i32) -> (i32, i32, i32) {
    %c0_i32 = arith.constant 0 : i32
    %c0_i32_0 = arith.constant 0 : i32
    %c0_i32_1 = arith.constant 0 : i32
    return %arg0, %c0_i32, %c0_i32_0 : i32, i32, i32
  }
  func.func @transform_3(%arg0: i32) -> (i32, i32) {
    %c0_i32 = arith.constant 0 : i32
    %c0_i32_0 = arith.constant 0 : i32
    %c0_i32_1 = arith.constant 0 : i32
    return %c0_i32, %c0_i32_0 : i32, i32
  }
  func.func @transform_4(%arg0: i32) -> (i32, i32) {
    %c0_i32 = arith.constant 0 : i32
    %c0_i32_0 = arith.constant 0 : i32
    return %arg0, %c0_i32 : i32, i32
  }
}

</mosaic_0001>

<llo_original>
// kernel: tpu_custom_call.1
$region0: #{tpu_custom_call.1}
  #allocation0 [shape = 'u32[]', space=smem, size = 0x4, offset = 0x4, fixed_abs, tag = 'smem constant byte address 0x4 - core index']
  #allocation1 [shape = 'u32[144,128]{1,0:T(1,128)}', space=vmem, size = 0x12000, scoped, tag = 'internal scratch']
  %s0 = inlined_call_operand.vmem [shape: bf16[16,8,32], index: 0, kind: input, shape index: {}]
  %s1 = inlined_call_operand.vmem [shape: f32[16,32], index: 1, kind: input, shape index: {}]
  %s2 = inlined_call_operand.vmem [shape: f32[16,4,8], index: 2, kind: input, shape index: {}]
  %s3 = inlined_call_operand.hbm [shape: bf16[304,128], index: 3, kind: input, shape index: {}]
  %s4 = inlined_call_operand.hbm [shape: f32[16,128], index: 4, kind: output, shape index: {}]
  %s5 = sld [smem:[#allocation0]]
  $region30: #{tpu_custom_call.1} parent=0
    _
  %s7 = ssub.s32 1, %s5
  %s8 = scalar_select 0, %s7, %s5
  $region1: #{tpu_custom_call.1} parent=0
    #allocation2 [shape = 'u8[77824]{0}', space=vmem, size = 0x13000, scoped, tag = 'input window, operand 3, single buffered']
    #allocation3 [shape = 's32[1]{0}', space=sflag, size = 0x4, scoped, tag = 'scoped memory for tpu_custom_call.1']
    #allocation4 [shape = 's32[1]{0}', space=sflag, size = 0x4, scoped, tag = 'scoped memory for tpu_custom_call.1']
    #allocation5 [shape = 'u8[8192]{0}', space=vmem, size = 0x2000, scoped, tag = 'output window, operand 0, single buffered']
    %9 = vsyncpa [#allocation3], 0
    %10 = vsyncpa [#allocation4], 0
    // Predicated region
    $region2: #{tpu_custom_call.1} parent=1 // pred_check
      _
    $region3: #{tpu_custom_call.1} parent=1 // pred_check_branch
      %12 = sbr.rel (0) target = $region5
    $region4: #{tpu_custom_call.1} parent=1 // pred_region
      _
    $region5: #{tpu_custom_call.1} parent=1 // pred_fallthru
      _
    // Predicated region
    $region6: #{tpu_custom_call.1} parent=1 // pred_check
      _
    $region7: #{tpu_custom_call.1} parent=1 // pred_check_branch
      %14 = sbr.rel (0) target = $region9
    $region8: #{tpu_custom_call.1} parent=1 // pred_region
      _
    $region9: #{tpu_custom_call.1} parent=1 // pred_fallthru
      _
    // Predicated region
    $region10: #{tpu_custom_call.1} parent=1 // pred_check
      _
    $region11: #{tpu_custom_call.1} parent=1 // pred_check_branch
      %16 = sbr.rel (0) target = $region13
    $region12: #{tpu_custom_call.1} parent=1 // pred_region
      _
    $region13: #{tpu_custom_call.1} parent=1 // pred_fallthru
      _
    // Predicated region
    $region14: #{tpu_custom_call.1} parent=1 // pred_check
      _
    $region15: #{tpu_custom_call.1} parent=1 // pred_check_branch
      %18 = sbr.rel (0) target = $region17
    $region16: #{tpu_custom_call.1} parent=1 // pred_region
      %s20 = ssub.s32 2432, 2432
      %21 = vsyncadd [#allocation3], %s20
      %s22 = sshll.u32 [#allocation2], 4
      %s23 = int_to_ptr.vmem [resolvable:$true] %s22
      %28 = dma.hbm_to_vmem [thread:$0]  %s3, 2432, %s23, [#allocation3], 64, 64, 4
    $region17: #{tpu_custom_call.1} parent=1 // pred_fallthru
      _
    // Predicated region
    $region18: #{tpu_custom_call.1} parent=1 // pred_check
      _
    $region19: #{tpu_custom_call.1} parent=1 // pred_check_branch
      %30 = sbr.rel (0) target = $region21
    $region20: #{tpu_custom_call.1} parent=1 // pred_region
      %31 = dma.done [#allocation3], 2432
    $region21: #{tpu_custom_call.1} parent=1 // pred_fallthru
      _
    %v33 = vld [vmem:[%s0] sm:$0xf]
    %v34 = vld [vmem:[%s0 + $0x4] sm:$0xf]
    %v35 = vld [vmem:[%s0 + $0x8] sm:$0xf]
    %v36 = vld [vmem:[%s0 + $0xc] sm:$0xf]
    %v37 = vld [vmem:[%s0 + $0x10] sm:$0xf]
    %v38 = vld [vmem:[%s0 + $0x14] sm:$0xf]
    %v39 = vld [vmem:[%s0 + $0x18] sm:$0xf]
    %v40 = vld [vmem:[%s0 + $0x1c] sm:$0xf]
    %v41 = vld [vmem:[%s0 + $0x20] sm:$0xf]
    %v42 = vld [vmem:[%s0 + $0x24] sm:$0xf]
    %v43 = vld [vmem:[%s0 + $0x28] sm:$0xf]
    %v44 = vld [vmem:[%s0 + $0x2c] sm:$0xf]
    %v45 = vld [vmem:[%s0 + $0x30] sm:$0xf]
    %v46 = vld [vmem:[%s0 + $0x34] sm:$0xf]
    %v47 = vld [vmem:[%s0 + $0x38] sm:$0xf]
    %v48 = vld [vmem:[%s0 + $0x3c] sm:$0xf]
    %v49 = vld [vmem:[%s1] sm:$0xff]
    %v50 = vld [vmem:[%s1 + $0x8] sm:$0xff]
    %v51 = vld [vmem:[%s2] sm:$0xf]
    %v52 = vld [vmem:[%s2 + $0x4] sm:$0xf]
    %v53 = vld [vmem:[%s2 + $0x8] sm:$0xf]
    %v54 = vld [vmem:[%s2 + $0xc] sm:$0xf]
    %v55 = vld [vmem:[%s2 + $0x10] sm:$0xf]
    %v56 = vld [vmem:[%s2 + $0x14] sm:$0xf]
    %v57 = vld [vmem:[%s2 + $0x18] sm:$0xf]
    %v58 = vld [vmem:[%s2 + $0x1c] sm:$0xf]
    %v59 = vld [vmem:[%s2 + $0x20] sm:$0xf]
    %v60 = vld [vmem:[%s2 + $0x24] sm:$0xf]
    %v61 = vld [vmem:[%s2 + $0x28] sm:$0xf]
    %v62 = vld [vmem:[%s2 + $0x2c] sm:$0xf]
    %v63 = vld [vmem:[%s2 + $0x30] sm:$0xf]
    %v64 = vld [vmem:[%s2 + $0x34] sm:$0xf]
    %v65 = vld [vmem:[%s2 + $0x38] sm:$0xf]
    %v66 = vld [vmem:[%s2 + $0x3c] sm:$0xf]
    %v67 = vlaneseq
    %v68 = vand.u32 %v67, 127
    %v69 = vunpack.c.l.bf16 %v33
    %v70 = vunpack.c.l.bf16 %v34
    %v71 = vunpack.c.l.bf16 %v35
    %v72 = vunpack.c.l.bf16 %v36
    %v73 = vunpack.c.l.bf16 %v37
    %v74 = vunpack.c.l.bf16 %v38
    %v75 = vunpack.c.l.bf16 %v39
    %v76 = vunpack.c.l.bf16 %v40
    %v77 = vunpack.c.l.bf16 %v41
    %v78 = vunpack.c.l.bf16 %v42
    %v79 = vunpack.c.l.bf16 %v43
    %v80 = vunpack.c.l.bf16 %v44
    %v81 = vunpack.c.l.bf16 %v45
    %v82 = vunpack.c.l.bf16 %v46
    %v83 = vunpack.c.l.bf16 %v47
    %v84 = vunpack.c.l.bf16 %v48
    %v85 = vld [vmem:[#allocation2] sm:$0xf]
    %v86 = vld [vmem:[#allocation2 + $0x4] sm:$0xf]
    %v87 = vld [vmem:[#allocation2 + $0x8] sm:$0xf]
    %v88 = vld [vmem:[#allocation2 + $0xc] sm:$0xf]
    %v89 = vld [vmem:[#allocation2 + $0x10] sm:$0xf]
    %v90 = vld [vmem:[#allocation2 + $0x14] sm:$0xf]
    %v91 = vld [vmem:[#allocation2 + $0x18] sm:$0xf]
    %v92 = vld [vmem:[#allocation2 + $0x1c] sm:$0xf]
    %v93 = vld [vmem:[#allocation2 + $0x20] sm:$0x1]
    %v94 = vunpack.c.l.bf16 %v93
    %v95 = vld [vmem:[#allocation2 + $0x28] sm:$0xf]
    %v96 = vld [vmem:[#allocation2 + $0x2c] sm:$0xf]
    %v97 = vld [vmem:[#allocation2 + $0x30] sm:$0xf]
    %v98 = vld [vmem:[#allocation2 + $0x34] sm:$0xf]
    %v99 = vld [vmem:[#allocation2 + $0x48] sm:$0x1]
    %v100 = vunpack.c.l.bf16 %v99
    %v117 = vunpack.c.l.b16 %v33
    %v118 = vunpack.c.l.b16 %v34
    %v119 = vunpack.c.l.b16 %v35
    %v120 = vunpack.c.l.b16 %v36
    %v121 = vunpack.c.l.b16 %v37
    %v122 = vunpack.c.l.b16 %v38
    %v123 = vunpack.c.l.b16 %v39
    %v124 = vunpack.c.l.b16 %v40
    %v125 = vunpack.c.l.b16 %v41
    %v126 = vunpack.c.l.b16 %v42
    %v127 = vunpack.c.l.b16 %v43
    %v128 = vunpack.c.l.b16 %v44
    %v129 = vunpack.c.l.b16 %v45
    %v130 = vunpack.c.l.b16 %v46
    %v131 = vunpack.c.l.b16 %v47
    %v132 = vunpack.c.l.b16 %v48
    %v133 = vpack.c.b16 %v118, %v117
    %v134 = vpack.c.b16 %v120, %v119
    %v135 = vpack.c.b16 %v122, %v121
    %v136 = vpack.c.b16 %v124, %v123
    %v137 = vpack.c.b16 %v126, %v125
    %v138 = vpack.c.b16 %v128, %v127
    %v139 = vpack.c.b16 %v130, %v129
    %v140 = vpack.c.b16 %v132, %v131
    %v145 = vunpack.c.l.b16 %v95
    %v146 = vunpack.c.l.b16 %v96
    %v147 = vunpack.c.l.b16 %v97
    %v148 = vunpack.c.l.b16 %v98
    %v149 = vpack.c.b16 %v146, %v145
    %v150 = vpack.c.b16 %v148, %v147
    %vm153 = vcmask 261120
    %v155 = vsel %vm153, %v133, 0
    %v158 = vsel %vm153, %v134, 0
    %v161 = vsel %vm153, %v135, 0
    %v164 = vsel %vm153, %v136, 0
    %v167 = vsel %vm153, %v137, 0
    %v170 = vsel %vm153, %v138, 0
    %v173 = vsel %vm153, %v139, 0
    %v176 = vsel %vm153, %v140, 0
    %178 = vmatprep.subr.bf16.mxu0 0
    %179 = vmatpush1.bf16.msra.mxu0 0
    %180 = vmatprep.subr.bf16.mxu0 0
    %181 = vmatpush1.bf16.msra.mxu0 0
    %182 = vmatprep.subr.bf16.mxu0 0
    %183 = vmatpush1.bf16.msra.mxu0 0
    %184 = vmatprep.subr.bf16.mxu0 0
    %185 = vmatpush1.bf16.msra.mxu0 0
    %186 = vmatprep.subr.bf16.mxu0 0
    %187 = vmatpush1.bf16.msra.mxu0 0
    %188 = vmatprep.subr.bf16.mxu0 0
    %189 = vmatpush1.bf16.msra.mxu0 0
    %190 = vmatprep.subr.bf16.mxu0 0
    %191 = vmatpush1.bf16.msra.mxu0 %v150
    %192 = vmatprep.subr.bf16.mxu0 0
    %193 = vmatpush1.bf16.msra.mxu0 %v149
    %194 = vmatprep.subr.bf16.mxu0 0
    %195 = vmatpush2.bf16.msra.mxu0 0
    %196 = vmatprep.subr.bf16.mxu0 0
    %197 = vmatpush2.bf16.msra.mxu0 0
    %198 = vmatprep.subr.bf16.mxu0 0
    %199 = vmatpush2.bf16.msra.mxu0 0
    %200 = vmatprep.subr.bf16.mxu0 0
    %201 = vmatpush2.bf16.msra.mxu0 0
    %202 = vmatprep.subr.bf16.mxu0 0
    %203 = vmatpush2.bf16.msra.mxu0 0
    %204 = vmatprep.subr.bf16.mxu0 0
    %205 = vmatpush2.bf16.msra.mxu0 0
    %206 = vmatprep.subr.bf16.mxu0 0
    %207 = vmatpush2.bf16.msra.mxu0 0
    %208 = vmatprep.subr.bf16.mxu0 0
    %209 = vmatpush2.bf16.msra.mxu0 0
    %210 = vmatprep.mubr.bf16.mxu0 0
    %211 = vmatmul.mubr.bf16.gmra.mxu0 %v155
    %v212 = vpop.f32.mrf.mxu0
    %v213 = vadd.f32 0.0, %v212
    %v214 = vpop.f32.mrf.mxu0
    %v215 = vpop.f32.mrf.mxu0
    %v216 = vadd.f32 0.0, %v215
    %v217 = vpop.f32.mrf.mxu0
    %218 = vmatprep.mubr.bf16.mxu0 0
    %219 = vmatmul.mubr.bf16.gmra.mxu0 %v158
    %v220 = vpop.f32.mrf.mxu0
    %v221 = vadd.f32 0.0, %v220
    %v222 = vpop.f32.mrf.mxu0
    %v223 = vpop.f32.mrf.mxu0
    %v224 = vadd.f32 0.0, %v223
    %v225 = vpop.f32.mrf.mxu0
    %226 = vmatprep.mubr.bf16.mxu0 0
    %227 = vmatmul.mubr.bf16.gmra.mxu0 %v161
    %v228 = vpop.f32.mrf.mxu0
    %v229 = vadd.f32 0.0, %v228
    %v230 = vpop.f32.mrf.mxu0
    %v231 = vpop.f32.mrf.mxu0
    %v232 = vadd.f32 0.0, %v231
    %v233 = vpop.f32.mrf.mxu0
    %234 = vmatprep.mubr.bf16.mxu0 0
    %235 = vmatmul.mubr.bf16.gmra.mxu0 %v164
    %v236 = vpop.f32.mrf.mxu0
    %v237 = vadd.f32 0.0, %v236
    %v238 = vpop.f32.mrf.mxu0
    %v239 = vpop.f32.mrf.mxu0
    %v240 = vadd.f32 0.0, %v239
    %v241 = vpop.f32.mrf.mxu0
    %242 = vmatprep.mubr.bf16.mxu0 0
    %243 = vmatmul.mubr.bf16.gmra.mxu0 %v167
    %v244 = vpop.f32.mrf.mxu0
    %v245 = vadd.f32 0.0, %v244
    %v246 = vpop.f32.mrf.mxu0
    %v247 = vpop.f32.mrf.mxu0
    %v248 = vadd.f32 0.0, %v247
    %v249 = vpop.f32.mrf.mxu0
    %250 = vmatprep.mubr.bf16.mxu0 0
    %251 = vmatmul.mubr.bf16.gmra.mxu0 %v170
    %v252 = vpop.f32.mrf.mxu0
    %v253 = vadd.f32 0.0, %v252
    %v254 = vpop.f32.mrf.mxu0
    %v255 = vpop.f32.mrf.mxu0
    %v256 = vadd.f32 0.0, %v255
    %v257 = vpop.f32.mrf.mxu0
    %258 = vmatprep.mubr.bf16.mxu0 0
    %259 = vmatmul.mubr.bf16.gmra.mxu0 %v173
    %v260 = vpop.f32.mrf.mxu0
    %v261 = vadd.f32 0.0, %v260
    %v262 = vpop.f32.mrf.mxu0
    %v263 = vpop.f32.mrf.mxu0
    %v264 = vadd.f32 0.0, %v263
    %v265 = vpop.f32.mrf.mxu0
    %266 = vmatprep.mubr.bf16.mxu0 0
    %267 = vmatmul.mubr.bf16.gmra.mxu0 %v176
    %v268 = vpop.f32.mrf.mxu0
    %v269 = vadd.f32 0.0, %v268
    %v270 = vpop.f32.mrf.mxu0
    %v271 = vpop.f32.mrf.mxu0
    %v272 = vadd.f32 0.0, %v271
    %v273 = vpop.f32.mrf.mxu0
    %274 = vdwg.mxu0
    %v275 = vld [vmem:[#allocation2 + $0x38] sm:$0xf]
    %v276 = vld [vmem:[#allocation2 + $0x3c] sm:$0xf]
    %v277 = vld [vmem:[#allocation2 + $0x40] sm:$0xf]
    %v278 = vld [vmem:[#allocation2 + $0x44] sm:$0xf]
    %v279 = vld [vmem:[#allocation2 + $0x50] sm:$0xf]
    %v280 = vld [vmem:[#allocation2 + $0x54] sm:$0xf]
    %v281 = vld [vmem:[#allocation2 + $0x58] sm:$0xf]
    %v282 = vld [vmem:[#allocation2 + $0x5c] sm:$0xf]
    %v283 = vld [vmem:[#allocation2 + $0x60] sm:$0x1]
    %v284 = vunpack.c.l.bf16 %v283
    %v285 = vpack.c.bf16 %v50, %v49
    %v286 = vlaneseq
    %v287 = vshrl.u32 %v286, 7
    %v288 = vsub.s32 0, %v287
    %v289 = vrot.slane %v100, %v288
    %v294 = vunpack.c.l.b16 %v275
    %v295 = vunpack.c.l.b16 %v276
    %v296 = vunpack.c.l.b16 %v277
    %v297 = vunpack.c.l.b16 %v278
    %v298 = vpack.c.b16 %v295, %v294
    %v299 = vpack.c.b16 %v297, %v296
    %v303 = vsel %vm153, %v285, 0
    %305 = vmatprep.subr.bf16.mxu0 0
    %306 = vmatpush1.bf16.msra.mxu0 0
    %307 = vmatprep.subr.bf16.mxu0 0
    %308 = vmatpush1.bf16.msra.mxu0 0
    %309 = vmatprep.subr.bf16.mxu0 0
    %310 = vmatpush1.bf16.msra.mxu0 0
    %311 = vmatprep.subr.bf16.mxu0 0
    %312 = vmatpush1.bf16.msra.mxu0 0
    %313 = vmatprep.subr.bf16.mxu0 0
    %314 = vmatpush1.bf16.msra.mxu0 0
    %315 = vmatprep.subr.bf16.mxu0 0
    %316 = vmatpush1.bf16.msra.mxu0 0
    %317 = vmatprep.subr.bf16.mxu0 0
    %318 = vmatpush1.bf16.msra.mxu0 %v299
    %319 = vmatprep.subr.bf16.mxu0 0
    %320 = vmatpush1.bf16.msra.mxu0 %v298
    %321 = vmatprep.subr.bf16.mxu0 0
    %322 = vmatpush2.bf16.msra.mxu0 0
    %323 = vmatprep.subr.bf16.mxu0 0
    %324 = vmatpush2.bf16.msra.mxu0 0
    %325 = vmatprep.subr.bf16.mxu0 0
    %326 = vmatpush2.bf16.msra.mxu0 0
    %327 = vmatprep.subr.bf16.mxu0 0
    %328 = vmatpush2.bf16.msra.mxu0 0
    %329 = vmatprep.subr.bf16.mxu0 0
    %330 = vmatpush2.bf16.msra.mxu0 0
    %331 = vmatprep.subr.bf16.mxu0 0
    %332 = vmatpush2.bf16.msra.mxu0 0
    %333 = vmatprep.subr.bf16.mxu0 0
    %334 = vmatpush2.bf16.msra.mxu0 0
    %335 = vmatprep.subr.bf16.mxu0 0
    %336 = vmatpush2.bf16.msra.mxu0 0
    %337 = vmatprep.mubr.bf16.mxu0 0
    %338 = vmatmul.mubr.bf16.gmra.mxu0 %v303
    %v339 = vpop.f32.mrf.mxu0
    %v340 = vadd.f32 %v289, %v339
    %v341 = vpop.f32.mrf.mxu0
    %v342 = vpop.f32.mrf.mxu0
    %v343 = vadd.f32 %v289, %v342
    %v344 = vpop.f32.mrf.mxu0
    %345 = vdwg.mxu0
    %v348 = vcombine.high %v340, %v340
    %v350 = vunpack.c.l.s4 1966171168
    %v351 = vunpack.c.0.s8 %v350
    %v352 = vlaneseq
    %v353 = vshrl.u32 %v352, 7
    %v354 = vsub.s32 %v351, %v353
    %v355 = vrot.slane %v340, %v354
    %v357 = vunpack.c.l.s4 1966171168
    %v358 = vunpack.c.0.s8 %v357
    %v359 = vlaneseq
    %v360 = vshrl.u32 %v359, 7
    %v361 = vsub.s32 %v358, %v360
    %v362 = vrot.slane %v348, %v361
    %v363 = vcombine.high %v355, %v355
    %v364 = vcombine.high %v362, %v362
    %v366 = vunpack.c.l.s4 1966171168
    %v367 = vunpack.c.0.s8 %v366
    %v368 = vlaneseq
    %v369 = vshrl.u32 %v368, 7
    %v370 = vsub.s32 %v367, %v369
    %v371 = vrot.slane %v355, %v370
    %v373 = vunpack.c.l.s4 1966171168
    %v374 = vunpack.c.0.s8 %v373
    %v375 = vlaneseq
    %v376 = vshrl.u32 %v375, 7
    %v377 = vsub.s32 %v374, %v376
    %v378 = vrot.slane %v362, %v377
    %v380 = vunpack.c.l.s4 1966171168
    %v381 = vunpack.c.0.s8 %v380
    %v382 = vlaneseq
    %v383 = vshrl.u32 %v382, 7
    %v384 = vsub.s32 %v381, %v383
    %v385 = vrot.slane %v363, %v384
    %v387 = vunpack.c.l.s4 1966171168
    %v388 = vunpack.c.0.s8 %v387
    %v389 = vlaneseq
    %v390 = vshrl.u32 %v389, 7
    %v391 = vsub.s32 %v388, %v390
    %v392 = vrot.slane %v364, %v391
    %v393 = vcombine.high %v371, %v371
    %v394 = vcombine.high %v378, %v378
    %v395 = vcombine.high %v385, %v385
    %v396 = vcombine.high %v392, %v392
    %v397 = vcombine.high %v343, %v343
    %v399 = vunpack.c.l.s4 1966171168
    %v400 = vunpack.c.0.s8 %v399
    %v401 = vlaneseq
    %v402 = vshrl.u32 %v401, 7
    %v403 = vsub.s32 %v400, %v402
    %v404 = vrot.slane %v343, %v403
    %v406 = vunpack.c.l.s4 1966171168
    %v407 = vunpack.c.0.s8 %v406
    %v408 = vlaneseq
    %v409 = vshrl.u32 %v408, 7
    %v410 = vsub.s32 %v407, %v409
    %v411 = vrot.slane %v397, %v410
    %v412 = vcombine.high %v404, %v404
    %v413 = vcombine.high %v411, %v411
    %v415 = vunpack.c.l.s4 1966171168
    %v416 = vunpack.c.0.s8 %v415
    %v417 = vlaneseq
    %v418 = vshrl.u32 %v417, 7
    %v419 = vsub.s32 %v416, %v418
    %v420 = vrot.slane %v404, %v419
    %v422 = vunpack.c.l.s4 1966171168
    %v423 = vunpack.c.0.s8 %v422
    %v424 = vlaneseq
    %v425 = vshrl.u32 %v424, 7
    %v426 = vsub.s32 %v423, %v425
    %v427 = vrot.slane %v411, %v426
    %v429 = vunpack.c.l.s4 1966171168
    %v430 = vunpack.c.0.s8 %v429
    %v431 = vlaneseq
    %v432 = vshrl.u32 %v431, 7
    %v433 = vsub.s32 %v430, %v432
    %v434 = vrot.slane %v412, %v433
    %v436 = vunpack.c.l.s4 1966171168
    %v437 = vunpack.c.0.s8 %v436
    %v438 = vlaneseq
    %v439 = vshrl.u32 %v438, 7
    %v440 = vsub.s32 %v437, %v439
    %v441 = vrot.slane %v413, %v440
    %v442 = vcombine.high %v420, %v420
    %v443 = vcombine.high %v427, %v427
    %v444 = vcombine.high %v434, %v434
    %v445 = vcombine.high %v441, %v441
    %v446 = vlaneseq
    %v447 = vshrl.u32 %v446, 7
    %v448 = vsub.s32 0, %v447
    %v449 = vrot.slane %v371, %v448
    %v450 = vlaneseq
    %v451 = vshrl.u32 %v450, 7
    %v452 = vsub.s32 0, %v451
    %v453 = vrot.slane %v385, %v452
    %v454 = vlaneseq
    %v455 = vshrl.u32 %v454, 7
    %v456 = vsub.s32 0, %v455
    %v457 = vrot.slane %v393, %v456
    %v458 = vlaneseq
    %v459 = vshrl.u32 %v458, 7
    %v460 = vsub.s32 0, %v459
    %v461 = vrot.slane %v395, %v460
    %v462 = vlaneseq
    %v463 = vshrl.u32 %v462, 7
    %v464 = vsub.s32 0, %v463
    %v465 = vrot.slane %v378, %v464
    %v466 = vlaneseq
    %v467 = vshrl.u32 %v466, 7
    %v468 = vsub.s32 0, %v467
    %v469 = vrot.slane %v392, %v468
    %v470 = vlaneseq
    %v471 = vshrl.u32 %v470, 7
    %v472 = vsub.s32 0, %v471
    %v473 = vrot.slane %v394, %v472
    %v474 = vlaneseq
    %v475 = vshrl.u32 %v474, 7
    %v476 = vsub.s32 0, %v475
    %v477 = vrot.slane %v396, %v476
    %v478 = vlaneseq
    %v479 = vshrl.u32 %v478, 7
    %v480 = vsub.s32 0, %v479
    %v481 = vrot.slane %v420, %v480
    %v482 = vlaneseq
    %v483 = vshrl.u32 %v482, 7
    %v484 = vsub.s32 0, %v483
    %v485 = vrot.slane %v434, %v484
    %v486 = vlaneseq
    %v487 = vshrl.u32 %v486, 7
    %v488 = vsub.s32 0, %v487
    %v489 = vrot.slane %v442, %v488
    %v490 = vlaneseq
    %v491 = vshrl.u32 %v490, 7
    %v492 = vsub.s32 0, %v491
    %v493 = vrot.slane %v444, %v492
    %v494 = vlaneseq
    %v495 = vshrl.u32 %v494, 7
    %v496 = vsub.s32 0, %v495
    %v497 = vrot.slane %v427, %v496
    %v498 = vlaneseq
    %v499 = vshrl.u32 %v498, 7
    %v500 = vsub.s32 0, %v499
    %v501 = vrot.slane %v441, %v500
    %v502 = vlaneseq
    %v503 = vshrl.u32 %v502, 7
    %v504 = vsub.s32 0, %v503
    %v505 = vrot.slane %v443, %v504
    %v506 = vlaneseq
    %v507 = vshrl.u32 %v506, 7
    %v508 = vsub.s32 0, %v507
    %v509 = vrot.slane %v445, %v508
    %v526 = vadd.f32 %v213, %v449
    %v527 = vadd.f32 %v216, %v453
    %v528 = vadd.f32 %v221, %v457
    %v529 = vadd.f32 %v224, %v461
    %v530 = vadd.f32 %v229, %v465
    %v531 = vadd.f32 %v232, %v469
    %v532 = vadd.f32 %v237, %v473
    %v533 = vadd.f32 %v240, %v477
    %v534 = vadd.f32 %v245, %v481
    %v535 = vadd.f32 %v248, %v485
    %v536 = vadd.f32 %v253, %v489
    %v537 = vadd.f32 %v256, %v493
    %v538 = vadd.f32 %v261, %v497
    %v539 = vadd.f32 %v264, %v501
    %v540 = vadd.f32 %v269, %v505
    %v541 = vadd.f32 %v272, %v509
    %v542 = vmax.f32 %v526, 0.0
    %v543 = vmax.f32 %v527, 0.0
    %v544 = vmax.f32 %v528, 0.0
    %v545 = vmax.f32 %v529, 0.0
    %v546 = vmax.f32 %v530, 0.0
    %v547 = vmax.f32 %v531, 0.0
    %v548 = vmax.f32 %v532, 0.0
    %v549 = vmax.f32 %v533, 0.0
    %v550 = vmax.f32 %v534, 0.0
    %v551 = vmax.f32 %v535, 0.0
    %v552 = vmax.f32 %v536, 0.0
    %v553 = vmax.f32 %v537, 0.0
    %v554 = vmax.f32 %v538, 0.0
    %v555 = vmax.f32 %v539, 0.0
    %v556 = vmax.f32 %v540, 0.0
    %v557 = vmax.f32 %v541, 0.0
    %v558 = vpack.c.bf16 %v543, %v542
    %v559 = vpack.c.bf16 %v545, %v544
    %v560 = vpack.c.bf16 %v547, %v546
    %v561 = vpack.c.bf16 %v549, %v548
    %v562 = vpack.c.bf16 %v551, %v550
    %v563 = vpack.c.bf16 %v553, %v552
    %v564 = vpack.c.bf16 %v555, %v554
    %v565 = vpack.c.bf16 %v557, %v556
    %v566 = vlaneseq
    %v567 = vshrl.u32 %v566, 7
    %v568 = vsub.s32 0, %v567
    %v569 = vrot.slane %v284, %v568
    %v574 = vunpack.c.l.b16 %v279
    %v575 = vunpack.c.l.b16 %v280
    %v576 = vunpack.c.l.b16 %v281
    %v577 = vunpack.c.l.b16 %v282
    %v578 = vpack.c.b16 %v575, %v574
    %v579 = vpack.c.b16 %v577, %v576
    %v583 = vsel %vm153, %v558, 0
    %v586 = vsel %vm153, %v559, 0
    %v589 = vsel %vm153, %v560, 0
    %v592 = vsel %vm153, %v561, 0
    %v595 = vsel %vm153, %v562, 0
    %v598 = vsel %vm153, %v563, 0
    %v601 = vsel %vm153, %v564, 0
    %v604 = vsel %vm153, %v565, 0
    %606 = vmatprep.subr.bf16.mxu0 0
    %607 = vmatpush1.bf16.msra.mxu0 0
    %608 = vmatprep.subr.bf16.mxu0 0
    %609 = vmatpush1.bf16.msra.mxu0 0
    %610 = vmatprep.subr.bf16.mxu0 0
    %611 = vmatpush1.bf16.msra.mxu0 0
    %612 = vmatprep.subr.bf16.mxu0 0
    %613 = vmatpush1.bf16.msra.mxu0 0
    %614 = vmatprep.subr.bf16.mxu0 0
    %615 = vmatpush1.bf16.msra.mxu0 0
    %616 = vmatprep.subr.bf16.mxu0 0
    %617 = vmatpush1.bf16.msra.mxu0 0
    %618 = vmatprep.subr.bf16.mxu0 0
    %619 = vmatpush1.bf16.msra.mxu0 %v579
    %620 = vmatprep.subr.bf16.mxu0 0
    %621 = vmatpush1.bf16.msra.mxu0 %v578
    %622 = vmatprep.subr.bf16.mxu0 0
    %623 = vmatpush2.bf16.msra.mxu0 0
    %624 = vmatprep.subr.bf16.mxu0 0
    %625 = vmatpush2.bf16.msra.mxu0 0
    %626 = vmatprep.subr.bf16.mxu0 0
    %627 = vmatpush2.bf16.msra.mxu0 0
    %628 = vmatprep.subr.bf16.mxu0 0
    %629 = vmatpush2.bf16.msra.mxu0 0
    %630 = vmatprep.subr.bf16.mxu0 0
    %631 = vmatpush2.bf16.msra.mxu0 0
    %632 = vmatprep.subr.bf16.mxu0 0
    %633 = vmatpush2.bf16.msra.mxu0 0
    %634 = vmatprep.subr.bf16.mxu0 0
    %635 = vmatpush2.bf16.msra.mxu0 0
    %636 = vmatprep.subr.bf16.mxu0 0
    %637 = vmatpush2.bf16.msra.mxu0 0
    %638 = vmatprep.mubr.bf16.mxu0 0
    %639 = vmatmul.mubr.bf16.gmra.mxu0 %v583
    %v640 = vpop.f32.mrf.mxu0
    %v641 = vadd.f32 %v569, %v640
    %v642 = vpop.f32.mrf.mxu0
    %v643 = vpop.f32.mrf.mxu0
    %v644 = vadd.f32 %v569, %v643
    %v645 = vpop.f32.mrf.mxu0
    %646 = vmatprep.mubr.bf16.mxu0 0
    %647 = vmatmul.mubr.bf16.gmra.mxu0 %v586
    %v648 = vpop.f32.mrf.mxu0
    %v649 = vadd.f32 %v569, %v648
    %v650 = vpop.f32.mrf.mxu0
    %v651 = vpop.f32.mrf.mxu0
    %v652 = vadd.f32 %v569, %v651
    %v653 = vpop.f32.mrf.mxu0
    %654 = vmatprep.mubr.bf16.mxu0 0
    %655 = vmatmul.mubr.bf16.gmra.mxu0 %v589
    %v656 = vpop.f32.mrf.mxu0
    %v657 = vadd.f32 %v569, %v656
    %v658 = vpop.f32.mrf.mxu0
    %v659 = vpop.f32.mrf.mxu0
    %v660 = vadd.f32 %v569, %v659
    %v661 = vpop.f32.mrf.mxu0
    %662 = vmatprep.mubr.bf16.mxu0 0
    %663 = vmatmul.mubr.bf16.gmra.mxu0 %v592
    %v664 = vpop.f32.mrf.mxu0
    %v665 = vadd.f32 %v569, %v664
    %v666 = vpop.f32.mrf.mxu0
    %v667 = vpop.f32.mrf.mxu0
    %v668 = vadd.f32 %v569, %v667
    %v669 = vpop.f32.mrf.mxu0
    %670 = vmatprep.mubr.bf16.mxu0 0
    %671 = vmatmul.mubr.bf16.gmra.mxu0 %v595
    %v672 = vpop.f32.mrf.mxu0
    %v673 = vadd.f32 %v569, %v672
    %v674 = vpop.f32.mrf.mxu0
    %v675 = vpop.f32.mrf.mxu0
    %v676 = vadd.f32 %v569, %v675
    %v677 = vpop.f32.mrf.mxu0
    %678 = vmatprep.mubr.bf16.mxu0 0
    %679 = vmatmul.mubr.bf16.gmra.mxu0 %v598
    %v680 = vpop.f32.mrf.mxu0
    %v681 = vadd.f32 %v569, %v680
    %v682 = vpop.f32.mrf.mxu0
    %v683 = vpop.f32.mrf.mxu0
    %v684 = vadd.f32 %v569, %v683
    %v685 = vpop.f32.mrf.mxu0
    %686 = vmatprep.mubr.bf16.mxu0 0
    %687 = vmatmul.mubr.bf16.gmra.mxu0 %v601
    %v688 = vpop.f32.mrf.mxu0
    %v689 = vadd.f32 %v569, %v688
    %v690 = vpop.f32.mrf.mxu0
    %v691 = vpop.f32.mrf.mxu0
    %v692 = vadd.f32 %v569, %v691
    %v693 = vpop.f32.mrf.mxu0
    %694 = vmatprep.mubr.bf16.mxu0 0
    %695 = vmatmul.mubr.bf16.gmra.mxu0 %v604
    %v696 = vpop.f32.mrf.mxu0
    %v697 = vadd.f32 %v569, %v696
    %v698 = vpop.f32.mrf.mxu0
    %v699 = vpop.f32.mrf.mxu0
    %v700 = vadd.f32 %v569, %v699
    %v701 = vpop.f32.mrf.mxu0
    %702 = vdwg.mxu0
    %v703 = vmax.f32 %v641, 0.0
    %v704 = vmax.f32 %v644, 0.0
    %v705 = vmax.f32 %v649, 0.0
    %v706 = vmax.f32 %v652, 0.0
    %v707 = vmax.f32 %v657, 0.0
    %v708 = vmax.f32 %v660, 0.0
    %v709 = vmax.f32 %v665, 0.0
    %v710 = vmax.f32 %v668, 0.0
    %v711 = vmax.f32 %v673, 0.0
    %v712 = vmax.f32 %v676, 0.0
    %v713 = vmax.f32 %v681, 0.0
    %v714 = vmax.f32 %v684, 0.0
    %v715 = vmax.f32 %v689, 0.0
    %v716 = vmax.f32 %v692, 0.0
    %v717 = vmax.f32 %v697, 0.0
    %v718 = vmax.f32 %v700, 0.0
    %720 = vrot.lane.b32.xlu0 %v569, 112
    %v721 = vpop.permute.xlu0 %720
    %v723 = vmul.f32 %v703, %v721
    %v724 = vmul.f32 %v704, %v721
    %v725 = vmul.f32 %v705, %v721
    %v726 = vmul.f32 %v706, %v721
    %v727 = vmul.f32 %v707, %v721
    %v728 = vmul.f32 %v708, %v721
    %v729 = vmul.f32 %v709, %v721
    %v730 = vmul.f32 %v710, %v721
    %v731 = vmul.f32 %v711, %v721
    %v732 = vmul.f32 %v712, %v721
    %v733 = vmul.f32 %v713, %v721
    %v734 = vmul.f32 %v714, %v721
    %v735 = vmul.f32 %v715, %v721
    %v736 = vmul.f32 %v716, %v721
    %v737 = vmul.f32 %v717, %v721
    %v738 = vmul.f32 %v718, %v721
    %vm739 = vcmask 130048
    %v740 = vsel %vm739, %v723, 0.0
    %741 = vadd.xlane.f32.xlu0 %v740
    %v742 = vpop.xlane.xlu0 %741
    %v743 = vsel %vm739, %v724, 0.0
    %744 = vadd.xlane.f32.xlu0 %v743
    %v745 = vpop.xlane.xlu0 %744
    %v746 = vsel %vm739, %v725, 0.0
    %747 = vadd.xlane.f32.xlu0 %v746
    %v748 = vpop.xlane.xlu0 %747
    %v749 = vsel %vm739, %v726, 0.0
    %750 = vadd.xlane.f32.xlu0 %v749
    %v751 = vpop.xlane.xlu0 %750
    %v752 = vsel %vm739, %v727, 0.0
    %753 = vadd.xlane.f32.xlu0 %v752
    %v754 = vpop.xlane.xlu0 %753
    %v755 = vsel %vm739, %v728, 0.0
    %756 = vadd.xlane.f32.xlu0 %v755
    %v757 = vpop.xlane.xlu0 %756
    %v758 = vsel %vm739, %v729, 0.0
    %759 = vadd.xlane.f32.xlu0 %v758
    %v760 = vpop.xlane.xlu0 %759
    %v761 = vsel %vm739, %v730, 0.0
    %762 = vadd.xlane.f32.xlu0 %v761
    %v763 = vpop.xlane.xlu0 %762
    %v764 = vsel %vm739, %v731, 0.0
    %765 = vadd.xlane.f32.xlu0 %v764
    %v766 = vpop.xlane.xlu0 %765
    %v767 = vsel %vm739, %v732, 0.0
    %768 = vadd.xlane.f32.xlu0 %v767
    %v769 = vpop.xlane.xlu0 %768
    %v770 = vsel %vm739, %v733, 0.0
    %771 = vadd.xlane.f32.xlu0 %v770
    %v772 = vpop.xlane.xlu0 %771
    %v773 = vsel %vm739, %v734, 0.0
    %774 = vadd.xlane.f32.xlu0 %v773
    %v775 = vpop.xlane.xlu0 %774
    %v776 = vsel %vm739, %v735, 0.0
    %777 = vadd.xlane.f32.xlu0 %v776
    %v778 = vpop.xlane.xlu0 %777
    %v779 = vsel %vm739, %v736, 0.0
    %780 = vadd.xlane.f32.xlu0 %v779
    %v781 = vpop.xlane.xlu0 %780
    %v782 = vsel %vm739, %v737, 0.0
    %783 = vadd.xlane.f32.xlu0 %v782
    %v784 = vpop.xlane.xlu0 %783
    %v785 = vsel %vm739, %v738, 0.0
    %786 = vadd.xlane.f32.xlu0 %v785
    %v787 = vpop.xlane.xlu0 %786
    %789 = vrot.lane.b32.xlu0 %v284, 96
    %v790 = vpop.permute.xlu0 %789
    %s791 = vtos %v790
    %v792 = vstv %s791
    %v794 = vadd.f32 %v742, %v792
    %v795 = vadd.f32 %v745, %v792
    %v796 = vadd.f32 %v748, %v792
    %v797 = vadd.f32 %v751, %v792
    %v798 = vadd.f32 %v754, %v792
    %v799 = vadd.f32 %v757, %v792
    %v800 = vadd.f32 %v760, %v792
    %v801 = vadd.f32 %v763, %v792
    %v802 = vadd.f32 %v766, %v792
    %v803 = vadd.f32 %v769, %v792
    %v804 = vadd.f32 %v772, %v792
    %v805 = vadd.f32 %v775, %v792
    %v806 = vadd.f32 %v778, %v792
    %v807 = vadd.f32 %v781, %v792
    %v808 = vadd.f32 %v784, %v792
    %v809 = vadd.f32 %v787, %v792
    %vm810 = vcmp.gt.f32.partialorder %v51, 0.0
    %vm811 = vcmp.gt.f32.partialorder %v52, 0.0
    %vm812 = vcmp.gt.f32.partialorder %v53, 0.0
    %vm813 = vcmp.gt.f32.partialorder %v54, 0.0
    %vm814 = vcmp.gt.f32.partialorder %v55, 0.0
    %vm815 = vcmp.gt.f32.partialorder %v56, 0.0
    %vm816 = vcmp.gt.f32.partialorder %v57, 0.0
    %vm817 = vcmp.gt.f32.partialorder %v58, 0.0
    %vm818 = vcmp.gt.f32.partialorder %v59, 0.0
    %vm819 = vcmp.gt.f32.partialorder %v60, 0.0
    %vm820 = vcmp.gt.f32.partialorder %v61, 0.0
    %vm821 = vcmp.gt.f32.partialorder %v62, 0.0
    %vm822 = vcmp.gt.f32.partialorder %v63, 0.0
    %vm823 = vcmp.gt.f32.partialorder %v64, 0.0
    %vm824 = vcmp.gt.f32.partialorder %v65, 0.0
    %vm825 = vcmp.gt.f32.partialorder %v66, 0.0
    %v842 = vlaneseq
    %v843 = vshrl.u32 %v842, 7
    %v844 = vsub.s32 %v68, %v843
    %v845 = vrot.slane %v794, %v844
    %v846 = vlaneseq
    %v847 = vshrl.u32 %v846, 7
    %v848 = vsub.s32 %v68, %v847
    %v849 = vrot.slane %v795, %v848
    %v850 = vlaneseq
    %v851 = vshrl.u32 %v850, 7
    %v852 = vsub.s32 %v68, %v851
    %v853 = vrot.slane %v796, %v852
    %v854 = vlaneseq
    %v855 = vshrl.u32 %v854, 7
    %v856 = vsub.s32 %v68, %v855
    %v857 = vrot.slane %v797, %v856
    %v858 = vlaneseq
    %v859 = vshrl.u32 %v858, 7
    %v860 = vsub.s32 %v68, %v859
    %v861 = vrot.slane %v798, %v860
    %v862 = vlaneseq
    %v863 = vshrl.u32 %v862, 7
    %v864 = vsub.s32 %v68, %v863
    %v865 = vrot.slane %v799, %v864
    %v866 = vlaneseq
    %v867 = vshrl.u32 %v866, 7
    %v868 = vsub.s32 %v68, %v867
    %v869 = vrot.slane %v800, %v868
    %v870 = vlaneseq
    %v871 = vshrl.u32 %v870, 7
    %v872 = vsub.s32 %v68, %v871
    %v873 = vrot.slane %v801, %v872
    %v874 = vlaneseq
    %v875 = vshrl.u32 %v874, 7
    %v876 = vsub.s32 %v68, %v875
    %v877 = vrot.slane %v802, %v876
    %v878 = vlaneseq
    %v879 = vshrl.u32 %v878, 7
    %v880 = vsub.s32 %v68, %v879
    %v881 = vrot.slane %v803, %v880
    %v882 = vlaneseq
    %v883 = vshrl.u32 %v882, 7
    %v884 = vsub.s32 %v68, %v883
    %v885 = vrot.slane %v804, %v884
    %v886 = vlaneseq
    %v887 = vshrl.u32 %v886, 7
    %v888 = vsub.s32 %v68, %v887
    %v889 = vrot.slane %v805, %v888
    %v890 = vlaneseq
    %v891 = vshrl.u32 %v890, 7
    %v892 = vsub.s32 %v68, %v891
    %v893 = vrot.slane %v806, %v892
    %v894 = vlaneseq
    %v895 = vshrl.u32 %v894, 7
    %v896 = vsub.s32 %v68, %v895
    %v897 = vrot.slane %v807, %v896
    %v898 = vlaneseq
    %v899 = vshrl.u32 %v898, 7
    %v900 = vsub.s32 %v68, %v899
    %v901 = vrot.slane %v808, %v900
    %v902 = vlaneseq
    %v903 = vshrl.u32 %v902, 7
    %v904 = vsub.s32 %v68, %v903
    %v905 = vrot.slane %v809, %v904
    %v922 = vsel %vm810, %v845, -1e+30
    %v923 = vsel %vm811, %v849, -1e+30
    %v924 = vsel %vm812, %v853, -1e+30
    %v925 = vsel %vm813, %v857, -1e+30
    %v926 = vsel %vm814, %v861, -1e+30
    %v927 = vsel %vm815, %v865, -1e+30
    %v928 = vsel %vm816, %v869, -1e+30
    %v929 = vsel %vm817, %v873, -1e+30
    %v930 = vsel %vm818, %v877, -1e+30
    %v931 = vsel %vm819, %v881, -1e+30
    %v932 = vsel %vm820, %v885, -1e+30
    %v933 = vsel %vm821, %v889, -1e+30
    %v934 = vsel %vm822, %v893, -1e+30
    %v935 = vsel %vm823, %v897, -1e+30
    %v936 = vsel %vm824, %v901, -1e+30
    %v937 = vsel %vm825, %v905, -1e+30
    %v954 = vrot.slane %v923, 7
    %vm955 = vcmask 1041409
    %v956 = vsel %vm955, %v954, %v922
    %v957 = vrot.slane %v924, 6
    %vm958 = vcmask 1042434
    %v959 = vsel %vm958, %v957, %v956
    %v960 = vrot.slane %v925, 5
    %vm961 = vcmask 1043459
    %v962 = vsel %vm961, %v960, %v959
    %v963 = vrot.slane %v926, 4
    %vm964 = vcmask 1044484
    %v965 = vsel %vm964, %v963, %v962
    %v966 = vrot.slane %v927, 3
    %vm967 = vcmask 1045509
    %v968 = vsel %vm967, %v966, %v965
    %v969 = vrot.slane %v928, 2
    %vm970 = vcmask 1046534
    %v971 = vsel %vm970, %v969, %v968
    %v972 = vrot.slane %v929, 1
    %vm973 = vcmask 1047559
    %v974 = vsel %vm973, %v972, %v971
    %v975 = vrot.slane %v931, 7
    %v976 = vsel %vm955, %v975, %v930
    %v977 = vrot.slane %v932, 6
    %v978 = vsel %vm958, %v977, %v976
    %v979 = vrot.slane %v933, 5
    %v980 = vsel %vm961, %v979, %v978
    %v981 = vrot.slane %v934, 4
    %v982 = vsel %vm964, %v981, %v980
    %v983 = vrot.slane %v935, 3
    %v984 = vsel %vm967, %v983, %v982
    %v985 = vrot.slane %v936, 2
    %v986 = vsel %vm970, %v985, %v984
    %v987 = vrot.slane %v937, 1
    %v988 = vsel %vm973, %v987, %v986
    %vm991 = vcmask 64512
    %v992 = vsel %vm991, %v974, -inf
    %993 = vmax.xlane.f32.xlu0 %v992
    %v994 = vpop.xlane.xlu0 %993
    %v995 = vsel %vm991, %v988, -inf
    %996 = vmax.xlane.f32.xlu0 %v995
    %v997 = vpop.xlane.xlu0 %996
    %v1000 = vrot.slane %v994, 1
    %v1001 = vrot.slane %v994, 2
    %v1002 = vrot.slane %v994, 3
    %v1003 = vrot.slane %v994, 4
    %v1004 = vrot.slane %v994, 5
    %v1005 = vrot.slane %v994, 6
    %v1006 = vrot.slane %v994, 7
    %v1007 = vrot.slane %v997, 1
    %v1008 = vrot.slane %v997, 2
    %v1009 = vrot.slane %v997, 3
    %v1010 = vrot.slane %v997, 4
    %v1011 = vrot.slane %v997, 5
    %v1012 = vrot.slane %v997, 6
    %v1013 = vrot.slane %v997, 7
    %v1030 = vsub.f32 %v922, %v994
    %v1031 = vsub.f32 %v923, %v1000
    %v1032 = vsub.f32 %v924, %v1001
    %v1033 = vsub.f32 %v925, %v1002
    %v1034 = vsub.f32 %v926, %v1003
    %v1035 = vsub.f32 %v927, %v1004
    %v1036 = vsub.f32 %v928, %v1005
    %v1037 = vsub.f32 %v929, %v1006
    %v1038 = vsub.f32 %v930, %v997
    %v1039 = vsub.f32 %v931, %v1007
    %v1040 = vsub.f32 %v932, %v1008
    %v1041 = vsub.f32 %v933, %v1009
    %v1042 = vsub.f32 %v934, %v1010
    %v1043 = vsub.f32 %v935, %v1011
    %v1044 = vsub.f32 %v936, %v1012
    %v1045 = vsub.f32 %v937, %v1013
    %v1046 = vmul.f32 %v1030, 1.442695
    %v1047 = vpow.pop %v1046
    %v1048 = vmul.f32 %v1031, 1.442695
    %v1049 = vpow.pop %v1048
    %v1050 = vmul.f32 %v1032, 1.442695
    %v1051 = vpow.pop %v1050
    %v1052 = vmul.f32 %v1033, 1.442695
    %v1053 = vpow.pop %v1052
    %v1054 = vmul.f32 %v1034, 1.442695
    %v1055 = vpow.pop %v1054
    %v1056 = vmul.f32 %v1035, 1.442695
    %v1057 = vpow.pop %v1056
    %v1058 = vmul.f32 %v1036, 1.442695
    %v1059 = vpow.pop %v1058
    %v1060 = vmul.f32 %v1037, 1.442695
    %v1061 = vpow.pop %v1060
    %v1062 = vmul.f32 %v1038, 1.442695
    %v1063 = vpow.pop %v1062
    %v1064 = vmul.f32 %v1039, 1.442695
    %v1065 = vpow.pop %v1064
    %v1066 = vmul.f32 %v1040, 1.442695
    %v1067 = vpow.pop %v1066
    %v1068 = vmul.f32 %v1041, 1.442695
    %v1069 = vpow.pop %v1068
    %v1070 = vmul.f32 %v1042, 1.442695
    %v1071 = vpow.pop %v1070
    %v1072 = vmul.f32 %v1043, 1.442695
    %v1073 = vpow.pop %v1072
    %v1074 = vmul.f32 %v1044, 1.442695
    %v1075 = vpow.pop %v1074
    %v1076 = vmul.f32 %v1045, 1.442695
    %v1077 = vpow.pop %v1076
    %v1078 = vsel %vm810, %v1047, 0.0
    %v1079 = vsel %vm811, %v1049, 0.0
    %v1080 = vsel %vm812, %v1051, 0.0
    %v1081 = vsel %vm813, %v1053, 0.0
    %v1082 = vsel %vm814, %v1055, 0.0
    %v1083 = vsel %vm815, %v1057, 0.0
    %v1084 = vsel %vm816, %v1059, 0.0
    %v1085 = vsel %vm817, %v1061, 0.0
    %v1086 = vsel %vm818, %v1063, 0.0
    %v1087 = vsel %vm819, %v1065, 0.0
    %v1088 = vsel %vm820, %v1067, 0.0
    %v1089 = vsel %vm821, %v1069, 0.0
    %v1090 = vsel %vm822, %v1071, 0.0
    %v1091 = vsel %vm823, %v1073, 0.0
    %v1092 = vsel %vm824, %v1075, 0.0
    %v1093 = vsel %vm825, %v1077, 0.0
    %v1110 = vrot.slane %v1079, 7
    %v1111 = vsel %vm955, %v1110, %v1078
    %v1112 = vrot.slane %v1080, 6
    %v1113 = vsel %vm958, %v1112, %v1111
    %v1114 = vrot.slane %v1081, 5
    %v1115 = vsel %vm961, %v1114, %v1113
    %v1116 = vrot.slane %v1082, 4
    %v1117 = vsel %vm964, %v1116, %v1115
    %v1118 = vrot.slane %v1083, 3
    %v1119 = vsel %vm967, %v1118, %v1117
    %v1120 = vrot.slane %v1084, 2
    %v1121 = vsel %vm970, %v1120, %v1119
    %v1122 = vrot.slane %v1085, 1
    %v1123 = vsel %vm973, %v1122, %v1121
    %v1124 = vrot.slane %v1087, 7
    %v1125 = vsel %vm955, %v1124, %v1086
    %v1126 = vrot.slane %v1088, 6
    %v1127 = vsel %vm958, %v1126, %v1125
    %v1128 = vrot.slane %v1089, 5
    %v1129 = vsel %vm961, %v1128, %v1127
    %v1130 = vrot.slane %v1090, 4
    %v1131 = vsel %vm964, %v1130, %v1129
    %v1132 = vrot.slane %v1091, 3
    %v1133 = vsel %vm967, %v1132, %v1131
    %v1134 = vrot.slane %v1092, 2
    %v1135 = vsel %vm970, %v1134, %v1133
    %v1136 = vrot.slane %v1093, 1
    %v1137 = vsel %vm973, %v1136, %v1135
    %v1140 = vsel %vm991, %v1123, 0.0
    %1141 = vadd.xlane.f32.xlu0 %v1140
    %v1142 = vpop.xlane.xlu0 %1141
    %v1143 = vsel %vm991, %v1137, 0.0
    %1144 = vadd.xlane.f32.xlu0 %v1143
    %v1145 = vpop.xlane.xlu0 %1144
    %v1146 = vmax.f32 %v1142, 1e-30
    %v1147 = vmax.f32 %v1145, 1e-30
    %v1150 = vrot.slane %v1146, 1
    %v1151 = vrot.slane %v1146, 2
    %v1152 = vrot.slane %v1146, 3
    %v1153 = vrot.slane %v1146, 4
    %v1154 = vrot.slane %v1146, 5
    %v1155 = vrot.slane %v1146, 6
    %v1156 = vrot.slane %v1146, 7
    %v1157 = vrot.slane %v1147, 1
    %v1158 = vrot.slane %v1147, 2
    %v1159 = vrot.slane %v1147, 3
    %v1160 = vrot.slane %v1147, 4
    %v1161 = vrot.slane %v1147, 5
    %v1162 = vrot.slane %v1147, 6
    %v1163 = vrot.slane %v1147, 7
    %v1180 = vrcp.pop %v1146
    %v1181 = vmul.f32 %v1078, %v1180
    %v1182 = vrcp.pop %v1150
    %v1183 = vmul.f32 %v1079, %v1182
    %v1184 = vrcp.pop %v1151
    %v1185 = vmul.f32 %v1080, %v1184
    %v1186 = vrcp.pop %v1152
    %v1187 = vmul.f32 %v1081, %v1186
    %v1188 = vrcp.pop %v1153
    %v1189 = vmul.f32 %v1082, %v1188
    %v1190 = vrcp.pop %v1154
    %v1191 = vmul.f32 %v1083, %v1190
    %v1192 = vrcp.pop %v1155
    %v1193 = vmul.f32 %v1084, %v1192
    %v1194 = vrcp.pop %v1156
    %v1195 = vmul.f32 %v1085, %v1194
    %v1196 = vrcp.pop %v1147
    %v1197 = vmul.f32 %v1086, %v1196
    %v1198 = vrcp.pop %v1157
    %v1199 = vmul.f32 %v1087, %v1198
    %v1200 = vrcp.pop %v1158
    %v1201 = vmul.f32 %v1088, %v1200
    %v1202 = vrcp.pop %v1159
    %v1203 = vmul.f32 %v1089, %v1202
    %v1204 = vrcp.pop %v1160
    %v1205 = vmul.f32 %v1090, %v1204
    %v1206 = vrcp.pop %v1161
    %v1207 = vmul.f32 %v1091, %v1206
    %v1208 = vrcp.pop %v1162
    %v1209 = vmul.f32 %v1092, %v1208
    %v1210 = vrcp.pop %v1163
    %v1211 = vmul.f32 %v1093, %v1210
    %v1228 = vrot.slane %v52, 7
    %v1229 = vsel %vm955, %v1228, %v51
    %v1230 = vrot.slane %v53, 6
    %v1231 = vsel %vm958, %v1230, %v1229
    %v1232 = vrot.slane %v54, 5
    %v1233 = vsel %vm961, %v1232, %v1231
    %v1234 = vrot.slane %v55, 4
    %v1235 = vsel %vm964, %v1234, %v1233
    %v1236 = vrot.slane %v56, 3
    %v1237 = vsel %vm967, %v1236, %v1235
    %v1238 = vrot.slane %v57, 2
    %v1239 = vsel %vm970, %v1238, %v1237
    %v1240 = vrot.slane %v58, 1
    %v1241 = vsel %vm973, %v1240, %v1239
    %v1242 = vrot.slane %v60, 7
    %v1243 = vsel %vm955, %v1242, %v59
    %v1244 = vrot.slane %v61, 6
    %v1245 = vsel %vm958, %v1244, %v1243
    %v1246 = vrot.slane %v62, 5
    %v1247 = vsel %vm961, %v1246, %v1245
    %v1248 = vrot.slane %v63, 4
    %v1249 = vsel %vm964, %v1248, %v1247
    %v1250 = vrot.slane %v64, 3
    %v1251 = vsel %vm967, %v1250, %v1249
    %v1252 = vrot.slane %v65, 2
    %v1253 = vsel %vm970, %v1252, %v1251
    %v1254 = vrot.slane %v66, 1
    %v1255 = vsel %vm973, %v1254, %v1253
    %v1258 = vsel %vm991, %v1241, 0.0
    %1259 = vadd.xlane.f32.xlu0 %v1258
    %v1260 = vpop.xlane.xlu0 %1259
    %v1261 = vsel %vm991, %v1255, 0.0
    %1262 = vadd.xlane.f32.xlu0 %v1261
    %v1263 = vpop.xlane.xlu0 %1262
    %v1264 = vmax.f32 %v1260, 1.0
    %v1265 = vmax.f32 %v1263, 1.0
    %v1266 = vmul.f32 %v1181, 0.95
    %v1267 = vmul.f32 %v1183, 0.95
    %v1268 = vmul.f32 %v1185, 0.95
    %v1269 = vmul.f32 %v1187, 0.95
    %v1270 = vmul.f32 %v1189, 0.95
    %v1271 = vmul.f32 %v1191, 0.95
    %v1272 = vmul.f32 %v1193, 0.95
    %v1273 = vmul.f32 %v1195, 0.95
    %v1274 = vmul.f32 %v1197, 0.95
    %v1275 = vmul.f32 %v1199, 0.95
    %v1276 = vmul.f32 %v1201, 0.95
    %v1277 = vmul.f32 %v1203, 0.95
    %v1278 = vmul.f32 %v1205, 0.95
    %v1279 = vmul.f32 %v1207, 0.95
    %v1280 = vmul.f32 %v1209, 0.95
    %v1281 = vmul.f32 %v1211, 0.95
    %v1282 = vrcp.pop %v1264
    %v1283 = vmul.f32 0.05, %v1282
    %v1284 = vrcp.pop %v1265
    %v1285 = vmul.f32 0.05, %v1284
    %v1288 = vrot.slane %v1283, 1
    %v1289 = vrot.slane %v1283, 2
    %v1290 = vrot.slane %v1283, 3
    %v1291 = vrot.slane %v1283, 4
    %v1292 = vrot.slane %v1283, 5
    %v1293 = vrot.slane %v1283, 6
    %v1294 = vrot.slane %v1283, 7
    %v1295 = vrot.slane %v1285, 1
    %v1296 = vrot.slane %v1285, 2
    %v1297 = vrot.slane %v1285, 3
    %v1298 = vrot.slane %v1285, 4
    %v1299 = vrot.slane %v1285, 5
    %v1300 = vrot.slane %v1285, 6
    %v1301 = vrot.slane %v1285, 7
    %v1318 = vadd.f32 %v1266, %v1283
    %v1319 = vadd.f32 %v1267, %v1288
    %v1320 = vadd.f32 %v1268, %v1289
    %v1321 = vadd.f32 %v1269, %v1290
    %v1322 = vadd.f32 %v1270, %v1291
    %v1323 = vadd.f32 %v1271, %v1292
    %v1324 = vadd.f32 %v1272, %v1293
    %v1325 = vadd.f32 %v1273, %v1294
    %v1326 = vadd.f32 %v1274, %v1285
    %v1327 = vadd.f32 %v1275, %v1295
    %v1328 = vadd.f32 %v1276, %v1296
    %v1329 = vadd.f32 %v1277, %v1297
    %v1330 = vadd.f32 %v1278, %v1298
    %v1331 = vadd.f32 %v1279, %v1299
    %v1332 = vadd.f32 %v1280, %v1300
    %v1333 = vadd.f32 %v1281, %v1301
    %v1334 = vsel %vm810, %v1318, 0.0
    %v1335 = vsel %vm811, %v1319, 0.0
    %v1336 = vsel %vm812, %v1320, 0.0
    %v1337 = vsel %vm813, %v1321, 0.0
    %v1338 = vsel %vm814, %v1322, 0.0
    %v1339 = vsel %vm815, %v1323, 0.0
    %v1340 = vsel %vm816, %v1324, 0.0
    %v1341 = vsel %vm817, %v1325, 0.0
    %v1342 = vsel %vm818, %v1326, 0.0
    %v1343 = vsel %vm819, %v1327, 0.0
    %v1344 = vsel %vm820, %v1328, 0.0
    %v1345 = vsel %vm821, %v1329, 0.0
    %v1346 = vsel %vm822, %v1330, 0.0
    %v1347 = vsel %vm823, %v1331, 0.0
    %v1348 = vsel %vm824, %v1332, 0.0
    %v1349 = vsel %vm825, %v1333, 0.0
    %v1366 = vrot.slane %v1335, 7
    %v1367 = vsel %vm955, %v1366, %v1334
    %v1368 = vrot.slane %v1336, 6
    %v1369 = vsel %vm958, %v1368, %v1367
    %v1370 = vrot.slane %v1337, 5
    %v1371 = vsel %vm961, %v1370, %v1369
    %v1372 = vrot.slane %v1338, 4
    %v1373 = vsel %vm964, %v1372, %v1371
    %v1374 = vrot.slane %v1339, 3
    %v1375 = vsel %vm967, %v1374, %v1373
    %v1376 = vrot.slane %v1340, 2
    %v1377 = vsel %vm970, %v1376, %v1375
    %v1378 = vrot.slane %v1341, 1
    %v1379 = vsel %vm973, %v1378, %v1377
    %v1380 = vrot.slane %v1343, 7
    %v1381 = vsel %vm955, %v1380, %v1342
    %v1382 = vrot.slane %v1344, 6
    %v1383 = vsel %vm958, %v1382, %v1381
    %v1384 = vrot.slane %v1345, 5
    %v1385 = vsel %vm961, %v1384, %v1383
    %v1386 = vrot.slane %v1346, 4
    %v1387 = vsel %vm964, %v1386, %v1385
    %v1388 = vrot.slane %v1347, 3
    %v1389 = vsel %vm967, %v1388, %v1387
    %v1390 = vrot.slane %v1348, 2
    %v1391 = vsel %vm970, %v1390, %v1389
    %v1392 = vrot.slane %v1349, 1
    %v1393 = vsel %vm973, %v1392, %v1391
    %v1396 = vsel %vm991, %v1379, -inf
    %1397 = vmax.xlane.f32.xlu0 %v1396
    %v1398 = vpop.xlane.xlu0 %1397
    %v1399 = vsel %vm991, %v1393, -inf
    %1400 = vmax.xlane.f32.xlu0 %v1399
    %v1401 = vpop.xlane.xlu0 %1400
    %v1404 = vrot.slane %v1398, 1
    %v1405 = vrot.slane %v1398, 2
    %v1406 = vrot.slane %v1398, 3
    %v1407 = vrot.slane %v1398, 4
    %v1408 = vrot.slane %v1398, 5
    %v1409 = vrot.slane %v1398, 6
    %v1410 = vrot.slane %v1398, 7
    %v1411 = vrot.slane %v1401, 1
    %v1412 = vrot.slane %v1401, 2
    %v1413 = vrot.slane %v1401, 3
    %v1414 = vrot.slane %v1401, 4
    %v1415 = vrot.slane %v1401, 5
    %v1416 = vrot.slane %v1401, 6
    %v1417 = vrot.slane %v1401, 7
    %vm1434 = vcmp.ge.f32.partialorder %v1334, %v1398
    %vm1435 = vcmp.ge.f32.partialorder %v1335, %v1404
    %vm1436 = vcmp.ge.f32.partialorder %v1336, %v1405
    %vm1437 = vcmp.ge.f32.partialorder %v1337, %v1406
    %vm1438 = vcmp.ge.f32.partialorder %v1338, %v1407
    %vm1439 = vcmp.ge.f32.partialorder %v1339, %v1408
    %vm1440 = vcmp.ge.f32.partialorder %v1340, %v1409
    %vm1441 = vcmp.ge.f32.partialorder %v1341, %v1410
    %vm1442 = vcmp.ge.f32.partialorder %v1342, %v1401
    %vm1443 = vcmp.ge.f32.partialorder %v1343, %v1411
    %vm1444 = vcmp.ge.f32.partialorder %v1344, %v1412
    %vm1445 = vcmp.ge.f32.partialorder %v1345, %v1413
    %vm1446 = vcmp.ge.f32.partialorder %v1346, %v1414
    %vm1447 = vcmp.ge.f32.partialorder %v1347, %v1415
    %vm1448 = vcmp.ge.f32.partialorder %v1348, %v1416
    %vm1449 = vcmp.ge.f32.partialorder %v1349, %v1417
    %v1450 = vsel %vm1434, %v68, 1073741824
    %v1451 = vsel %vm1435, %v68, 1073741824
    %v1452 = vsel %vm1436, %v68, 1073741824
    %v1453 = vsel %vm1437, %v68, 1073741824
    %v1454 = vsel %vm1438, %v68, 1073741824
    %v1455 = vsel %vm1439, %v68, 1073741824
    %v1456 = vsel %vm1440, %v68, 1073741824
    %v1457 = vsel %vm1441, %v68, 1073741824
    %v1458 = vsel %vm1442, %v68, 1073741824
    %v1459 = vsel %vm1443, %v68, 1073741824
    %v1460 = vsel %vm1444, %v68, 1073741824
    %v1461 = vsel %vm1445, %v68, 1073741824
    %v1462 = vsel %vm1446, %v68, 1073741824
    %v1463 = vsel %vm1447, %v68, 1073741824
    %v1464 = vsel %vm1448, %v68, 1073741824
    %v1465 = vsel %vm1449, %v68, 1073741824
    %v1466 = vrot.slane %v1451, 7
    %v1467 = vsel %vm955, %v1466, %v1450
    %v1468 = vrot.slane %v1452, 6
    %v1469 = vsel %vm958, %v1468, %v1467
    %v1470 = vrot.slane %v1453, 5
    %v1471 = vsel %vm961, %v1470, %v1469
    %v1472 = vrot.slane %v1454, 4
    %v1473 = vsel %vm964, %v1472, %v1471
    %v1474 = vrot.slane %v1455, 3
    %v1475 = vsel %vm967, %v1474, %v1473
    %v1476 = vrot.slane %v1456, 2
    %v1477 = vsel %vm970, %v1476, %v1475
    %v1478 = vrot.slane %v1457, 1
    %v1479 = vsel %vm973, %v1478, %v1477
    %v1480 = vrot.slane %v1459, 7
    %v1481 = vsel %vm955, %v1480, %v1458
    %v1482 = vrot.slane %v1460, 6
    %v1483 = vsel %vm958, %v1482, %v1481
    %v1484 = vrot.slane %v1461, 5
    %v1485 = vsel %vm961, %v1484, %v1483
    %v1486 = vrot.slane %v1462, 4
    %v1487 = vsel %vm964, %v1486, %v1485
    %v1488 = vrot.slane %v1463, 3
    %v1489 = vsel %vm967, %v1488, %v1487
    %v1490 = vrot.slane %v1464, 2
    %v1491 = vsel %vm970, %v1490, %v1489
    %v1492 = vrot.slane %v1465, 1
    %v1493 = vsel %vm973, %v1492, %v1491
    %v1494 = vsel %vm991, %v1479, 2147483647
    %v1495 = vand.u32 %v1494, 65535
    %v1496 = vshra.s32 %v1494, 16
    %v1497 = vcvt.s32.f32 %v1495
    %v1498 = vcvt.s32.f32 %v1496
    %1499 = vmin.xlane.f32.xlu0 %v1498
    %v1500 = vpop.xlane.xlu0 %1499
    %vm1501 = vcmp.eq.f32.partialorder %v1498, %v1500
    %v1502 = vsel %vm1501, %v1497, inf
    %1503 = vmin.xlane.f32.xlu0 %v1502
    %v1504 = vpop.xlane.xlu0 %1503
    %v1505 = vcvt.f32.s32 %v1504
    %v1506 = vcvt.f32.s32 %v1500
    %v1507 = vshll.u32 %v1506, 16
    %v1508 = vadd.s32 %v1507, %v1505
    %v1509 = vsel %vm991, %v1493, 2147483647
    %v1510 = vand.u32 %v1509, 65535
    %v1511 = vshra.s32 %v1509, 16
    %v1512 = vcvt.s32.f32 %v1510
    %v1513 = vcvt.s32.f32 %v1511
    %1514 = vmin.xlane.f32.xlu0 %v1513
    %v1515 = vpop.xlane.xlu0 %1514
    %vm1516 = vcmp.eq.f32.partialorder %v1513, %v1515
    %v1517 = vsel %vm1516, %v1512, inf
    %1518 = vmin.xlane.f32.xlu0 %v1517
    %v1519 = vpop.xlane.xlu0 %1518
    %v1520 = vcvt.f32.s32 %v1519
    %v1521 = vcvt.f32.s32 %v1515
    %v1522 = vshll.u32 %v1521, 16
    %v1523 = vadd.s32 %v1522, %v1520
    %vm1524 = vcmp.eq.s32.totalorder %v68, %v1508
    %vm1525 = vcmp.eq.s32.totalorder %v68, %v1523
    %v1526 = vsel %vm1524, 1, 0
    %v1527 = vsel %vm1525, 1, 0
    %v1528 = vcvt.s32.f32 %v1526
    %v1529 = vcvt.s32.f32 %v1527
    %v1530 = vlaneseq
    %v1531 = vshrl.u32 %v1530, 7
    %v1532 = vsub.s32 0, %v1531
    %v1533 = vrot.slane %v1528, %v1532
    %1535 = vbcast.lane.b32.xlu0 %v1533, 256
    %v1536 = vpop.permute.xlu0 %1535
    %v1537 = vlaneseq
    %v1538 = vshrl.u32 %v1537, 7
    %v1539 = vsub.s32 1, %v1538
    %v1540 = vrot.slane %v1528, %v1539
    %1542 = vbcast.lane.b32.xlu0 %v1540, 256
    %v1543 = vpop.permute.xlu0 %1542
    %v1544 = vlaneseq
    %v1545 = vshrl.u32 %v1544, 7
    %v1546 = vsub.s32 2, %v1545
    %v1547 = vrot.slane %v1528, %v1546
    %1549 = vbcast.lane.b32.xlu0 %v1547, 256
    %v1550 = vpop.permute.xlu0 %1549
    %v1551 = vlaneseq
    %v1552 = vshrl.u32 %v1551, 7
    %v1553 = vsub.s32 3, %v1552
    %v1554 = vrot.slane %v1528, %v1553
    %1556 = vbcast.lane.b32.xlu0 %v1554, 256
    %v1557 = vpop.permute.xlu0 %1556
    %v1558 = vlaneseq
    %v1559 = vshrl.u32 %v1558, 7
    %v1560 = vsub.s32 4, %v1559
    %v1561 = vrot.slane %v1528, %v1560
    %1563 = vbcast.lane.b32.xlu0 %v1561, 256
    %v1564 = vpop.permute.xlu0 %1563
    %v1565 = vlaneseq
    %v1566 = vshrl.u32 %v1565, 7
    %v1567 = vsub.s32 5, %v1566
    %v1568 = vrot.slane %v1528, %v1567
    %1570 = vbcast.lane.b32.xlu0 %v1568, 256
    %v1571 = vpop.permute.xlu0 %1570
    %v1572 = vlaneseq
    %v1573 = vshrl.u32 %v1572, 7
    %v1574 = vsub.s32 6, %v1573
    %v1575 = vrot.slane %v1528, %v1574
    %1577 = vbcast.lane.b32.xlu0 %v1575, 256
    %v1578 = vpop.permute.xlu0 %1577
    %v1579 = vlaneseq
    %v1580 = vshrl.u32 %v1579, 7
    %v1581 = vsub.s32 7, %v1580
    %v1582 = vrot.slane %v1528, %v1581
    %1584 = vbcast.lane.b32.xlu0 %v1582, 256
    %v1585 = vpop.permute.xlu0 %1584
    %v1586 = vlaneseq
    %v1587 = vshrl.u32 %v1586, 7
    %v1588 = vsub.s32 0, %v1587
    %v1589 = vrot.slane %v1529, %v1588
    %1591 = vbcast.lane.b32.xlu0 %v1589, 256
    %v1592 = vpop.permute.xlu0 %1591
    %v1593 = vlaneseq
    %v1594 = vshrl.u32 %v1593, 7
    %v1595 = vsub.s32 1, %v1594
    %v1596 = vrot.slane %v1529, %v1595
    %1598 = vbcast.lane.b32.xlu0 %v1596, 256
    %v1599 = vpop.permute.xlu0 %1598
    %v1600 = vlaneseq
    %v1601 = vshrl.u32 %v1600, 7
    %v1602 = vsub.s32 2, %v1601
    %v1603 = vrot.slane %v1529, %v1602
    %1605 = vbcast.lane.b32.xlu0 %v1603, 256
    %v1606 = vpop.permute.xlu0 %1605
    %v1607 = vlaneseq
    %v1608 = vshrl.u32 %v1607, 7
    %v1609 = vsub.s32 3, %v1608
    %v1610 = vrot.slane %v1529, %v1609
    %1612 = vbcast.lane.b32.xlu0 %v1610, 256
    %v1613 = vpop.permute.xlu0 %1612
    %v1614 = vlaneseq
    %v1615 = vshrl.u32 %v1614, 7
    %v1616 = vsub.s32 4, %v1615
    %v1617 = vrot.slane %v1529, %v1616
    %1619 = vbcast.lane.b32.xlu0 %v1617, 256
    %v1620 = vpop.permute.xlu0 %1619
    %v1621 = vlaneseq
    %v1622 = vshrl.u32 %v1621, 7
    %v1623 = vsub.s32 5, %v1622
    %v1624 = vrot.slane %v1529, %v1623
    %1626 = vbcast.lane.b32.xlu0 %v1624, 256
    %v1627 = vpop.permute.xlu0 %1626
    %v1628 = vlaneseq
    %v1629 = vshrl.u32 %v1628, 7
    %v1630 = vsub.s32 6, %v1629
    %v1631 = vrot.slane %v1529, %v1630
    %1633 = vbcast.lane.b32.xlu0 %v1631, 256
    %v1634 = vpop.permute.xlu0 %1633
    %v1635 = vlaneseq
    %v1636 = vshrl.u32 %v1635, 7
    %v1637 = vsub.s32 7, %v1636
    %v1638 = vrot.slane %v1529, %v1637
    %1640 = vbcast.lane.b32.xlu0 %v1638, 256
    %v1641 = vpop.permute.xlu0 %1640
    %v1642 = vmul.f32 %v69, %v1536
    %v1643 = vmul.f32 %v70, %v1543
    %v1644 = vmul.f32 %v71, %v1550
    %v1645 = vmul.f32 %v72, %v1557
    %v1646 = vmul.f32 %v73, %v1564
    %v1647 = vmul.f32 %v74, %v1571
    %v1648 = vmul.f32 %v75, %v1578
    %v1649 = vmul.f32 %v76, %v1585
    %v1650 = vmul.f32 %v77, %v1592
    %v1651 = vmul.f32 %v78, %v1599
    %v1652 = vmul.f32 %v79, %v1606
    %v1653 = vmul.f32 %v80, %v1613
    %v1654 = vmul.f32 %v81, %v1620
    %v1655 = vmul.f32 %v82, %v1627
    %v1656 = vmul.f32 %v83, %v1634
    %v1657 = vmul.f32 %v84, %v1641
    %v1658 = vsel %vm153, %v1642, 0.0
    %v1659 = vrot.slane %v1658, 4
    %v1660 = vadd.f32 %v1658, %v1659
    %v1661 = vrot.slane %v1660, 2
    %v1662 = vadd.f32 %v1660, %v1661
    %v1663 = vrot.slane %v1662, 1
    %v1664 = vadd.f32 %v1662, %v1663
    %v1665 = vsel %vm153, %v1643, 0.0
    %v1666 = vrot.slane %v1665, 4
    %v1667 = vadd.f32 %v1665, %v1666
    %v1668 = vrot.slane %v1667, 2
    %v1669 = vadd.f32 %v1667, %v1668
    %v1670 = vrot.slane %v1669, 1
    %v1671 = vadd.f32 %v1669, %v1670
    %v1672 = vsel %vm153, %v1644, 0.0
    %v1673 = vrot.slane %v1672, 4
    %v1674 = vadd.f32 %v1672, %v1673
    %v1675 = vrot.slane %v1674, 2
    %v1676 = vadd.f32 %v1674, %v1675
    %v1677 = vrot.slane %v1676, 1
    %v1678 = vadd.f32 %v1676, %v1677
    %v1679 = vsel %vm153, %v1645, 0.0
    %v1680 = vrot.slane %v1679, 4
    %v1681 = vadd.f32 %v1679, %v1680
    %v1682 = vrot.slane %v1681, 2
    %v1683 = vadd.f32 %v1681, %v1682
    %v1684 = vrot.slane %v1683, 1
    %v1685 = vadd.f32 %v1683, %v1684
    %v1686 = vsel %vm153, %v1646, 0.0
    %v1687 = vrot.slane %v1686, 4
    %v1688 = vadd.f32 %v1686, %v1687
    %v1689 = vrot.slane %v1688, 2
    %v1690 = vadd.f32 %v1688, %v1689
    %v1691 = vrot.slane %v1690, 1
    %v1692 = vadd.f32 %v1690, %v1691
    %v1693 = vsel %vm153, %v1647, 0.0
    %v1694 = vrot.slane %v1693, 4
    %v1695 = vadd.f32 %v1693, %v1694
    %v1696 = vrot.slane %v1695, 2
    %v1697 = vadd.f32 %v1695, %v1696
    %v1698 = vrot.slane %v1697, 1
    %v1699 = vadd.f32 %v1697, %v1698
    %v1700 = vsel %vm153, %v1648, 0.0
    %v1701 = vrot.slane %v1700, 4
    %v1702 = vadd.f32 %v1700, %v1701
    %v1703 = vrot.slane %v1702, 2
    %v1704 = vadd.f32 %v1702, %v1703
    %v1705 = vrot.slane %v1704, 1
    %v1706 = vadd.f32 %v1704, %v1705
    %v1707 = vsel %vm153, %v1649, 0.0
    %v1708 = vrot.slane %v1707, 4
    %v1709 = vadd.f32 %v1707, %v1708
    %v1710 = vrot.slane %v1709, 2
    %v1711 = vadd.f32 %v1709, %v1710
    %v1712 = vrot.slane %v1711, 1
    %v1713 = vadd.f32 %v1711, %v1712
    %v1714 = vsel %vm153, %v1650, 0.0
    %v1715 = vrot.slane %v1714, 4
    %v1716 = vadd.f32 %v1714, %v1715
    %v1717 = vrot.slane %v1716, 2
    %v1718 = vadd.f32 %v1716, %v1717
    %v1719 = vrot.slane %v1718, 1
    %v1720 = vadd.f32 %v1718, %v1719
    %v1721 = vsel %vm153, %v1651, 0.0
    %v1722 = vrot.slane %v1721, 4
    %v1723 = vadd.f32 %v1721, %v1722
    %v1724 = vrot.slane %v1723, 2
    %v1725 = vadd.f32 %v1723, %v1724
    %v1726 = vrot.slane %v1725, 1
    %v1727 = vadd.f32 %v1725, %v1726
    %v1728 = vsel %vm153, %v1652, 0.0
    %v1729 = vrot.slane %v1728, 4
    %v1730 = vadd.f32 %v1728, %v1729
    %v1731 = vrot.slane %v1730, 2
    %v1732 = vadd.f32 %v1730, %v1731
    %v1733 = vrot.slane %v1732, 1
    %v1734 = vadd.f32 %v1732, %v1733
    %v1735 = vsel %vm153, %v1653, 0.0
    %v1736 = vrot.slane %v1735, 4
    %v1737 = vadd.f32 %v1735, %v1736
    %v1738 = vrot.slane %v1737, 2
    %v1739 = vadd.f32 %v1737, %v1738
    %v1740 = vrot.slane %v1739, 1
    %v1741 = vadd.f32 %v1739, %v1740
    %v1742 = vsel %vm153, %v1654, 0.0
    %v1743 = vrot.slane %v1742, 4
    %v1744 = vadd.f32 %v1742, %v1743
    %v1745 = vrot.slane %v1744, 2
    %v1746 = vadd.f32 %v1744, %v1745
    %v1747 = vrot.slane %v1746, 1
    %v1748 = vadd.f32 %v1746, %v1747
    %v1749 = vsel %vm153, %v1655, 0.0
    %v1750 = vrot.slane %v1749, 4
    %v1751 = vadd.f32 %v1749, %v1750
    %v1752 = vrot.slane %v1751, 2
    %v1753 = vadd.f32 %v1751, %v1752
    %v1754 = vrot.slane %v1753, 1
    %v1755 = vadd.f32 %v1753, %v1754
    %v1756 = vsel %vm153, %v1656, 0.0
    %v1757 = vrot.slane %v1756, 4
    %v1758 = vadd.f32 %v1756, %v1757
    %v1759 = vrot.slane %v1758, 2
    %v1760 = vadd.f32 %v1758, %v1759
    %v1761 = vrot.slane %v1760, 1
    %v1762 = vadd.f32 %v1760, %v1761
    %v1763 = vsel %vm153, %v1657, 0.0
    %v1764 = vrot.slane %v1763, 4
    %v1765 = vadd.f32 %v1763, %v1764
    %v1766 = vrot.slane %v1765, 2
    %v1767 = vadd.f32 %v1765, %v1766
    %v1768 = vrot.slane %v1767, 1
    %v1769 = vadd.f32 %v1767, %v1768
    %v1770 = vpack.c.bf16 %v1664, %v1664
    %v1771 = vpack.c.bf16 %v1671, %v1671
    %v1772 = vpack.c.bf16 %v1678, %v1678
    %v1773 = vpack.c.bf16 %v1685, %v1685
    %v1774 = vpack.c.bf16 %v1692, %v1692
    %v1775 = vpack.c.bf16 %v1699, %v1699
    %v1776 = vpack.c.bf16 %v1706, %v1706
    %v1777 = vpack.c.bf16 %v1713, %v1713
    %v1778 = vpack.c.bf16 %v1720, %v1720
    %v1779 = vpack.c.bf16 %v1727, %v1727
    %v1780 = vpack.c.bf16 %v1734, %v1734
    %v1781 = vpack.c.bf16 %v1741, %v1741
    %v1782 = vpack.c.bf16 %v1748, %v1748
    %v1783 = vpack.c.bf16 %v1755, %v1755
    %v1784 = vpack.c.bf16 %v1762, %v1762
    %v1785 = vpack.c.bf16 %v1769, %v1769
    %v1786 = vlaneseq
    %v1787 = vshrl.u32 %v1786, 7
    %v1788 = vsub.s32 0, %v1787
    %v1789 = vrot.slane %v94, %v1788
    %v1806 = vunpack.c.l.b16 %v1770
    %v1807 = vunpack.c.l.b16 %v1771
    %v1808 = vunpack.c.l.b16 %v1772
    %v1809 = vunpack.c.l.b16 %v1773
    %v1810 = vunpack.c.l.b16 %v1774
    %v1811 = vunpack.c.l.b16 %v1775
    %v1812 = vunpack.c.l.b16 %v1776
    %v1813 = vunpack.c.l.b16 %v1777
    %v1814 = vunpack.c.l.b16 %v1778
    %v1815 = vunpack.c.l.b16 %v1779
    %v1816 = vunpack.c.l.b16 %v1780
    %v1817 = vunpack.c.l.b16 %v1781
    %v1818 = vunpack.c.l.b16 %v1782
    %v1819 = vunpack.c.l.b16 %v1783
    %v1820 = vunpack.c.l.b16 %v1784
    %v1821 = vunpack.c.l.b16 %v1785
    %v1822 = vsel %vm955, %v1807, %v1806
    %v1823 = vsel %vm958, %v1808, %v1822
    %v1824 = vsel %vm961, %v1809, %v1823
    %v1825 = vsel %vm964, %v1810, %v1824
    %v1826 = vsel %vm967, %v1811, %v1825
    %v1827 = vsel %vm970, %v1812, %v1826
    %v1828 = vsel %vm973, %v1813, %v1827
    %v1829 = vsel %vm955, %v1815, %v1814
    %v1830 = vsel %vm958, %v1816, %v1829
    %v1831 = vsel %vm961, %v1817, %v1830
    %v1832 = vsel %vm964, %v1818, %v1831
    %v1833 = vsel %vm967, %v1819, %v1832
    %v1834 = vsel %vm970, %v1820, %v1833
    %v1835 = vsel %vm973, %v1821, %v1834
    %v1836 = vpack.c.b16 %v1835, %v1828
    %v1841 = vunpack.c.l.b16 %v85
    %v1842 = vunpack.c.l.b16 %v86
    %v1843 = vunpack.c.l.b16 %v87
    %v1844 = vunpack.c.l.b16 %v88
    %v1845 = vpack.c.b16 %v1842, %v1841
    %v1846 = vpack.c.b16 %v1844, %v1843
    %v1850 = vsel %vm153, %v1836, 0
    %1852 = vmatprep.subr.bf16.mxu0 0
    %1853 = vmatpush1.bf16.msra.mxu0 0
    %1854 = vmatprep.subr.bf16.mxu0 0
    %1855 = vmatpush1.bf16.msra.mxu0 0
    %1856 = vmatprep.subr.bf16.mxu0 0
    %1857 = vmatpush1.bf16.msra.mxu0 0
    %1858 = vmatprep.subr.bf16.mxu0 0
    %1859 = vmatpush1.bf16.msra.mxu0 0
    %1860 = vmatprep.subr.bf16.mxu0 0
    %1861 = vmatpush1.bf16.msra.mxu0 0
    %1862 = vmatprep.subr.bf16.mxu0 0
    %1863 = vmatpush1.bf16.msra.mxu0 0
    %1864 = vmatprep.subr.bf16.mxu0 0
    %1865 = vmatpush1.bf16.msra.mxu0 %v1846
    %1866 = vmatprep.subr.bf16.mxu0 0
    %1867 = vmatpush1.bf16.msra.mxu0 %v1845
    %1868 = vmatprep.subr.bf16.mxu0 0
    %1869 = vmatpush2.bf16.msra.mxu0 0
    %1870 = vmatprep.subr.bf16.mxu0 0
    %1871 = vmatpush2.bf16.msra.mxu0 0
    %1872 = vmatprep.subr.bf16.mxu0 0
    %1873 = vmatpush2.bf16.msra.mxu0 0
    %1874 = vmatprep.subr.bf16.mxu0 0
    %1875 = vmatpush2.bf16.msra.mxu0 0
    %1876 = vmatprep.subr.bf16.mxu0 0
    %1877 = vmatpush2.bf16.msra.mxu0 0
    %1878 = vmatprep.subr.bf16.mxu0 0
    %1879 = vmatpush2.bf16.msra.mxu0 0
    %1880 = vmatprep.subr.bf16.mxu0 0
    %1881 = vmatpush2.bf16.msra.mxu0 0
    %1882 = vmatprep.subr.bf16.mxu0 0
    %1883 = vmatpush2.bf16.msra.mxu0 0
    %1884 = vmatprep.mubr.bf16.mxu0 0
    %1885 = vmatmul.mubr.bf16.gmra.mxu0 %v1850
    %v1886 = vpop.f32.mrf.mxu0
    %v1887 = vadd.f32 %v1789, %v1886
    %v1888 = vpop.f32.mrf.mxu0
    %v1889 = vpop.f32.mrf.mxu0
    %v1890 = vadd.f32 %v1789, %v1889
    %v1891 = vpop.f32.mrf.mxu0
    %1892 = vdwg.mxu0
    %v1893 = vlaneseq
    %v1894 = vshrl.u32 %v1893, 7
    %v1895 = vsub.s32 1, %v1894
    %v1896 = vrot.slane %v94, %v1895
    %v1901 = vunpack.c.l.b16 %v89
    %v1902 = vunpack.c.l.b16 %v90
    %v1903 = vunpack.c.l.b16 %v91
    %v1904 = vunpack.c.l.b16 %v92
    %v1905 = vpack.c.b16 %v1902, %v1901
    %v1906 = vpack.c.b16 %v1904, %v1903
    %1909 = vmatprep.subr.bf16.mxu0 0
    %1910 = vmatpush1.bf16.msra.mxu0 0
    %1911 = vmatprep.subr.bf16.mxu0 0
    %1912 = vmatpush1.bf16.msra.mxu0 0
    %1913 = vmatprep.subr.bf16.mxu0 0
    %1914 = vmatpush1.bf16.msra.mxu0 0
    %1915 = vmatprep.subr.bf16.mxu0 0
    %1916 = vmatpush1.bf16.msra.mxu0 0
    %1917 = vmatprep.subr.bf16.mxu0 0
    %1918 = vmatpush1.bf16.msra.mxu0 0
    %1919 = vmatprep.subr.bf16.mxu0 0
    %1920 = vmatpush1.bf16.msra.mxu0 0
    %1921 = vmatprep.subr.bf16.mxu0 0
    %1922 = vmatpush1.bf16.msra.mxu0 %v1906
    %1923 = vmatprep.subr.bf16.mxu0 0
    %1924 = vmatpush1.bf16.msra.mxu0 %v1905
    %1925 = vmatprep.subr.bf16.mxu0 0
    %1926 = vmatpush2.bf16.msra.mxu0 0
    %1927 = vmatprep.subr.bf16.mxu0 0
    %1928 = vmatpush2.bf16.msra.mxu0 0
    %1929 = vmatprep.subr.bf16.mxu0 0
    %1930 = vmatpush2.bf16.msra.mxu0 0
    %1931 = vmatprep.subr.bf16.mxu0 0
    %1932 = vmatpush2.bf16.msra.mxu0 0
    %1933 = vmatprep.subr.bf16.mxu0 0
    %1934 = vmatpush2.bf16.msra.mxu0 0
    %1935 = vmatprep.subr.bf16.mxu0 0
    %1936 = vmatpush2.bf16.msra.mxu0 0
    %1937 = vmatprep.subr.bf16.mxu0 0
    %1938 = vmatpush2.bf16.msra.mxu0 0
    %1939 = vmatprep.subr.bf16.mxu0 0
    %1940 = vmatpush2.bf16.msra.mxu0 0
    %1941 = vmatprep.mubr.bf16.mxu0 0
    %1942 = vmatmul.mubr.bf16.gmra.mxu0 %v303
    %v1943 = vpop.f32.mrf.mxu0
    %v1944 = vadd.f32 %v1896, %v1943
    %v1945 = vpop.f32.mrf.mxu0
    %v1946 = vpop.f32.mrf.mxu0
    %v1947 = vadd.f32 %v1896, %v1946
    %v1948 = vpop.f32.mrf.mxu0
    %1949 = vdwg.mxu0
    %v1950 = vadd.f32 %v1887, %v1944
    %v1951 = vadd.f32 %v1890, %v1947
    %v1952 = vxor.u32 %v1950, 2147483648
    %v1953 = vxor.u32 %v1951, 2147483648
    %v1954 = vmul.f32 %v1952, 1.442695
    %v1955 = vpow.pop %v1954
    %v1956 = vmul.f32 %v1953, 1.442695
    %v1957 = vpow.pop %v1956
    %v1958 = vadd.f32 %v1955, 1.0
    %v1959 = vadd.f32 %v1957, 1.0
    %v1960 = vrcp.pop %v1958
    %v1961 = vmul.f32 1.0, %v1960
    %v1962 = vrcp.pop %v1959
    %v1963 = vmul.f32 1.0, %v1962
    %1966 = vrot.lane.b32.xlu0 %v1944, 64
    %v1967 = vpop.permute.xlu0 %1966
    %1968 = vrot.lane.b32.xlu0 %v1947, 64
    %v1969 = vpop.permute.xlu0 %1968
    %v1972 = vmul.f32 %v1961, %v1967
    %v1973 = vmul.f32 %v1963, %v1969
    %1976 = vrot.lane.b32.xlu0 %v1972, 64
    %v1977 = vpop.permute.xlu0 %1976
    %1978 = vrot.lane.b32.xlu0 %v1973, 64
    %v1979 = vpop.permute.xlu0 %1978
    %v1982 = vadd.f32 %v1887, %v1977
    %v1983 = vadd.f32 %v1890, %v1979
    %v1984 = vtanh.pop %v1982
    %v1985 = vtanh.pop %v1983
    %v1986 = vsub.f32 1.0, %v1961
    %v1987 = vsub.f32 1.0, %v1963
    %1990 = vrot.lane.b32.xlu0 %v1984, 96
    %v1991 = vpop.permute.xlu0 %1990
    %1992 = vrot.lane.b32.xlu0 %v1985, 96
    %v1993 = vpop.permute.xlu0 %1992
    %v1996 = vmul.f32 %v1986, %v1991
    %v1997 = vmul.f32 %v1987, %v1993
    %2000 = vrot.lane.b32.xlu0 %v49, 32
    %v2001 = vpop.permute.xlu0 %2000
    %2002 = vrot.lane.b32.xlu0 %v50, 32
    %v2003 = vpop.permute.xlu0 %2002
    %v2006 = vmul.f32 %v1961, %v2001
    %v2007 = vmul.f32 %v1963, %v2003
    %v2008 = vadd.f32 %v1996, %v2006
    %v2009 = vadd.f32 %v1997, %v2007
    %v2010 = vld [vmem:[#allocation2 + $0x38] sm:$0xf]
    %v2011 = vld [vmem:[#allocation2 + $0x3c] sm:$0xf]
    %v2012 = vld [vmem:[#allocation2 + $0x40] sm:$0xf]
    %v2013 = vld [vmem:[#allocation2 + $0x44] sm:$0xf]
    %v2014 = vld [vmem:[#allocation2 + $0x68] sm:$0xf]
    %v2015 = vld [vmem:[#allocation2 + $0x6c] sm:$0xf]
    %v2016 = vld [vmem:[#allocation2 + $0x70] sm:$0xf]
    %v2017 = vld [vmem:[#allocation2 + $0x74] sm:$0xf]
    %v2018 = vld [vmem:[#allocation2 + $0x78] sm:$0x1]
    %v2019 = vunpack.c.l.bf16 %v2018
    %v2020 = vpack.c.bf16 %v2009, %v2008
    %2022 = vrot.lane.b32.xlu0 %v2020, 96
    %v2023 = vpop.permute.xlu0 %2022
    %v2028 = vunpack.c.l.b16 %v2010
    %v2029 = vunpack.c.l.b16 %v2011
    %v2030 = vunpack.c.l.b16 %v2012
    %v2031 = vunpack.c.l.b16 %v2013
    %v2032 = vpack.c.b16 %v2029, %v2028
    %v2033 = vpack.c.b16 %v2031, %v2030
    %2034 = vrot.lane.b32.xlu0 %v2032, 96
    %v2035 = vpop.permute.xlu0 %2034
    %2036 = vrot.lane.b32.xlu0 %v2033, 96
    %v2037 = vpop.permute.xlu0 %2036
    %2041 = vrot.lane.b32.xlu0 %v289, 96
    %v2042 = vpop.permute.xlu0 %2041
    %v2045 = vsel %vm153, %v2023, 0
    %2047 = vmatprep.subr.bf16.mxu0 0
    %2048 = vmatpush1.bf16.msra.mxu0 0
    %2049 = vmatprep.subr.bf16.mxu0 0
    %2050 = vmatpush1.bf16.msra.mxu0 0
    %2051 = vmatprep.subr.bf16.mxu0 0
    %2052 = vmatpush1.bf16.msra.mxu0 0
    %2053 = vmatprep.subr.bf16.mxu0 0
    %2054 = vmatpush1.bf16.msra.mxu0 0
    %2055 = vmatprep.subr.bf16.mxu0 0
    %2056 = vmatpush1.bf16.msra.mxu0 0
    %2057 = vmatprep.subr.bf16.mxu0 0
    %2058 = vmatpush1.bf16.msra.mxu0 0
    %2059 = vmatprep.subr.bf16.mxu0 0
    %2060 = vmatpush1.bf16.msra.mxu0 %v2037
    %2061 = vmatprep.subr.bf16.mxu0 0
    %2062 = vmatpush1.bf16.msra.mxu0 %v2035
    %2063 = vmatprep.subr.bf16.mxu0 0
    %2064 = vmatpush2.bf16.msra.mxu0 0
    %2065 = vmatprep.subr.bf16.mxu0 0
    %2066 = vmatpush2.bf16.msra.mxu0 0
    %2067 = vmatprep.subr.bf16.mxu0 0
    %2068 = vmatpush2.bf16.msra.mxu0 0
    %2069 = vmatprep.subr.bf16.mxu0 0
    %2070 = vmatpush2.bf16.msra.mxu0 0
    %2071 = vmatprep.subr.bf16.mxu0 0
    %2072 = vmatpush2.bf16.msra.mxu0 0
    %2073 = vmatprep.subr.bf16.mxu0 0
    %2074 = vmatpush2.bf16.msra.mxu0 0
    %2075 = vmatprep.subr.bf16.mxu0 0
    %2076 = vmatpush2.bf16.msra.mxu0 0
    %2077 = vmatprep.subr.bf16.mxu0 0
    %2078 = vmatpush2.bf16.msra.mxu0 0
    %2079 = vmatprep.mubr.bf16.mxu0 0
    %2080 = vmatmul.mubr.bf16.gmra.mxu0 %v2045
    %v2081 = vpop.f32.mrf.mxu0
    %v2082 = vadd.f32 %v2042, %v2081
    %v2083 = vpop.f32.mrf.mxu0
    %v2084 = vpop.f32.mrf.mxu0
    %v2085 = vadd.f32 %v2042, %v2084
    %v2086 = vpop.f32.mrf.mxu0
    %2087 = vdwg.mxu0
    %v2090 = vcombine.high %v2082, %v2082
    %v2092 = vunpack.c.l.s4 1966171168
    %v2093 = vunpack.c.0.s8 %v2092
    %v2094 = vlaneseq
    %v2095 = vshrl.u32 %v2094, 7
    %v2096 = vsub.s32 %v2093, %v2095
    %v2097 = vrot.slane %v2082, %v2096
    %v2099 = vunpack.c.l.s4 1966171168
    %v2100 = vunpack.c.0.s8 %v2099
    %v2101 = vlaneseq
    %v2102 = vshrl.u32 %v2101, 7
    %v2103 = vsub.s32 %v2100, %v2102
    %v2104 = vrot.slane %v2090, %v2103
    %v2105 = vcombine.high %v2097, %v2097
    %v2106 = vcombine.high %v2104, %v2104
    %v2108 = vunpack.c.l.s4 1966171168
    %v2109 = vunpack.c.0.s8 %v2108
    %v2110 = vlaneseq
    %v2111 = vshrl.u32 %v2110, 7
    %v2112 = vsub.s32 %v2109, %v2111
    %v2113 = vrot.slane %v2097, %v2112
    %v2115 = vunpack.c.l.s4 1966171168
    %v2116 = vunpack.c.0.s8 %v2115
    %v2117 = vlaneseq
    %v2118 = vshrl.u32 %v2117, 7
    %v2119 = vsub.s32 %v2116, %v2118
    %v2120 = vrot.slane %v2104, %v2119
    %v2122 = vunpack.c.l.s4 1966171168
    %v2123 = vunpack.c.0.s8 %v2122
    %v2124 = vlaneseq
    %v2125 = vshrl.u32 %v2124, 7
    %v2126 = vsub.s32 %v2123, %v2125
    %v2127 = vrot.slane %v2105, %v2126
    %v2129 = vunpack.c.l.s4 1966171168
    %v2130 = vunpack.c.0.s8 %v2129
    %v2131 = vlaneseq
    %v2132 = vshrl.u32 %v2131, 7
    %v2133 = vsub.s32 %v2130, %v2132
    %v2134 = vrot.slane %v2106, %v2133
    %v2135 = vcombine.high %v2113, %v2113
    %v2136 = vcombine.high %v2120, %v2120
    %v2137 = vcombine.high %v2127, %v2127
    %v2138 = vcombine.high %v2134, %v2134
    %v2139 = vcombine.high %v2085, %v2085
    %v2141 = vunpack.c.l.s4 1966171168
    %v2142 = vunpack.c.0.s8 %v2141
    %v2143 = vlaneseq
    %v2144 = vshrl.u32 %v2143, 7
    %v2145 = vsub.s32 %v2142, %v2144
    %v2146 = vrot.slane %v2085, %v2145
    %v2148 = vunpack.c.l.s4 1966171168
    %v2149 = vunpack.c.0.s8 %v2148
    %v2150 = vlaneseq
    %v2151 = vshrl.u32 %v2150, 7
    %v2152 = vsub.s32 %v2149, %v2151
    %v2153 = vrot.slane %v2139, %v2152
    %v2154 = vcombine.high %v2146, %v2146
    %v2155 = vcombine.high %v2153, %v2153
    %v2157 = vunpack.c.l.s4 1966171168
    %v2158 = vunpack.c.0.s8 %v2157
    %v2159 = vlaneseq
    %v2160 = vshrl.u32 %v2159, 7
    %v2161 = vsub.s32 %v2158, %v2160
    %v2162 = vrot.slane %v2146, %v2161
    %v2164 = vunpack.c.l.s4 1966171168
    %v2165 = vunpack.c.0.s8 %v2164
    %v2166 = vlaneseq
    %v2167 = vshrl.u32 %v2166, 7
    %v2168 = vsub.s32 %v2165, %v2167
    %v2169 = vrot.slane %v2153, %v2168
    %v2171 = vunpack.c.l.s4 1966171168
    %v2172 = vunpack.c.0.s8 %v2171
    %v2173 = vlaneseq
    %v2174 = vshrl.u32 %v2173, 7
    %v2175 = vsub.s32 %v2172, %v2174
    %v2176 = vrot.slane %v2154, %v2175
    %v2178 = vunpack.c.l.s4 1966171168
    %v2179 = vunpack.c.0.s8 %v2178
    %v2180 = vlaneseq
    %v2181 = vshrl.u32 %v2180, 7
    %v2182 = vsub.s32 %v2179, %v2181
    %v2183 = vrot.slane %v2155, %v2182
    %v2184 = vcombine.high %v2162, %v2162
    %v2185 = vcombine.high %v2169, %v2169
    %v2186 = vcombine.high %v2176, %v2176
    %v2187 = vcombine.high %v2183, %v2183
    %v2188 = vlaneseq
    %v2189 = vshrl.u32 %v2188, 7
    %v2190 = vsub.s32 0, %v2189
    %v2191 = vrot.slane %v2113, %v2190
    %v2192 = vlaneseq
    %v2193 = vshrl.u32 %v2192, 7
    %v2194 = vsub.s32 0, %v2193
    %v2195 = vrot.slane %v2127, %v2194
    %v2196 = vlaneseq
    %v2197 = vshrl.u32 %v2196, 7
    %v2198 = vsub.s32 0, %v2197
    %v2199 = vrot.slane %v2135, %v2198
    %v2200 = vlaneseq
    %v2201 = vshrl.u32 %v2200, 7
    %v2202 = vsub.s32 0, %v2201
    %v2203 = vrot.slane %v2137, %v2202
    %v2204 = vlaneseq
    %v2205 = vshrl.u32 %v2204, 7
    %v2206 = vsub.s32 0, %v2205
    %v2207 = vrot.slane %v2120, %v2206
    %v2208 = vlaneseq
    %v2209 = vshrl.u32 %v2208, 7
    %v2210 = vsub.s32 0, %v2209
    %v2211 = vrot.slane %v2134, %v2210
    %v2212 = vlaneseq
    %v2213 = vshrl.u32 %v2212, 7
    %v2214 = vsub.s32 0, %v2213
    %v2215 = vrot.slane %v2136, %v2214
    %v2216 = vlaneseq
    %v2217 = vshrl.u32 %v2216, 7
    %v2218 = vsub.s32 0, %v2217
    %v2219 = vrot.slane %v2138, %v2218
    %v2220 = vlaneseq
    %v2221 = vshrl.u32 %v2220, 7
    %v2222 = vsub.s32 0, %v2221
    %v2223 = vrot.slane %v2162, %v2222
    %v2224 = vlaneseq
    %v2225 = vshrl.u32 %v2224, 7
    %v2226 = vsub.s32 0, %v2225
    %v2227 = vrot.slane %v2176, %v2226
    %v2228 = vlaneseq
    %v2229 = vshrl.u32 %v2228, 7
    %v2230 = vsub.s32 0, %v2229
    %v2231 = vrot.slane %v2184, %v2230
    %v2232 = vlaneseq
    %v2233 = vshrl.u32 %v2232, 7
    %v2234 = vsub.s32 0, %v2233
    %v2235 = vrot.slane %v2186, %v2234
    %v2236 = vlaneseq
    %v2237 = vshrl.u32 %v2236, 7
    %v2238 = vsub.s32 0, %v2237
    %v2239 = vrot.slane %v2169, %v2238
    %v2240 = vlaneseq
    %v2241 = vshrl.u32 %v2240, 7
    %v2242 = vsub.s32 0, %v2241
    %v2243 = vrot.slane %v2183, %v2242
    %v2244 = vlaneseq
    %v2245 = vshrl.u32 %v2244, 7
    %v2246 = vsub.s32 0, %v2245
    %v2247 = vrot.slane %v2185, %v2246
    %v2248 = vlaneseq
    %v2249 = vshrl.u32 %v2248, 7
    %v2250 = vsub.s32 0, %v2249
    %v2251 = vrot.slane %v2187, %v2250
    %2252 = vrot.lane.b32.xlu0 %v2191, 32
    %v2253 = vpop.permute.xlu0 %2252
    %2254 = vrot.lane.b32.xlu0 %v2195, 32
    %v2255 = vpop.permute.xlu0 %2254
    %2256 = vrot.lane.b32.xlu0 %v2199, 32
    %v2257 = vpop.permute.xlu0 %2256
    %2258 = vrot.lane.b32.xlu0 %v2203, 32
    %v2259 = vpop.permute.xlu0 %2258
    %2260 = vrot.lane.b32.xlu0 %v2207, 32
    %v2261 = vpop.permute.xlu0 %2260
    %2262 = vrot.lane.b32.xlu0 %v2211, 32
    %v2263 = vpop.permute.xlu0 %2262
    %2264 = vrot.lane.b32.xlu0 %v2215, 32
    %v2265 = vpop.permute.xlu0 %2264
    %2266 = vrot.lane.b32.xlu0 %v2219, 32
    %v2267 = vpop.permute.xlu0 %2266
    %2268 = vrot.lane.b32.xlu0 %v2223, 32
    %v2269 = vpop.permute.xlu0 %2268
    %2270 = vrot.lane.b32.xlu0 %v2227, 32
    %v2271 = vpop.permute.xlu0 %2270
    %2272 = vrot.lane.b32.xlu0 %v2231, 32
    %v2273 = vpop.permute.xlu0 %2272
    %2274 = vrot.lane.b32.xlu0 %v2235, 32
    %v2275 = vpop.permute.xlu0 %2274
    %2276 = vrot.lane.b32.xlu0 %v2239, 32
    %v2277 = vpop.permute.xlu0 %2276
    %2278 = vrot.lane.b32.xlu0 %v2243, 32
    %v2279 = vpop.permute.xlu0 %2278
    %2280 = vrot.lane.b32.xlu0 %v2247, 32
    %v2281 = vpop.permute.xlu0 %2280
    %2282 = vrot.lane.b32.xlu0 %v2251, 32
    %v2283 = vpop.permute.xlu0 %2282
    %v2300 = vadd.f32 %v213, %v2253
    %v2301 = vadd.f32 %v216, %v2255
    %v2302 = vadd.f32 %v221, %v2257
    %v2303 = vadd.f32 %v224, %v2259
    %v2304 = vadd.f32 %v229, %v2261
    %v2305 = vadd.f32 %v232, %v2263
    %v2306 = vadd.f32 %v237, %v2265
    %v2307 = vadd.f32 %v240, %v2267
    %v2308 = vadd.f32 %v245, %v2269
    %v2309 = vadd.f32 %v248, %v2271
    %v2310 = vadd.f32 %v253, %v2273
    %v2311 = vadd.f32 %v256, %v2275
    %v2312 = vadd.f32 %v261, %v2277
    %v2313 = vadd.f32 %v264, %v2279
    %v2314 = vadd.f32 %v269, %v2281
    %v2315 = vadd.f32 %v272, %v2283
    %v2316 = vmax.f32 %v2300, 0.0
    %v2317 = vmax.f32 %v2301, 0.0
    %v2318 = vmax.f32 %v2302, 0.0
    %v2319 = vmax.f32 %v2303, 0.0
    %v2320 = vmax.f32 %v2304, 0.0
    %v2321 = vmax.f32 %v2305, 0.0
    %v2322 = vmax.f32 %v2306, 0.0
    %v2323 = vmax.f32 %v2307, 0.0
    %v2324 = vmax.f32 %v2308, 0.0
    %v2325 = vmax.f32 %v2309, 0.0
    %v2326 = vmax.f32 %v2310, 0.0
    %v2327 = vmax.f32 %v2311, 0.0
    %v2328 = vmax.f32 %v2312, 0.0
    %v2329 = vmax.f32 %v2313, 0.0
    %v2330 = vmax.f32 %v2314, 0.0
    %v2331 = vmax.f32 %v2315, 0.0
    %v2332 = vpack.c.bf16 %v2317, %v2316
    %v2333 = vpack.c.bf16 %v2319, %v2318
    %v2334 = vpack.c.bf16 %v2321, %v2320
    %v2335 = vpack.c.bf16 %v2323, %v2322
    %v2336 = vpack.c.bf16 %v2325, %v2324
    %v2337 = vpack.c.bf16 %v2327, %v2326
    %v2338 = vpack.c.bf16 %v2329, %v2328
    %v2339 = vpack.c.bf16 %v2331, %v2330
    %v2340 = vlaneseq
    %v2341 = vshrl.u32 %v2340, 7
    %v2342 = vsub.s32 0, %v2341
    %v2343 = vrot.slane %v2019, %v2342
    %2352 = vrot.lane.b32.xlu0 %v2332, 96
    %v2353 = vpop.permute.xlu0 %2352
    %2354 = vrot.lane.b32.xlu0 %v2333, 96
    %v2355 = vpop.permute.xlu0 %2354
    %2356 = vrot.lane.b32.xlu0 %v2334, 96
    %v2357 = vpop.permute.xlu0 %2356
    %2358 = vrot.lane.b32.xlu0 %v2335, 96
    %v2359 = vpop.permute.xlu0 %2358
    %2360 = vrot.lane.b32.xlu0 %v2336, 96
    %v2361 = vpop.permute.xlu0 %2360
    %2362 = vrot.lane.b32.xlu0 %v2337, 96
    %v2363 = vpop.permute.xlu0 %2362
    %2364 = vrot.lane.b32.xlu0 %v2338, 96
    %v2365 = vpop.permute.xlu0 %2364
    %2366 = vrot.lane.b32.xlu0 %v2339, 96
    %v2367 = vpop.permute.xlu0 %2366
    %v2372 = vunpack.c.l.b16 %v2014
    %v2373 = vunpack.c.l.b16 %v2015
    %v2374 = vunpack.c.l.b16 %v2016
    %v2375 = vunpack.c.l.b16 %v2017
    %v2376 = vpack.c.b16 %v2373, %v2372
    %v2377 = vpack.c.b16 %v2375, %v2374
    %v2381 = vsel %vm153, %v2353, 0
    %v2384 = vsel %vm153, %v2355, 0
    %v2387 = vsel %vm153, %v2357, 0
    %v2390 = vsel %vm153, %v2359, 0
    %v2393 = vsel %vm153, %v2361, 0
    %v2396 = vsel %vm153, %v2363, 0
    %v2399 = vsel %vm153, %v2365, 0
    %v2402 = vsel %vm153, %v2367, 0
    %2404 = vmatprep.subr.bf16.mxu0 0
    %2405 = vmatpush1.bf16.msra.mxu0 0
    %2406 = vmatprep.subr.bf16.mxu0 0
    %2407 = vmatpush1.bf16.msra.mxu0 0
    %2408 = vmatprep.subr.bf16.mxu0 0
    %2409 = vmatpush1.bf16.msra.mxu0 0
    %2410 = vmatprep.subr.bf16.mxu0 0
    %2411 = vmatpush1.bf16.msra.mxu0 0
    %2412 = vmatprep.subr.bf16.mxu0 0
    %2413 = vmatpush1.bf16.msra.mxu0 0
    %2414 = vmatprep.subr.bf16.mxu0 0
    %2415 = vmatpush1.bf16.msra.mxu0 0
    %2416 = vmatprep.subr.bf16.mxu0 0
    %2417 = vmatpush1.bf16.msra.mxu0 %v2377
    %2418 = vmatprep.subr.bf16.mxu0 0
    %2419 = vmatpush1.bf16.msra.mxu0 %v2376
    %2420 = vmatprep.subr.bf16.mxu0 0
    %2421 = vmatpush2.bf16.msra.mxu0 0
    %2422 = vmatprep.subr.bf16.mxu0 0
    %2423 = vmatpush2.bf16.msra.mxu0 0
    %2424 = vmatprep.subr.bf16.mxu0 0
    %2425 = vmatpush2.bf16.msra.mxu0 0
    %2426 = vmatprep.subr.bf16.mxu0 0
    %2427 = vmatpush2.bf16.msra.mxu0 0
    %2428 = vmatprep.subr.bf16.mxu0 0
    %2429 = vmatpush2.bf16.msra.mxu0 0
    %2430 = vmatprep.subr.bf16.mxu0 0
    %2431 = vmatpush2.bf16.msra.mxu0 0
    %2432 = vmatprep.subr.bf16.mxu0 0
    %2433 = vmatpush2.bf16.msra.mxu0 0
    %2434 = vmatprep.subr.bf16.mxu0 0
    %2435 = vmatpush2.bf16.msra.mxu0 0
    %2436 = vmatprep.mubr.bf16.mxu0 0
    %2437 = vmatmul.mubr.bf16.gmra.mxu0 %v2381
    %v2438 = vpop.f32.mrf.mxu0
    %v2439 = vadd.f32 %v2343, %v2438
    %v2440 = vpop.f32.mrf.mxu0
    %v2441 = vpop.f32.mrf.mxu0
    %v2442 = vadd.f32 %v2343, %v2441
    %v2443 = vpop.f32.mrf.mxu0
    %2444 = vmatprep.mubr.bf16.mxu0 0
    %2445 = vmatmul.mubr.bf16.gmra.mxu0 %v2384
    %v2446 = vpop.f32.mrf.mxu0
    %v2447 = vadd.f32 %v2343, %v2446
    %v2448 = vpop.f32.mrf.mxu0
    %v2449 = vpop.f32.mrf.mxu0
    %v2450 = vadd.f32 %v2343, %v2449
    %v2451 = vpop.f32.mrf.mxu0
    %2452 = vmatprep.mubr.bf16.mxu0 0
    %2453 = vmatmul.mubr.bf16.gmra.mxu0 %v2387
    %v2454 = vpop.f32.mrf.mxu0
    %v2455 = vadd.f32 %v2343, %v2454
    %v2456 = vpop.f32.mrf.mxu0
    %v2457 = vpop.f32.mrf.mxu0
    %v2458 = vadd.f32 %v2343, %v2457
    %v2459 = vpop.f32.mrf.mxu0
    %2460 = vmatprep.mubr.bf16.mxu0 0
    %2461 = vmatmul.mubr.bf16.gmra.mxu0 %v2390
    %v2462 = vpop.f32.mrf.mxu0
    %v2463 = vadd.f32 %v2343, %v2462
    %v2464 = vpop.f32.mrf.mxu0
    %v2465 = vpop.f32.mrf.mxu0
    %v2466 = vadd.f32 %v2343, %v2465
    %v2467 = vpop.f32.mrf.mxu0
    %2468 = vmatprep.mubr.bf16.mxu0 0
    %2469 = vmatmul.mubr.bf16.gmra.mxu0 %v2393
    %v2470 = vpop.f32.mrf.mxu0
    %v2471 = vadd.f32 %v2343, %v2470
    %v2472 = vpop.f32.mrf.mxu0
    %v2473 = vpop.f32.mrf.mxu0
    %v2474 = vadd.f32 %v2343, %v2473
    %v2475 = vpop.f32.mrf.mxu0
    %2476 = vmatprep.mubr.bf16.mxu0 0
    %2477 = vmatmul.mubr.bf16.gmra.mxu0 %v2396
    %v2478 = vpop.f32.mrf.mxu0
    %v2479 = vadd.f32 %v2343, %v2478
    %v2480 = vpop.f32.mrf.mxu0
    %v2481 = vpop.f32.mrf.mxu0
    %v2482 = vadd.f32 %v2343, %v2481
    %v2483 = vpop.f32.mrf.mxu0
    %2484 = vmatprep.mubr.bf16.mxu0 0
    %2485 = vmatmul.mubr.bf16.gmra.mxu0 %v2399
    %v2486 = vpop.f32.mrf.mxu0
    %v2487 = vadd.f32 %v2343, %v2486
    %v2488 = vpop.f32.mrf.mxu0
    %v2489 = vpop.f32.mrf.mxu0
    %v2490 = vadd.f32 %v2343, %v2489
    %v2491 = vpop.f32.mrf.mxu0
    %2492 = vmatprep.mubr.bf16.mxu0 0
    %2493 = vmatmul.mubr.bf16.gmra.mxu0 %v2402
    %v2494 = vpop.f32.mrf.mxu0
    %v2495 = vadd.f32 %v2343, %v2494
    %v2496 = vpop.f32.mrf.mxu0
    %v2497 = vpop.f32.mrf.mxu0
    %v2498 = vadd.f32 %v2343, %v2497
    %v2499 = vpop.f32.mrf.mxu0
    %2500 = vdwg.mxu0
    %v2501 = vmax.f32 %v2439, 0.0
    %v2502 = vmax.f32 %v2442, 0.0
    %v2503 = vmax.f32 %v2447, 0.0
    %v2504 = vmax.f32 %v2450, 0.0
    %v2505 = vmax.f32 %v2455, 0.0
    %v2506 = vmax.f32 %v2458, 0.0
    %v2507 = vmax.f32 %v2463, 0.0
    %v2508 = vmax.f32 %v2466, 0.0
    %v2509 = vmax.f32 %v2471, 0.0
    %v2510 = vmax.f32 %v2474, 0.0
    %v2511 = vmax.f32 %v2479, 0.0
    %v2512 = vmax.f32 %v2482, 0.0
    %v2513 = vmax.f32 %v2487, 0.0
    %v2514 = vmax.f32 %v2490, 0.0
    %v2515 = vmax.f32 %v2495, 0.0
    %v2516 = vmax.f32 %v2498, 0.0
    %2518 = vrot.lane.b32.xlu0 %v2343, 112
    %v2519 = vpop.permute.xlu0 %2518
    %v2521 = vmul.f32 %v2501, %v2519
    %v2522 = vmul.f32 %v2502, %v2519
    %v2523 = vmul.f32 %v2503, %v2519
    %v2524 = vmul.f32 %v2504, %v2519
    %v2525 = vmul.f32 %v2505, %v2519
    %v2526 = vmul.f32 %v2506, %v2519
    %v2527 = vmul.f32 %v2507, %v2519
    %v2528 = vmul.f32 %v2508, %v2519
    %v2529 = vmul.f32 %v2509, %v2519
    %v2530 = vmul.f32 %v2510, %v2519
    %v2531 = vmul.f32 %v2511, %v2519
    %v2532 = vmul.f32 %v2512, %v2519
    %v2533 = vmul.f32 %v2513, %v2519
    %v2534 = vmul.f32 %v2514, %v2519
    %v2535 = vmul.f32 %v2515, %v2519
    %v2536 = vmul.f32 %v2516, %v2519
    %v2537 = vsel %vm739, %v2521, 0.0
    %2538 = vadd.xlane.f32.xlu0 %v2537
    %v2539 = vpop.xlane.xlu0 %2538
    %v2540 = vsel %vm739, %v2522, 0.0
    %2541 = vadd.xlane.f32.xlu0 %v2540
    %v2542 = vpop.xlane.xlu0 %2541
    %v2543 = vsel %vm739, %v2523, 0.0
    %2544 = vadd.xlane.f32.xlu0 %v2543
    %v2545 = vpop.xlane.xlu0 %2544
    %v2546 = vsel %vm739, %v2524, 0.0
    %2547 = vadd.xlane.f32.xlu0 %v2546
    %v2548 = vpop.xlane.xlu0 %2547
    %v2549 = vsel %vm739, %v2525, 0.0
    %2550 = vadd.xlane.f32.xlu0 %v2549
    %v2551 = vpop.xlane.xlu0 %2550
    %v2552 = vsel %vm739, %v2526, 0.0
    %2553 = vadd.xlane.f32.xlu0 %v2552
    %v2554 = vpop.xlane.xlu0 %2553
    %v2555 = vsel %vm739, %v2527, 0.0
    %2556 = vadd.xlane.f32.xlu0 %v2555
    %v2557 = vpop.xlane.xlu0 %2556
    %v2558 = vsel %vm739, %v2528, 0.0
    %2559 = vadd.xlane.f32.xlu0 %v2558
    %v2560 = vpop.xlane.xlu0 %2559
    %v2561 = vsel %vm739, %v2529, 0.0
    %2562 = vadd.xlane.f32.xlu0 %v2561
    %v2563 = vpop.xlane.xlu0 %2562
    %v2564 = vsel %vm739, %v2530, 0.0
    %2565 = vadd.xlane.f32.xlu0 %v2564
    %v2566 = vpop.xlane.xlu0 %2565
    %v2567 = vsel %vm739, %v2531, 0.0
    %2568 = vadd.xlane.f32.xlu0 %v2567
    %v2569 = vpop.xlane.xlu0 %2568
    %v2570 = vsel %vm739, %v2532, 0.0
    %2571 = vadd.xlane.f32.xlu0 %v2570
    %v2572 = vpop.xlane.xlu0 %2571
    %v2573 = vsel %vm739, %v2533, 0.0
    %2574 = vadd.xlane.f32.xlu0 %v2573
    %v2575 = vpop.xlane.xlu0 %2574
    %v2576 = vsel %vm739, %v2534, 0.0
    %2577 = vadd.xlane.f32.xlu0 %v2576
    %v2578 = vpop.xlane.xlu0 %2577
    %v2579 = vsel %vm739, %v2535, 0.0
    %2580 = vadd.xlane.f32.xlu0 %v2579
    %v2581 = vpop.xlane.xlu0 %2580
    %v2582 = vsel %vm739, %v2536, 0.0
    %2583 = vadd.xlane.f32.xlu0 %v2582
    %v2584 = vpop.xlane.xlu0 %2583
    %2586 = vrot.lane.b32.xlu0 %v2019, 96
    %v2587 = vpop.permute.xlu0 %2586
    %s2588 = vtos %v2587
    %v2589 = vstv %s2588
    %v2591 = vadd.f32 %v2539, %v2589
    %v2592 = vadd.f32 %v2542, %v2589
    %v2593 = vadd.f32 %v2545, %v2589
    %v2594 = vadd.f32 %v2548, %v2589
    %v2595 = vadd.f32 %v2551, %v2589
    %v2596 = vadd.f32 %v2554, %v2589
    %v2597 = vadd.f32 %v2557, %v2589
    %v2598 = vadd.f32 %v2560, %v2589
    %v2599 = vadd.f32 %v2563, %v2589
    %v2600 = vadd.f32 %v2566, %v2589
    %v2601 = vadd.f32 %v2569, %v2589
    %v2602 = vadd.f32 %v2572, %v2589
    %v2603 = vadd.f32 %v2575, %v2589
    %v2604 = vadd.f32 %v2578, %v2589
    %v2605 = vadd.f32 %v2581, %v2589
    %v2606 = vadd.f32 %v2584, %v2589
    %v2623 = vlaneseq
    %v2624 = vshrl.u32 %v2623, 7
    %v2625 = vsub.s32 %v68, %v2624
    %v2626 = vrot.slane %v2591, %v2625
    %v2627 = vlaneseq
    %v2628 = vshrl.u32 %v2627, 7
    %v2629 = vsub.s32 %v68, %v2628
    %v2630 = vrot.slane %v2592, %v2629
    %v2631 = vlaneseq
    %v2632 = vshrl.u32 %v2631, 7
    %v2633 = vsub.s32 %v68, %v2632
    %v2634 = vrot.slane %v2593, %v2633
    %v2635 = vlaneseq
    %v2636 = vshrl.u32 %v2635, 7
    %v2637 = vsub.s32 %v68, %v2636
    %v2638 = vrot.slane %v2594, %v2637
    %v2639 = vlaneseq
    %v2640 = vshrl.u32 %v2639, 7
    %v2641 = vsub.s32 %v68, %v2640
    %v2642 = vrot.slane %v2595, %v2641
    %v2643 = vlaneseq
    %v2644 = vshrl.u32 %v2643, 7
    %v2645 = vsub.s32 %v68, %v2644
    %v2646 = vrot.slane %v2596, %v2645
    %v2647 = vlaneseq
    %v2648 = vshrl.u32 %v2647, 7
    %v2649 = vsub.s32 %v68, %v2648
    %v2650 = vrot.slane %v2597, %v2649
    %v2651 = vlaneseq
    %v2652 = vshrl.u32 %v2651, 7
    %v2653 = vsub.s32 %v68, %v2652
    %v2654 = vrot.slane %v2598, %v2653
    %v2655 = vlaneseq
    %v2656 = vshrl.u32 %v2655, 7
    %v2657 = vsub.s32 %v68, %v2656
    %v2658 = vrot.slane %v2599, %v2657
    %v2659 = vlaneseq
    %v2660 = vshrl.u32 %v2659, 7
    %v2661 = vsub.s32 %v68, %v2660
    %v2662 = vrot.slane %v2600, %v2661
    %v2663 = vlaneseq
    %v2664 = vshrl.u32 %v2663, 7
    %v2665 = vsub.s32 %v68, %v2664
    %v2666 = vrot.slane %v2601, %v2665
    %v2667 = vlaneseq
    %v2668 = vshrl.u32 %v2667, 7
    %v2669 = vsub.s32 %v68, %v2668
    %v2670 = vrot.slane %v2602, %v2669
    %v2671 = vlaneseq
    %v2672 = vshrl.u32 %v2671, 7
    %v2673 = vsub.s32 %v68, %v2672
    %v2674 = vrot.slane %v2603, %v2673
    %v2675 = vlaneseq
    %v2676 = vshrl.u32 %v2675, 7
    %v2677 = vsub.s32 %v68, %v2676
    %v2678 = vrot.slane %v2604, %v2677
    %v2679 = vlaneseq
    %v2680 = vshrl.u32 %v2679, 7
    %v2681 = vsub.s32 %v68, %v2680
    %v2682 = vrot.slane %v2605, %v2681
    %v2683 = vlaneseq
    %v2684 = vshrl.u32 %v2683, 7
    %v2685 = vsub.s32 %v68, %v2684
    %v2686 = vrot.slane %v2606, %v2685
    %v2703 = vsel %vm810, %v2626, -1e+30
    %v2704 = vsel %vm811, %v2630, -1e+30
    %v2705 = vsel %vm812, %v2634, -1e+30
    %v2706 = vsel %vm813, %v2638, -1e+30
    %v2707 = vsel %vm814, %v2642, -1e+30
    %v2708 = vsel %vm815, %v2646, -1e+30
    %v2709 = vsel %vm816, %v2650, -1e+30
    %v2710 = vsel %vm817, %v2654, -1e+30
    %v2711 = vsel %vm818, %v2658, -1e+30
    %v2712 = vsel %vm819, %v2662, -1e+30
    %v2713 = vsel %vm820, %v2666, -1e+30
    %v2714 = vsel %vm821, %v2670, -1e+30
    %v2715 = vsel %vm822, %v2674, -1e+30
    %v2716 = vsel %vm823, %v2678, -1e+30
    %v2717 = vsel %vm824, %v2682, -1e+30
    %v2718 = vsel %vm825, %v2686, -1e+30
    %v2735 = vrot.slane %v2704, 7
    %v2736 = vsel %vm958, %v2735, %v2703
    %v2737 = vrot.slane %v2705, 6
    %v2738 = vsel %vm961, %v2737, %v2736
    %v2739 = vrot.slane %v2706, 5
    %v2740 = vsel %vm964, %v2739, %v2738
    %v2741 = vrot.slane %v2707, 4
    %v2742 = vsel %vm967, %v2741, %v2740
    %v2743 = vrot.slane %v2708, 3
    %v2744 = vsel %vm970, %v2743, %v2742
    %v2745 = vrot.slane %v2709, 2
    %v2746 = vsel %vm973, %v2745, %v2744
    %v2747 = vrot.slane %v2710, 1
    %v2748 = vsel %vm955, %v2711, %v2747
    %v2749 = vrot.slane %v2712, 7
    %v2750 = vsel %vm958, %v2749, %v2748
    %v2751 = vrot.slane %v2713, 6
    %v2752 = vsel %vm961, %v2751, %v2750
    %v2753 = vrot.slane %v2714, 5
    %v2754 = vsel %vm964, %v2753, %v2752
    %v2755 = vrot.slane %v2715, 4
    %v2756 = vsel %vm967, %v2755, %v2754
    %v2757 = vrot.slane %v2716, 3
    %v2758 = vsel %vm970, %v2757, %v2756
    %v2759 = vrot.slane %v2717, 2
    %v2760 = vsel %vm973, %v2759, %v2758
    %v2761 = vrot.slane %v2718, 1
    %vm2765 = vcmask 64513
    %v2766 = vsel %vm2765, %v2746, -inf
    %2767 = vmax.xlane.f32.xlu0 %v2766
    %v2768 = vpop.xlane.xlu0 %2767
    %v2769 = vsel %vm991, %v2760, -inf
    %2770 = vmax.xlane.f32.xlu0 %v2769
    %v2771 = vpop.xlane.xlu0 %2770
    %vm2772 = vcmask 57344
    %v2773 = vsel %vm2772, %v2761, -inf
    %2774 = vmax.xlane.f32.xlu0 %v2773
    %v2775 = vpop.xlane.xlu0 %2774
    %v2779 = vrot.slane %v2768, 1
    %v2780 = vrot.slane %v2768, 2
    %v2781 = vrot.slane %v2768, 3
    %v2782 = vrot.slane %v2768, 4
    %v2783 = vrot.slane %v2768, 5
    %v2784 = vrot.slane %v2768, 6
    %v2785 = vrot.slane %v2771, 7
    %v2786 = vrot.slane %v2771, 1
    %v2787 = vrot.slane %v2771, 2
    %v2788 = vrot.slane %v2771, 3
    %v2789 = vrot.slane %v2771, 4
    %v2790 = vrot.slane %v2771, 5
    %v2791 = vrot.slane %v2771, 6
    %v2792 = vrot.slane %v2775, 7
    %v2809 = vsub.f32 %v2703, %v2768
    %v2810 = vsub.f32 %v2704, %v2779
    %v2811 = vsub.f32 %v2705, %v2780
    %v2812 = vsub.f32 %v2706, %v2781
    %v2813 = vsub.f32 %v2707, %v2782
    %v2814 = vsub.f32 %v2708, %v2783
    %v2815 = vsub.f32 %v2709, %v2784
    %v2816 = vsub.f32 %v2710, %v2785
    %v2817 = vsub.f32 %v2711, %v2771
    %v2818 = vsub.f32 %v2712, %v2786
    %v2819 = vsub.f32 %v2713, %v2787
    %v2820 = vsub.f32 %v2714, %v2788
    %v2821 = vsub.f32 %v2715, %v2789
    %v2822 = vsub.f32 %v2716, %v2790
    %v2823 = vsub.f32 %v2717, %v2791
    %v2824 = vsub.f32 %v2718, %v2792
    %v2825 = vmul.f32 %v2809, 1.442695
    %v2826 = vpow.pop %v2825
    %v2827 = vmul.f32 %v2810, 1.442695
    %v2828 = vpow.pop %v2827
    %v2829 = vmul.f32 %v2811, 1.442695
    %v2830 = vpow.pop %v2829
    %v2831 = vmul.f32 %v2812, 1.442695
    %v2832 = vpow.pop %v2831
    %v2833 = vmul.f32 %v2813, 1.442695
    %v2834 = vpow.pop %v2833
    %v2835 = vmul.f32 %v2814, 1.442695
    %v2836 = vpow.pop %v2835
    %v2837 = vmul.f32 %v2815, 1.442695
    %v2838 = vpow.pop %v2837
    %v2839 = vmul.f32 %v2816, 1.442695
    %v2840 = vpow.pop %v2839
    %v2841 = vmul.f32 %v2817, 1.442695
    %v2842 = vpow.pop %v2841
    %v2843 = vmul.f32 %v2818, 1.442695
    %v2844 = vpow.pop %v2843
    %v2845 = vmul.f32 %v2819, 1.442695
    %v2846 = vpow.pop %v2845
    %v2847 = vmul.f32 %v2820, 1.442695
    %v2848 = vpow.pop %v2847
    %v2849 = vmul.f32 %v2821, 1.442695
    %v2850 = vpow.pop %v2849
    %v2851 = vmul.f32 %v2822, 1.442695
    %v2852 = vpow.pop %v2851
    %v2853 = vmul.f32 %v2823, 1.442695
    %v2854 = vpow.pop %v2853
    %v2855 = vmul.f32 %v2824, 1.442695
    %v2856 = vpow.pop %v2855
    %v2857 = vsel %vm810, %v2826, 0.0
    %v2858 = vsel %vm811, %v2828, 0.0
    %v2859 = vsel %vm812, %v2830, 0.0
    %v2860 = vsel %vm813, %v2832, 0.0
    %v2861 = vsel %vm814, %v2834, 0.0
    %v2862 = vsel %vm815, %v2836, 0.0
    %v2863 = vsel %vm816, %v2838, 0.0
    %v2864 = vsel %vm817, %v2840, 0.0
    %v2865 = vsel %vm818, %v2842, 0.0
    %v2866 = vsel %vm819, %v2844, 0.0
    %v2867 = vsel %vm820, %v2846, 0.0
    %v2868 = vsel %vm821, %v2848, 0.0
    %v2869 = vsel %vm822, %v2850, 0.0
    %v2870 = vsel %vm823, %v2852, 0.0
    %v2871 = vsel %vm824, %v2854, 0.0
    %v2872 = vsel %vm825, %v2856, 0.0
    %v2889 = vrot.slane %v2858, 7
    %v2890 = vsel %vm958, %v2889, %v2857
    %v2891 = vrot.slane %v2859, 6
    %v2892 = vsel %vm961, %v2891, %v2890
    %v2893 = vrot.slane %v2860, 5
    %v2894 = vsel %vm964, %v2893, %v2892
    %v2895 = vrot.slane %v2861, 4
    %v2896 = vsel %vm967, %v2895, %v2894
    %v2897 = vrot.slane %v2862, 3
    %v2898 = vsel %vm970, %v2897, %v2896
    %v2899 = vrot.slane %v2863, 2
    %v2900 = vsel %vm973, %v2899, %v2898
    %v2901 = vrot.slane %v2864, 1
    %v2902 = vsel %vm955, %v2865, %v2901
    %v2903 = vrot.slane %v2866, 7
    %v2904 = vsel %vm958, %v2903, %v2902
    %v2905 = vrot.slane %v2867, 6
    %v2906 = vsel %vm961, %v2905, %v2904
    %v2907 = vrot.slane %v2868, 5
    %v2908 = vsel %vm964, %v2907, %v2906
    %v2909 = vrot.slane %v2869, 4
    %v2910 = vsel %vm967, %v2909, %v2908
    %v2911 = vrot.slane %v2870, 3
    %v2912 = vsel %vm970, %v2911, %v2910
    %v2913 = vrot.slane %v2871, 2
    %v2914 = vsel %vm973, %v2913, %v2912
    %v2915 = vrot.slane %v2872, 1
    %v2919 = vsel %vm2765, %v2900, 0.0
    %2920 = vadd.xlane.f32.xlu0 %v2919
    %v2921 = vpop.xlane.xlu0 %2920
    %v2922 = vsel %vm991, %v2914, 0.0
    %2923 = vadd.xlane.f32.xlu0 %v2922
    %v2924 = vpop.xlane.xlu0 %2923
    %v2925 = vsel %vm2772, %v2915, 0.0
    %2926 = vadd.xlane.f32.xlu0 %v2925
    %v2927 = vpop.xlane.xlu0 %2926
    %v2928 = vmax.f32 %v2921, 1e-30
    %v2929 = vmax.f32 %v2924, 1e-30
    %v2930 = vmax.f32 %v2927, 1e-30
    %v2934 = vrot.slane %v2928, 1
    %v2935 = vrot.slane %v2928, 2
    %v2936 = vrot.slane %v2928, 3
    %v2937 = vrot.slane %v2928, 4
    %v2938 = vrot.slane %v2928, 5
    %v2939 = vrot.slane %v2928, 6
    %v2940 = vrot.slane %v2929, 7
    %v2941 = vrot.slane %v2929, 1
    %v2942 = vrot.slane %v2929, 2
    %v2943 = vrot.slane %v2929, 3
    %v2944 = vrot.slane %v2929, 4
    %v2945 = vrot.slane %v2929, 5
    %v2946 = vrot.slane %v2929, 6
    %v2947 = vrot.slane %v2930, 7
    %v2964 = vrcp.pop %v2928
    %v2965 = vmul.f32 %v2857, %v2964
    %v2966 = vrcp.pop %v2934
    %v2967 = vmul.f32 %v2858, %v2966
    %v2968 = vrcp.pop %v2935
    %v2969 = vmul.f32 %v2859, %v2968
    %v2970 = vrcp.pop %v2936
    %v2971 = vmul.f32 %v2860, %v2970
    %v2972 = vrcp.pop %v2937
    %v2973 = vmul.f32 %v2861, %v2972
    %v2974 = vrcp.pop %v2938
    %v2975 = vmul.f32 %v2862, %v2974
    %v2976 = vrcp.pop %v2939
    %v2977 = vmul.f32 %v2863, %v2976
    %v2978 = vrcp.pop %v2940
    %v2979 = vmul.f32 %v2864, %v2978
    %v2980 = vrcp.pop %v2929
    %v2981 = vmul.f32 %v2865, %v2980
    %v2982 = vrcp.pop %v2941
    %v2983 = vmul.f32 %v2866, %v2982
    %v2984 = vrcp.pop %v2942
    %v2985 = vmul.f32 %v2867, %v2984
    %v2986 = vrcp.pop %v2943
    %v2987 = vmul.f32 %v2868, %v2986
    %v2988 = vrcp.pop %v2944
    %v2989 = vmul.f32 %v2869, %v2988
    %v2990 = vrcp.pop %v2945
    %v2991 = vmul.f32 %v2870, %v2990
    %v2992 = vrcp.pop %v2946
    %v2993 = vmul.f32 %v2871, %v2992
    %v2994 = vrcp.pop %v2947
    %v2995 = vmul.f32 %v2872, %v2994
    %v2996 = vsel %vm958, %v1228, %v51
    %v2997 = vsel %vm961, %v1230, %v2996
    %v2998 = vsel %vm964, %v1232, %v2997
    %v2999 = vsel %vm967, %v1234, %v2998
    %v3000 = vsel %vm970, %v1236, %v2999
    %v3001 = vsel %vm973, %v1238, %v3000
    %v3002 = vsel %vm955, %v59, %v1240
    %v3003 = vsel %vm958, %v1242, %v3002
    %v3004 = vsel %vm961, %v1244, %v3003
    %v3005 = vsel %vm964, %v1246, %v3004
    %v3006 = vsel %vm967, %v1248, %v3005
    %v3007 = vsel %vm970, %v1250, %v3006
    %v3008 = vsel %vm973, %v1252, %v3007
    %v3012 = vsel %vm2765, %v3001, 0.0
    %3013 = vadd.xlane.f32.xlu0 %v3012
    %v3014 = vpop.xlane.xlu0 %3013
    %v3015 = vsel %vm991, %v3008, 0.0
    %3016 = vadd.xlane.f32.xlu0 %v3015
    %v3017 = vpop.xlane.xlu0 %3016
    %v3018 = vsel %vm2772, %v1254, 0.0
    %3019 = vadd.xlane.f32.xlu0 %v3018
    %v3020 = vpop.xlane.xlu0 %3019
    %v3021 = vmax.f32 %v3014, 1.0
    %v3022 = vmax.f32 %v3017, 1.0
    %v3023 = vmax.f32 %v3020, 1.0
    %v3024 = vmul.f32 %v2965, 0.95
    %v3025 = vmul.f32 %v2967, 0.95
    %v3026 = vmul.f32 %v2969, 0.95
    %v3027 = vmul.f32 %v2971, 0.95
    %v3028 = vmul.f32 %v2973, 0.95
    %v3029 = vmul.f32 %v2975, 0.95
    %v3030 = vmul.f32 %v2977, 0.95
    %v3031 = vmul.f32 %v2979, 0.95
    %v3032 = vmul.f32 %v2981, 0.95
    %v3033 = vmul.f32 %v2983, 0.95
    %v3034 = vmul.f32 %v2985, 0.95
    %v3035 = vmul.f32 %v2987, 0.95
    %v3036 = vmul.f32 %v2989, 0.95
    %v3037 = vmul.f32 %v2991, 0.95
    %v3038 = vmul.f32 %v2993, 0.95
    %v3039 = vmul.f32 %v2995, 0.95
    %v3040 = vrcp.pop %v3021
    %v3041 = vmul.f32 0.05, %v3040
    %v3042 = vrcp.pop %v3022
    %v3043 = vmul.f32 0.05, %v3042
    %v3044 = vrcp.pop %v3023
    %v3045 = vmul.f32 0.05, %v3044
    %v3049 = vrot.slane %v3041, 1
    %v3050 = vrot.slane %v3041, 2
    %v3051 = vrot.slane %v3041, 3
    %v3052 = vrot.slane %v3041, 4
    %v3053 = vrot.slane %v3041, 5
    %v3054 = vrot.slane %v3041, 6
    %v3055 = vrot.slane %v3043, 7
    %v3056 = vrot.slane %v3043, 1
    %v3057 = vrot.slane %v3043, 2
    %v3058 = vrot.slane %v3043, 3
    %v3059 = vrot.slane %v3043, 4
    %v3060 = vrot.slane %v3043, 5
    %v3061 = vrot.slane %v3043, 6
    %v3062 = vrot.slane %v3045, 7
    %v3079 = vadd.f32 %v3024, %v3041
    %v3080 = vadd.f32 %v3025, %v3049
    %v3081 = vadd.f32 %v3026, %v3050
    %v3082 = vadd.f32 %v3027, %v3051
    %v3083 = vadd.f32 %v3028, %v3052
    %v3084 = vadd.f32 %v3029, %v3053
    %v3085 = vadd.f32 %v3030, %v3054
    %v3086 = vadd.f32 %v3031, %v3055
    %v3087 = vadd.f32 %v3032, %v3043
    %v3088 = vadd.f32 %v3033, %v3056
    %v3089 = vadd.f32 %v3034, %v3057
    %v3090 = vadd.f32 %v3035, %v3058
    %v3091 = vadd.f32 %v3036, %v3059
    %v3092 = vadd.f32 %v3037, %v3060
    %v3093 = vadd.f32 %v3038, %v3061
    %v3094 = vadd.f32 %v3039, %v3062
    %v3095 = vsel %vm810, %v3079, 0.0
    %v3096 = vsel %vm811, %v3080, 0.0
    %v3097 = vsel %vm812, %v3081, 0.0
    %v3098 = vsel %vm813, %v3082, 0.0
    %v3099 = vsel %vm814, %v3083, 0.0
    %v3100 = vsel %vm815, %v3084, 0.0
    %v3101 = vsel %vm816, %v3085, 0.0
    %v3102 = vsel %vm817, %v3086, 0.0
    %v3103 = vsel %vm818, %v3087, 0.0
    %v3104 = vsel %vm819, %v3088, 0.0
    %v3105 = vsel %vm820, %v3089, 0.0
    %v3106 = vsel %vm821, %v3090, 0.0
    %v3107 = vsel %vm822, %v3091, 0.0
    %v3108 = vsel %vm823, %v3092, 0.0
    %v3109 = vsel %vm824, %v3093, 0.0
    %v3110 = vsel %vm825, %v3094, 0.0
    %v3127 = vrot.slane %v3096, 7
    %v3128 = vsel %vm958, %v3127, %v3095
    %v3129 = vrot.slane %v3097, 6
    %v3130 = vsel %vm961, %v3129, %v3128
    %v3131 = vrot.slane %v3098, 5
    %v3132 = vsel %vm964, %v3131, %v3130
    %v3133 = vrot.slane %v3099, 4
    %v3134 = vsel %vm967, %v3133, %v3132
    %v3135 = vrot.slane %v3100, 3
    %v3136 = vsel %vm970, %v3135, %v3134
    %v3137 = vrot.slane %v3101, 2
    %v3138 = vsel %vm973, %v3137, %v3136
    %v3139 = vrot.slane %v3102, 1
    %v3140 = vsel %vm955, %v3103, %v3139
    %v3141 = vrot.slane %v3104, 7
    %v3142 = vsel %vm958, %v3141, %v3140
    %v3143 = vrot.slane %v3105, 6
    %v3144 = vsel %vm961, %v3143, %v3142
    %v3145 = vrot.slane %v3106, 5
    %v3146 = vsel %vm964, %v3145, %v3144
    %v3147 = vrot.slane %v3107, 4
    %v3148 = vsel %vm967, %v3147, %v3146
    %v3149 = vrot.slane %v3108, 3
    %v3150 = vsel %vm970, %v3149, %v3148
    %v3151 = vrot.slane %v3109, 2
    %v3152 = vsel %vm973, %v3151, %v3150
    %v3153 = vrot.slane %v3110, 1
    %v3157 = vsel %vm2765, %v3138, -inf
    %3158 = vmax.xlane.f32.xlu0 %v3157
    %v3159 = vpop.xlane.xlu0 %3158
    %v3160 = vsel %vm991, %v3152, -inf
    %3161 = vmax.xlane.f32.xlu0 %v3160
    %v3162 = vpop.xlane.xlu0 %3161
    %v3163 = vsel %vm2772, %v3153, -inf
    %3164 = vmax.xlane.f32.xlu0 %v3163
    %v3165 = vpop.xlane.xlu0 %3164
    %v3169 = vrot.slane %v3159, 1
    %v3170 = vrot.slane %v3159, 2
    %v3171 = vrot.slane %v3159, 3
    %v3172 = vrot.slane %v3159, 4
    %v3173 = vrot.slane %v3159, 5
    %v3174 = vrot.slane %v3159, 6
    %v3175 = vrot.slane %v3162, 7
    %v3176 = vrot.slane %v3162, 1
    %v3177 = vrot.slane %v3162, 2
    %v3178 = vrot.slane %v3162, 3
    %v3179 = vrot.slane %v3162, 4
    %v3180 = vrot.slane %v3162, 5
    %v3181 = vrot.slane %v3162, 6
    %v3182 = vrot.slane %v3165, 7
    %vm3199 = vcmp.ge.f32.partialorder %v3095, %v3159
    %vm3200 = vcmp.ge.f32.partialorder %v3096, %v3169
    %vm3201 = vcmp.ge.f32.partialorder %v3097, %v3170
    %vm3202 = vcmp.ge.f32.partialorder %v3098, %v3171
    %vm3203 = vcmp.ge.f32.partialorder %v3099, %v3172
    %vm3204 = vcmp.ge.f32.partialorder %v3100, %v3173
    %vm3205 = vcmp.ge.f32.partialorder %v3101, %v3174
    %vm3206 = vcmp.ge.f32.partialorder %v3102, %v3175
    %vm3207 = vcmp.ge.f32.partialorder %v3103, %v3162
    %vm3208 = vcmp.ge.f32.partialorder %v3104, %v3176
    %vm3209 = vcmp.ge.f32.partialorder %v3105, %v3177
    %vm3210 = vcmp.ge.f32.partialorder %v3106, %v3178
    %vm3211 = vcmp.ge.f32.partialorder %v3107, %v3179
    %vm3212 = vcmp.ge.f32.partialorder %v3108, %v3180
    %vm3213 = vcmp.ge.f32.partialorder %v3109, %v3181
    %vm3214 = vcmp.ge.f32.partialorder %v3110, %v3182
    %v3215 = vsel %vm3199, %v68, 1073741824
    %v3216 = vsel %vm3200, %v68, 1073741824
    %v3217 = vsel %vm3201, %v68, 1073741824
    %v3218 = vsel %vm3202, %v68, 1073741824
    %v3219 = vsel %vm3203, %v68, 1073741824
    %v3220 = vsel %vm3204, %v68, 1073741824
    %v3221 = vsel %vm3205, %v68, 1073741824
    %v3222 = vsel %vm3206, %v68, 1073741824
    %v3223 = vsel %vm3207, %v68, 1073741824
    %v3224 = vsel %vm3208, %v68, 1073741824
    %v3225 = vsel %vm3209, %v68, 1073741824
    %v3226 = vsel %vm3210, %v68, 1073741824
    %v3227 = vsel %vm3211, %v68, 1073741824
    %v3228 = vsel %vm3212, %v68, 1073741824
    %v3229 = vsel %vm3213, %v68, 1073741824
    %v3230 = vsel %vm3214, %v68, 1073741824
    %v3231 = vrot.slane %v3216, 7
    %v3232 = vsel %vm958, %v3231, %v3215
    %v3233 = vrot.slane %v3217, 6
    %v3234 = vsel %vm961, %v3233, %v3232
    %v3235 = vrot.slane %v3218, 5
    %v3236 = vsel %vm964, %v3235, %v3234
    %v3237 = vrot.slane %v3219, 4
    %v3238 = vsel %vm967, %v3237, %v3236
    %v3239 = vrot.slane %v3220, 3
    %v3240 = vsel %vm970, %v3239, %v3238
    %v3241 = vrot.slane %v3221, 2
    %v3242 = vsel %vm973, %v3241, %v3240
    %v3243 = vrot.slane %v3222, 1
    %v3244 = vsel %vm955, %v3223, %v3243
    %v3245 = vrot.slane %v3224, 7
    %v3246 = vsel %vm958, %v3245, %v3244
    %v3247 = vrot.slane %v3225, 6
    %v3248 = vsel %vm961, %v3247, %v3246
    %v3249 = vrot.slane %v3226, 5
    %v3250 = vsel %vm964, %v3249, %v3248
    %v3251 = vrot.slane %v3227, 4
    %v3252 = vsel %vm967, %v3251, %v3250
    %v3253 = vrot.slane %v3228, 3
    %v3254 = vsel %vm970, %v3253, %v3252
    %v3255 = vrot.slane %v3229, 2
    %v3256 = vsel %vm973, %v3255, %v3254
    %v3257 = vrot.slane %v3230, 1
    %v3258 = vsel %vm2765, %v3242, 2147483647
    %v3259 = vand.u32 %v3258, 65535
    %v3260 = vshra.s32 %v3258, 16
    %v3261 = vcvt.s32.f32 %v3259
    %v3262 = vcvt.s32.f32 %v3260
    %3263 = vmin.xlane.f32.xlu0 %v3262
    %v3264 = vpop.xlane.xlu0 %3263
    %vm3265 = vcmp.eq.f32.partialorder %v3262, %v3264
    %v3266 = vsel %vm3265, %v3261, inf
    %3267 = vmin.xlane.f32.xlu0 %v3266
    %v3268 = vpop.xlane.xlu0 %3267
    %v3269 = vcvt.f32.s32 %v3268
    %v3270 = vcvt.f32.s32 %v3264
    %v3271 = vshll.u32 %v3270, 16
    %v3272 = vadd.s32 %v3271, %v3269
    %v3273 = vsel %vm991, %v3256, 2147483647
    %v3274 = vand.u32 %v3273, 65535
    %v3275 = vshra.s32 %v3273, 16
    %v3276 = vcvt.s32.f32 %v3274
    %v3277 = vcvt.s32.f32 %v3275
    %3278 = vmin.xlane.f32.xlu0 %v3277
    %v3279 = vpop.xlane.xlu0 %3278
    %vm3280 = vcmp.eq.f32.partialorder %v3277, %v3279
    %v3281 = vsel %vm3280, %v3276, inf
    %3282 = vmin.xlane.f32.xlu0 %v3281
    %v3283 = vpop.xlane.xlu0 %3282
    %v3284 = vcvt.f32.s32 %v3283
    %v3285 = vcvt.f32.s32 %v3279
    %v3286 = vshll.u32 %v3285, 16
    %v3287 = vadd.s32 %v3286, %v3284
    %v3288 = vsel %vm2772, %v3257, 2147483647
    %v3289 = vand.u32 %v3288, 65535
    %v3290 = vshra.s32 %v3288, 16
    %v3291 = vcvt.s32.f32 %v3289
    %v3292 = vcvt.s32.f32 %v3290
    %3293 = vmin.xlane.f32.xlu0 %v3292
    %v3294 = vpop.xlane.xlu0 %3293
    %vm3295 = vcmp.eq.f32.partialorder %v3292, %v3294
    %v3296 = vsel %vm3295, %v3291, inf
    %3297 = vmin.xlane.f32.xlu0 %v3296
    %v3298 = vpop.xlane.xlu0 %3297
    %v3299 = vcvt.f32.s32 %v3298
    %v3300 = vcvt.f32.s32 %v3294
    %v3301 = vshll.u32 %v3300, 16
    %v3302 = vadd.s32 %v3301, %v3299
    %vm3303 = vcmp.eq.s32.totalorder %v68, %v3272
    %vm3304 = vcmp.eq.s32.totalorder %v68, %v3287
    %vm3305 = vcmp.eq.s32.totalorder %v68, %v3302
    %v3306 = vsel %vm3303, 1, 0
    %v3307 = vsel %vm3304, 1, 0
    %v3308 = vsel %vm3305, 1, 0
    %v3309 = vcvt.s32.f32 %v3306
    %v3310 = vcvt.s32.f32 %v3307
    %v3311 = vcvt.s32.f32 %v3308
    %v3312 = vlaneseq
    %v3313 = vshrl.u32 %v3312, 7
    %v3314 = vsub.s32 1, %v3313
    %v3315 = vrot.slane %v3309, %v3314
    %3317 = vbcast.lane.b32.xlu0 %v3315, 256
    %v3318 = vpop.permute.xlu0 %3317
    %v3319 = vlaneseq
    %v3320 = vshrl.u32 %v3319, 7
    %v3321 = vsub.s32 2, %v3320
    %v3322 = vrot.slane %v3309, %v3321
    %3324 = vbcast.lane.b32.xlu0 %v3322, 256
    %v3325 = vpop.permute.xlu0 %3324
    %v3326 = vlaneseq
    %v3327 = vshrl.u32 %v3326, 7
    %v3328 = vsub.s32 3, %v3327
    %v3329 = vrot.slane %v3309, %v3328
    %3331 = vbcast.lane.b32.xlu0 %v3329, 256
    %v3332 = vpop.permute.xlu0 %3331
    %v3333 = vlaneseq
    %v3334 = vshrl.u32 %v3333, 7
    %v3335 = vsub.s32 4, %v3334
    %v3336 = vrot.slane %v3309, %v3335
    %3338 = vbcast.lane.b32.xlu0 %v3336, 256
    %v3339 = vpop.permute.xlu0 %3338
    %v3340 = vlaneseq
    %v3341 = vshrl.u32 %v3340, 7
    %v3342 = vsub.s32 5, %v3341
    %v3343 = vrot.slane %v3309, %v3342
    %3345 = vbcast.lane.b32.xlu0 %v3343, 256
    %v3346 = vpop.permute.xlu0 %3345
    %v3347 = vlaneseq
    %v3348 = vshrl.u32 %v3347, 7
    %v3349 = vsub.s32 6, %v3348
    %v3350 = vrot.slane %v3309, %v3349
    %3352 = vbcast.lane.b32.xlu0 %v3350, 256
    %v3353 = vpop.permute.xlu0 %3352
    %v3354 = vlaneseq
    %v3355 = vshrl.u32 %v3354, 7
    %v3356 = vsub.s32 7, %v3355
    %v3357 = vrot.slane %v3309, %v3356
    %3359 = vbcast.lane.b32.xlu0 %v3357, 256
    %v3360 = vpop.permute.xlu0 %3359
    %v3361 = vlaneseq
    %v3362 = vshrl.u32 %v3361, 7
    %v3363 = vsub.s32 0, %v3362
    %v3364 = vrot.slane %v3310, %v3363
    %3366 = vbcast.lane.b32.xlu0 %v3364, 256
    %v3367 = vpop.permute.xlu0 %3366
    %v3368 = vlaneseq
    %v3369 = vshrl.u32 %v3368, 7
    %v3370 = vsub.s32 1, %v3369
    %v3371 = vrot.slane %v3310, %v3370
    %3373 = vbcast.lane.b32.xlu0 %v3371, 256
    %v3374 = vpop.permute.xlu0 %3373
    %v3375 = vlaneseq
    %v3376 = vshrl.u32 %v3375, 7
    %v3377 = vsub.s32 2, %v3376
    %v3378 = vrot.slane %v3310, %v3377
    %3380 = vbcast.lane.b32.xlu0 %v3378, 256
    %v3381 = vpop.permute.xlu0 %3380
    %v3382 = vlaneseq
    %v3383 = vshrl.u32 %v3382, 7
    %v3384 = vsub.s32 3, %v3383
    %v3385 = vrot.slane %v3310, %v3384
    %3387 = vbcast.lane.b32.xlu0 %v3385, 256
    %v3388 = vpop.permute.xlu0 %3387
    %v3389 = vlaneseq
    %v3390 = vshrl.u32 %v3389, 7
    %v3391 = vsub.s32 4, %v3390
    %v3392 = vrot.slane %v3310, %v3391
    %3394 = vbcast.lane.b32.xlu0 %v3392, 256
    %v3395 = vpop.permute.xlu0 %3394
    %v3396 = vlaneseq
    %v3397 = vshrl.u32 %v3396, 7
    %v3398 = vsub.s32 5, %v3397
    %v3399 = vrot.slane %v3310, %v3398
    %3401 = vbcast.lane.b32.xlu0 %v3399, 256
    %v3402 = vpop.permute.xlu0 %3401
    %v3403 = vlaneseq
    %v3404 = vshrl.u32 %v3403, 7
    %v3405 = vsub.s32 6, %v3404
    %v3406 = vrot.slane %v3310, %v3405
    %3408 = vbcast.lane.b32.xlu0 %v3406, 256
    %v3409 = vpop.permute.xlu0 %3408
    %v3410 = vlaneseq
    %v3411 = vshrl.u32 %v3410, 7
    %v3412 = vsub.s32 7, %v3411
    %v3413 = vrot.slane %v3310, %v3412
    %3415 = vbcast.lane.b32.xlu0 %v3413, 256
    %v3416 = vpop.permute.xlu0 %3415
    %v3417 = vlaneseq
    %v3418 = vshrl.u32 %v3417, 7
    %v3419 = vsub.s32 0, %v3418
    %v3420 = vrot.slane %v3311, %v3419
    %3422 = vbcast.lane.b32.xlu0 %v3420, 256
    %v3423 = vpop.permute.xlu0 %3422
    %v3424 = vmul.f32 %v69, %v3318
    %v3425 = vmul.f32 %v70, %v3325
    %v3426 = vmul.f32 %v71, %v3332
    %v3427 = vmul.f32 %v72, %v3339
    %v3428 = vmul.f32 %v73, %v3346
    %v3429 = vmul.f32 %v74, %v3353
    %v3430 = vmul.f32 %v75, %v3360
    %v3431 = vmul.f32 %v76, %v3367
    %v3432 = vmul.f32 %v77, %v3374
    %v3433 = vmul.f32 %v78, %v3381
    %v3434 = vmul.f32 %v79, %v3388
    %v3435 = vmul.f32 %v80, %v3395
    %v3436 = vmul.f32 %v81, %v3402
    %v3437 = vmul.f32 %v82, %v3409
    %v3438 = vmul.f32 %v83, %v3416
    %v3439 = vmul.f32 %v84, %v3423
    %v3440 = vsel %vm153, %v3424, 0.0
    %v3441 = vrot.slane %v3440, 4
    %v3442 = vadd.f32 %v3440, %v3441
    %v3443 = vrot.slane %v3442, 2
    %v3444 = vadd.f32 %v3442, %v3443
    %v3445 = vrot.slane %v3444, 1
    %v3446 = vadd.f32 %v3444, %v3445
    %v3447 = vsel %vm153, %v3425, 0.0
    %v3448 = vrot.slane %v3447, 4
    %v3449 = vadd.f32 %v3447, %v3448
    %v3450 = vrot.slane %v3449, 2
    %v3451 = vadd.f32 %v3449, %v3450
    %v3452 = vrot.slane %v3451, 1
    %v3453 = vadd.f32 %v3451, %v3452
    %v3454 = vsel %vm153, %v3426, 0.0
    %v3455 = vrot.slane %v3454, 4
    %v3456 = vadd.f32 %v3454, %v3455
    %v3457 = vrot.slane %v3456, 2
    %v3458 = vadd.f32 %v3456, %v3457
    %v3459 = vrot.slane %v3458, 1
    %v3460 = vadd.f32 %v3458, %v3459
    %v3461 = vsel %vm153, %v3427, 0.0
    %v3462 = vrot.slane %v3461, 4
    %v3463 = vadd.f32 %v3461, %v3462
    %v3464 = vrot.slane %v3463, 2
    %v3465 = vadd.f32 %v3463, %v3464
    %v3466 = vrot.slane %v3465, 1
    %v3467 = vadd.f32 %v3465, %v3466
    %v3468 = vsel %vm153, %v3428, 0.0
    %v3469 = vrot.slane %v3468, 4
    %v3470 = vadd.f32 %v3468, %v3469
    %v3471 = vrot.slane %v3470, 2
    %v3472 = vadd.f32 %v3470, %v3471
    %v3473 = vrot.slane %v3472, 1
    %v3474 = vadd.f32 %v3472, %v3473
    %v3475 = vsel %vm153, %v3429, 0.0
    %v3476 = vrot.slane %v3475, 4
    %v3477 = vadd.f32 %v3475, %v3476
    %v3478 = vrot.slane %v3477, 2
    %v3479 = vadd.f32 %v3477, %v3478
    %v3480 = vrot.slane %v3479, 1
    %v3481 = vadd.f32 %v3479, %v3480
    %v3482 = vsel %vm153, %v3430, 0.0
    %v3483 = vrot.slane %v3482, 4
    %v3484 = vadd.f32 %v3482, %v3483
    %v3485 = vrot.slane %v3484, 2
    %v3486 = vadd.f32 %v3484, %v3485
    %v3487 = vrot.slane %v3486, 1
    %v3488 = vadd.f32 %v3486, %v3487
    %v3489 = vsel %vm153, %v3431, 0.0
    %v3490 = vrot.slane %v3489, 4
    %v3491 = vadd.f32 %v3489, %v3490
    %v3492 = vrot.slane %v3491, 2
    %v3493 = vadd.f32 %v3491, %v3492
    %v3494 = vrot.slane %v3493, 1
    %v3495 = vadd.f32 %v3493, %v3494
    %v3496 = vsel %vm153, %v3432, 0.0
    %v3497 = vrot.slane %v3496, 4
    %v3498 = vadd.f32 %v3496, %v3497
    %v3499 = vrot.slane %v3498, 2
    %v3500 = vadd.f32 %v3498, %v3499
    %v3501 = vrot.slane %v3500, 1
    %v3502 = vadd.f32 %v3500, %v3501
    %v3503 = vsel %vm153, %v3433, 0.0
    %v3504 = vrot.slane %v3503, 4
    %v3505 = vadd.f32 %v3503, %v3504
    %v3506 = vrot.slane %v3505, 2
    %v3507 = vadd.f32 %v3505, %v3506
    %v3508 = vrot.slane %v3507, 1
    %v3509 = vadd.f32 %v3507, %v3508
    %v3510 = vsel %vm153, %v3434, 0.0
    %v3511 = vrot.slane %v3510, 4
    %v3512 = vadd.f32 %v3510, %v3511
    %v3513 = vrot.slane %v3512, 2
    %v3514 = vadd.f32 %v3512, %v3513
    %v3515 = vrot.slane %v3514, 1
    %v3516 = vadd.f32 %v3514, %v3515
    %v3517 = vsel %vm153, %v3435, 0.0
    %v3518 = vrot.slane %v3517, 4
    %v3519 = vadd.f32 %v3517, %v3518
    %v3520 = vrot.slane %v3519, 2
    %v3521 = vadd.f32 %v3519, %v3520
    %v3522 = vrot.slane %v3521, 1
    %v3523 = vadd.f32 %v3521, %v3522
    %v3524 = vsel %vm153, %v3436, 0.0
    %v3525 = vrot.slane %v3524, 4
    %v3526 = vadd.f32 %v3524, %v3525
    %v3527 = vrot.slane %v3526, 2
    %v3528 = vadd.f32 %v3526, %v3527
    %v3529 = vrot.slane %v3528, 1
    %v3530 = vadd.f32 %v3528, %v3529
    %v3531 = vsel %vm153, %v3437, 0.0
    %v3532 = vrot.slane %v3531, 4
    %v3533 = vadd.f32 %v3531, %v3532
    %v3534 = vrot.slane %v3533, 2
    %v3535 = vadd.f32 %v3533, %v3534
    %v3536 = vrot.slane %v3535, 1
    %v3537 = vadd.f32 %v3535, %v3536
    %v3538 = vsel %vm153, %v3438, 0.0
    %v3539 = vrot.slane %v3538, 4
    %v3540 = vadd.f32 %v3538, %v3539
    %v3541 = vrot.slane %v3540, 2
    %v3542 = vadd.f32 %v3540, %v3541
    %v3543 = vrot.slane %v3542, 1
    %v3544 = vadd.f32 %v3542, %v3543
    %v3545 = vsel %vm153, %v3439, 0.0
    %v3546 = vrot.slane %v3545, 4
    %v3547 = vadd.f32 %v3545, %v3546
    %v3548 = vrot.slane %v3547, 2
    %v3549 = vadd.f32 %v3547, %v3548
    %v3550 = vrot.slane %v3549, 1
    %v3551 = vadd.f32 %v3549, %v3550
    %v3552 = vpack.c.bf16 %v3446, %v3446
    %v3553 = vpack.c.bf16 %v3453, %v3453
    %v3554 = vpack.c.bf16 %v3460, %v3460
    %v3555 = vpack.c.bf16 %v3467, %v3467
    %v3556 = vpack.c.bf16 %v3474, %v3474
    %v3557 = vpack.c.bf16 %v3481, %v3481
    %v3558 = vpack.c.bf16 %v3488, %v3488
    %v3559 = vpack.c.bf16 %v3495, %v3495
    %v3560 = vpack.c.bf16 %v3502, %v3502
    %v3561 = vpack.c.bf16 %v3509, %v3509
    %v3562 = vpack.c.bf16 %v3516, %v3516
    %v3563 = vpack.c.bf16 %v3523, %v3523
    %v3564 = vpack.c.bf16 %v3530, %v3530
    %v3565 = vpack.c.bf16 %v3537, %v3537
    %v3566 = vpack.c.bf16 %v3544, %v3544
    %v3567 = vpack.c.bf16 %v3551, %v3551
    %v3584 = vunpack.c.l.b16 %v3552
    %v3585 = vunpack.c.l.b16 %v3553
    %v3586 = vunpack.c.l.b16 %v3554
    %v3587 = vunpack.c.l.b16 %v3555
    %v3588 = vunpack.c.l.b16 %v3556
    %v3589 = vunpack.c.l.b16 %v3557
    %v3590 = vunpack.c.l.b16 %v3558
    %v3591 = vunpack.c.l.b16 %v3559
    %v3592 = vunpack.c.l.b16 %v3560
    %v3593 = vunpack.c.l.b16 %v3561
    %v3594 = vunpack.c.l.b16 %v3562
    %v3595 = vunpack.c.l.b16 %v3563
    %v3596 = vunpack.c.l.b16 %v3564
    %v3597 = vunpack.c.l.b16 %v3565
    %v3598 = vunpack.c.l.b16 %v3566
    %v3599 = vunpack.c.l.b16 %v3567
    %v3600 = vsel %vm955, %v3585, %v3584
    %v3601 = vsel %vm958, %v3586, %v3600
    %v3602 = vsel %vm961, %v3587, %v3601
    %v3603 = vsel %vm964, %v3588, %v3602
    %v3604 = vsel %vm967, %v3589, %v3603
    %v3605 = vsel %vm970, %v3590, %v3604
    %v3606 = vsel %vm973, %v3591, %v3605
    %v3607 = vsel %vm955, %v3593, %v3592
    %v3608 = vsel %vm958, %v3594, %v3607
    %v3609 = vsel %vm961, %v3595, %v3608
    %v3610 = vsel %vm964, %v3596, %v3609
    %v3611 = vsel %vm967, %v3597, %v3610
    %v3612 = vsel %vm970, %v3598, %v3611
    %v3613 = vsel %vm973, %v3599, %v3612
    %v3614 = vpack.c.b16 %v3613, %v3606
    %v3616 = vsel %vm153, %v3614, 0
    %3618 = vmatprep.subr.bf16.mxu0 0
    %3619 = vmatpush1.bf16.msra.mxu0 0
    %3620 = vmatprep.subr.bf16.mxu0 0
    %3621 = vmatpush1.bf16.msra.mxu0 0
    %3622 = vmatprep.subr.bf16.mxu0 0
    %3623 = vmatpush1.bf16.msra.mxu0 0
    %3624 = vmatprep.subr.bf16.mxu0 0
    %3625 = vmatpush1.bf16.msra.mxu0 0
    %3626 = vmatprep.subr.bf16.mxu0 0
    %3627 = vmatpush1.bf16.msra.mxu0 0
    %3628 = vmatprep.subr.bf16.mxu0 0
    %3629 = vmatpush1.bf16.msra.mxu0 0
    %3630 = vmatprep.subr.bf16.mxu0 0
    %3631 = vmatpush1.bf16.msra.mxu0 %v1846
    %3632 = vmatprep.subr.bf16.mxu0 0
    %3633 = vmatpush1.bf16.msra.mxu0 %v1845
    %3634 = vmatprep.subr.bf16.mxu0 0
    %3635 = vmatpush2.bf16.msra.mxu0 0
    %3636 = vmatprep.subr.bf16.mxu0 0
    %3637 = vmatpush2.bf16.msra.mxu0 0
    %3638 = vmatprep.subr.bf16.mxu0 0
    %3639 = vmatpush2.bf16.msra.mxu0 0
    %3640 = vmatprep.subr.bf16.mxu0 0
    %3641 = vmatpush2.bf16.msra.mxu0 0
    %3642 = vmatprep.subr.bf16.mxu0 0
    %3643 = vmatpush2.bf16.msra.mxu0 0
    %3644 = vmatprep.subr.bf16.mxu0 0
    %3645 = vmatpush2.bf16.msra.mxu0 0
    %3646 = vmatprep.subr.bf16.mxu0 0
    %3647 = vmatpush2.bf16.msra.mxu0 0
    %3648 = vmatprep.subr.bf16.mxu0 0
    %3649 = vmatpush2.bf16.msra.mxu0 0
    %3650 = vmatprep.mubr.bf16.mxu0 0
    %3651 = vmatmul.mubr.bf16.gmra.mxu0 %v3616
    %v3652 = vpop.f32.mrf.mxu0
    %v3653 = vadd.f32 %v1789, %v3652
    %v3654 = vpop.f32.mrf.mxu0
    %v3655 = vpop.f32.mrf.mxu0
    %v3656 = vadd.f32 %v1789, %v3655
    %v3657 = vpop.f32.mrf.mxu0
    %3658 = vdwg.mxu0
    %3659 = vmatprep.subr.bf16.mxu0 0
    %3660 = vmatpush1.bf16.msra.mxu0 0
    %3661 = vmatprep.subr.bf16.mxu0 0
    %3662 = vmatpush1.bf16.msra.mxu0 0
    %3663 = vmatprep.subr.bf16.mxu0 0
    %3664 = vmatpush1.bf16.msra.mxu0 0
    %3665 = vmatprep.subr.bf16.mxu0 0
    %3666 = vmatpush1.bf16.msra.mxu0 0
    %3667 = vmatprep.subr.bf16.mxu0 0
    %3668 = vmatpush1.bf16.msra.mxu0 0
    %3669 = vmatprep.subr.bf16.mxu0 0
    %3670 = vmatpush1.bf16.msra.mxu0 0
    %3671 = vmatprep.subr.bf16.mxu0 0
    %3672 = vmatpush1.bf16.msra.mxu0 %v1906
    %3673 = vmatprep.subr.bf16.mxu0 0
    %3674 = vmatpush1.bf16.msra.mxu0 %v1905
    %3675 = vmatprep.subr.bf16.mxu0 0
    %3676 = vmatpush2.bf16.msra.mxu0 0
    %3677 = vmatprep.subr.bf16.mxu0 0
    %3678 = vmatpush2.bf16.msra.mxu0 0
    %3679 = vmatprep.subr.bf16.mxu0 0
    %3680 = vmatpush2.bf16.msra.mxu0 0
    %3681 = vmatprep.subr.bf16.mxu0 0
    %3682 = vmatpush2.bf16.msra.mxu0 0
    %3683 = vmatprep.subr.bf16.mxu0 0
    %3684 = vmatpush2.bf16.msra.mxu0 0
    %3685 = vmatprep.subr.bf16.mxu0 0
    %3686 = vmatpush2.bf16.msra.mxu0 0
    %3687 = vmatprep.subr.bf16.mxu0 0
    %3688 = vmatpush2.bf16.msra.mxu0 0
    %3689 = vmatprep.subr.bf16.mxu0 0
    %3690 = vmatpush2.bf16.msra.mxu0 0
    %3691 = vmatprep.mubr.bf16.mxu0 0
    %3692 = vmatmul.mubr.bf16.gmra.mxu0 %v2045
    %v3693 = vpop.f32.mrf.mxu0
    %v3694 = vadd.f32 %v1896, %v3693
    %v3695 = vpop.f32.mrf.mxu0
    %v3696 = vpop.f32.mrf.mxu0
    %v3697 = vadd.f32 %v1896, %v3696
    %v3698 = vpop.f32.mrf.mxu0
    %3699 = vdwg.mxu0
    %v3700 = vadd.f32 %v3653, %v3694
    %v3701 = vadd.f32 %v3656, %v3697
    %v3702 = vxor.u32 %v3700, 2147483648
    %v3703 = vxor.u32 %v3701, 2147483648
    %v3704 = vmul.f32 %v3702, 1.442695
    %v3705 = vpow.pop %v3704
    %v3706 = vmul.f32 %v3703, 1.442695
    %v3707 = vpow.pop %v3706
    %v3708 = vadd.f32 %v3705, 1.0
    %v3709 = vadd.f32 %v3707, 1.0
    %v3710 = vrcp.pop %v3708
    %v3711 = vmul.f32 1.0, %v3710
    %v3712 = vrcp.pop %v3709
    %v3713 = vmul.f32 1.0, %v3712
    %3716 = vrot.lane.b32.xlu0 %v3694, 64
    %v3717 = vpop.permute.xlu0 %3716
    %3718 = vrot.lane.b32.xlu0 %v3697, 64
    %v3719 = vpop.permute.xlu0 %3718
    %v3722 = vmul.f32 %v3711, %v3717
    %v3723 = vmul.f32 %v3713, %v3719
    %3726 = vrot.lane.b32.xlu0 %v3722, 64
    %v3727 = vpop.permute.xlu0 %3726
    %3728 = vrot.lane.b32.xlu0 %v3723, 64
    %v3729 = vpop.permute.xlu0 %3728
    %v3732 = vadd.f32 %v3653, %v3727
    %v3733 = vadd.f32 %v3656, %v3729
    %v3734 = vtanh.pop %v3732
    %v3735 = vtanh.pop %v3733
    %v3736 = vsub.f32 1.0, %v3711
    %v3737 = vsub.f32 1.0, %v3713
    %3740 = vrot.lane.b32.xlu0 %v3734, 96
    %v3741 = vpop.permute.xlu0 %3740
    %3742 = vrot.lane.b32.xlu0 %v3735, 96
    %v3743 = vpop.permute.xlu0 %3742
    %v3746 = vmul.f32 %v3736, %v3741
    %v3747 = vmul.f32 %v3737, %v3743
    %v3748 = vmul.f32 %v3711, %v2008
    %v3749 = vmul.f32 %v3713, %v2009
    %v3750 = vadd.f32 %v3746, %v3748
    %v3751 = vadd.f32 %v3747, %v3749
    %v3755 = vrot.slane %v3309, 7
    %v3756 = vrot.slane %v3309, 1
    %v3757 = vrot.slane %v3309, 2
    %v3758 = vrot.slane %v3309, 3
    %v3759 = vrot.slane %v3309, 4
    %v3760 = vrot.slane %v3309, 5
    %v3761 = vrot.slane %v3310, 6
    %v3762 = vrot.slane %v3310, 7
    %v3763 = vrot.slane %v3310, 1
    %v3764 = vrot.slane %v3310, 2
    %v3765 = vrot.slane %v3310, 3
    %v3766 = vrot.slane %v3310, 4
    %v3767 = vrot.slane %v3310, 5
    %v3768 = vrot.slane %v3311, 6
    %v3785 = vmul.f32 %v51, %v3755
    %v3786 = vmul.f32 %v52, %v3309
    %v3787 = vmul.f32 %v53, %v3756
    %v3788 = vmul.f32 %v54, %v3757
    %v3789 = vmul.f32 %v55, %v3758
    %v3790 = vmul.f32 %v56, %v3759
    %v3791 = vmul.f32 %v57, %v3760
    %v3792 = vmul.f32 %v58, %v3761
    %v3793 = vmul.f32 %v59, %v3762
    %v3794 = vmul.f32 %v60, %v3310
    %v3795 = vmul.f32 %v61, %v3763
    %v3796 = vmul.f32 %v62, %v3764
    %v3797 = vmul.f32 %v63, %v3765
    %v3798 = vmul.f32 %v64, %v3766
    %v3799 = vmul.f32 %v65, %v3767
    %v3800 = vmul.f32 %v66, %v3768
    %v3817 = vrot.slane %v3786, 7
    %v3818 = vsel %vm961, %v3817, %v3785
    %v3819 = vrot.slane %v3787, 6
    %v3820 = vsel %vm964, %v3819, %v3818
    %v3821 = vrot.slane %v3788, 5
    %v3822 = vsel %vm967, %v3821, %v3820
    %v3823 = vrot.slane %v3789, 4
    %v3824 = vsel %vm970, %v3823, %v3822
    %v3825 = vrot.slane %v3790, 3
    %v3826 = vsel %vm973, %v3825, %v3824
    %v3827 = vrot.slane %v3791, 2
    %v3828 = vrot.slane %v3792, 1
    %v3829 = vsel %vm955, %v3828, %v3827
    %v3830 = vsel %vm958, %v3793, %v3829
    %v3831 = vrot.slane %v3794, 7
    %v3832 = vsel %vm961, %v3831, %v3830
    %v3833 = vrot.slane %v3795, 6
    %v3834 = vsel %vm964, %v3833, %v3832
    %v3835 = vrot.slane %v3796, 5
    %v3836 = vsel %vm967, %v3835, %v3834
    %v3837 = vrot.slane %v3797, 4
    %v3838 = vsel %vm970, %v3837, %v3836
    %v3839 = vrot.slane %v3798, 3
    %v3840 = vsel %vm973, %v3839, %v3838
    %v3841 = vrot.slane %v3799, 2
    %v3842 = vrot.slane %v3800, 1
    %v3843 = vsel %vm955, %v3842, %v3841
    %vm3847 = vcmask 64514
    %v3848 = vsel %vm3847, %v3826, 0.0
    %3849 = vadd.xlane.f32.xlu0 %v3848
    %v3850 = vpop.xlane.xlu0 %3849
    %v3851 = vsel %vm991, %v3840, 0.0
    %3852 = vadd.xlane.f32.xlu0 %v3851
    %v3853 = vpop.xlane.xlu0 %3852
    %vm3854 = vcmask 58368
    %v3855 = vsel %vm3854, %v3843, 0.0
    %3856 = vadd.xlane.f32.xlu0 %v3855
    %v3857 = vpop.xlane.xlu0 %3856
    %vm3858 = vcmp.gt.f32.partialorder %v3850, 0.0
    %vm3859 = vcmp.gt.f32.partialorder %v3853, 0.0
    %vm3860 = vcmp.gt.f32.partialorder %v3857, 0.0
    %v3861 = vrot.slane %v3309, 6
    %v3862 = vrot.slane %v3311, 5
    %v3865 = vmul.f32 %v51, %v3861
    %v3866 = vmul.f32 %v52, %v3755
    %v3867 = vmul.f32 %v53, %v3309
    %v3868 = vmul.f32 %v54, %v3756
    %v3869 = vmul.f32 %v55, %v3757
    %v3870 = vmul.f32 %v56, %v3758
    %v3871 = vmul.f32 %v57, %v3759
    %v3872 = vmul.f32 %v58, %v3767
    %v3873 = vmul.f32 %v59, %v3761
    %v3874 = vmul.f32 %v60, %v3762
    %v3875 = vmul.f32 %v61, %v3310
    %v3876 = vmul.f32 %v62, %v3763
    %v3877 = vmul.f32 %v63, %v3764
    %v3878 = vmul.f32 %v64, %v3765
    %v3879 = vmul.f32 %v65, %v3766
    %v3880 = vmul.f32 %v66, %v3862
    %v3897 = vrot.slane %v3866, 7
    %v3898 = vsel %vm964, %v3897, %v3865
    %v3899 = vrot.slane %v3867, 6
    %v3900 = vsel %vm967, %v3899, %v3898
    %v3901 = vrot.slane %v3868, 5
    %v3902 = vsel %vm970, %v3901, %v3900
    %v3903 = vrot.slane %v3869, 4
    %v3904 = vsel %vm973, %v3903, %v3902
    %v3905 = vrot.slane %v3870, 3
    %v3906 = vrot.slane %v3871, 2
    %v3907 = vsel %vm955, %v3906, %v3905
    %v3908 = vrot.slane %v3872, 1
    %v3909 = vsel %vm958, %v3908, %v3907
    %v3910 = vsel %vm961, %v3873, %v3909
    %v3911 = vrot.slane %v3874, 7
    %v3912 = vsel %vm964, %v3911, %v3910
    %v3913 = vrot.slane %v3875, 6
    %v3914 = vsel %vm967, %v3913, %v3912
    %v3915 = vrot.slane %v3876, 5
    %v3916 = vsel %vm970, %v3915, %v3914
    %v3917 = vrot.slane %v3877, 4
    %v3918 = vsel %vm973, %v3917, %v3916
    %v3919 = vrot.slane %v3878, 3
    %v3920 = vrot.slane %v3879, 2
    %v3921 = vsel %vm955, %v3920, %v3919
    %v3922 = vrot.slane %v3880, 1
    %v3923 = vsel %vm958, %v3922, %v3921
    %vm3927 = vcmask 64515
    %v3928 = vsel %vm3927, %v3904, 0.0
    %3929 = vadd.xlane.f32.xlu0 %v3928
    %v3930 = vpop.xlane.xlu0 %3929
    %v3931 = vsel %vm991, %v3918, 0.0
    %3932 = vadd.xlane.f32.xlu0 %v3931
    %v3933 = vpop.xlane.xlu0 %3932
    %vm3934 = vcmask 59392
    %v3935 = vsel %vm3934, %v3923, 0.0
    %3936 = vadd.xlane.f32.xlu0 %v3935
    %v3937 = vpop.xlane.xlu0 %3936
    %v3938 = vsub.f32 1.0, %v1528
    %v3939 = vsub.f32 1.0, %v1529
    %v3942 = vrot.slane %v3938, 1
    %v3943 = vrot.slane %v3938, 2
    %v3944 = vrot.slane %v3938, 3
    %v3945 = vrot.slane %v3938, 4
    %v3946 = vrot.slane %v3938, 5
    %v3947 = vrot.slane %v3938, 6
    %v3948 = vrot.slane %v3938, 7
    %v3949 = vrot.slane %v3939, 1
    %v3950 = vrot.slane %v3939, 2
    %v3951 = vrot.slane %v3939, 3
    %v3952 = vrot.slane %v3939, 4
    %v3953 = vrot.slane %v3939, 5
    %v3954 = vrot.slane %v3939, 6
    %v3955 = vrot.slane %v3939, 7
    %v3972 = vmul.f32 %v51, %v3938
    %v3973 = vmul.f32 %v52, %v3942
    %v3974 = vmul.f32 %v53, %v3943
    %v3975 = vmul.f32 %v54, %v3944
    %v3976 = vmul.f32 %v55, %v3945
    %v3977 = vmul.f32 %v56, %v3946
    %v3978 = vmul.f32 %v57, %v3947
    %v3979 = vmul.f32 %v58, %v3948
    %v3980 = vmul.f32 %v59, %v3939
    %v3981 = vmul.f32 %v60, %v3949
    %v3982 = vmul.f32 %v61, %v3950
    %v3983 = vmul.f32 %v62, %v3951
    %v3984 = vmul.f32 %v63, %v3952
    %v3985 = vmul.f32 %v64, %v3953
    %v3986 = vmul.f32 %v65, %v3954
    %v3987 = vmul.f32 %v66, %v3955
    %v3988 = vld [vmem:[#allocation2 + $0x38] sm:$0xf]
    %v3989 = vld [vmem:[#allocation2 + $0x3c] sm:$0xf]
    %v3990 = vld [vmem:[#allocation2 + $0x40] sm:$0xf]
    %v3991 = vld [vmem:[#allocation2 + $0x44] sm:$0xf]
    %v3992 = vld [vmem:[#allocation2 + $0x80] sm:$0xf]
    %v3993 = vld [vmem:[#allocation2 + $0x84] sm:$0xf]
    %v3994 = vld [vmem:[#allocation2 + $0x88] sm:$0xf]
    %v3995 = vld [vmem:[#allocation2 + $0x8c] sm:$0xf]
    %v3996 = vld [vmem:[#allocation2 + $0x90] sm:$0x1]
    %v3997 = vunpack.c.l.bf16 %v3996
    %v3998 = vpack.c.bf16 %v3751, %v3750
    %4000 = vrot.lane.b32.xlu0 %v3998, 96
    %v4001 = vpop.permute.xlu0 %4000
    %v4006 = vunpack.c.l.b16 %v3988
    %v4007 = vunpack.c.l.b16 %v3989
    %v4008 = vunpack.c.l.b16 %v3990
    %v4009 = vunpack.c.l.b16 %v3991
    %v4010 = vpack.c.b16 %v4007, %v4006
    %v4011 = vpack.c.b16 %v4009, %v4008
    %4012 = vrot.lane.b32.xlu0 %v4010, 64
    %v4013 = vpop.permute.xlu0 %4012
    %4014 = vrot.lane.b32.xlu0 %v4011, 64
    %v4015 = vpop.permute.xlu0 %4014
    %4018 = vrot.lane.b32.xlu0 %v289, 64
    %v4019 = vpop.permute.xlu0 %4018
    %v4022 = vsel %vm153, %v4001, 0
    %4024 = vmatprep.subr.bf16.mxu0 0
    %4025 = vmatpush1.bf16.msra.mxu0 0
    %4026 = vmatprep.subr.bf16.mxu0 0
    %4027 = vmatpush1.bf16.msra.mxu0 0
    %4028 = vmatprep.subr.bf16.mxu0 0
    %4029 = vmatpush1.bf16.msra.mxu0 0
    %4030 = vmatprep.subr.bf16.mxu0 0
    %4031 = vmatpush1.bf16.msra.mxu0 0
    %4032 = vmatprep.subr.bf16.mxu0 0
    %4033 = vmatpush1.bf16.msra.mxu0 0
    %4034 = vmatprep.subr.bf16.mxu0 0
    %4035 = vmatpush1.bf16.msra.mxu0 0
    %4036 = vmatprep.subr.bf16.mxu0 0
    %4037 = vmatpush1.bf16.msra.mxu0 %v4015
    %4038 = vmatprep.subr.bf16.mxu0 0
    %4039 = vmatpush1.bf16.msra.mxu0 %v4013
    %4040 = vmatprep.subr.bf16.mxu0 0
    %4041 = vmatpush2.bf16.msra.mxu0 0
    %4042 = vmatprep.subr.bf16.mxu0 0
    %4043 = vmatpush2.bf16.msra.mxu0 0
    %4044 = vmatprep.subr.bf16.mxu0 0
    %4045 = vmatpush2.bf16.msra.mxu0 0
    %4046 = vmatprep.subr.bf16.mxu0 0
    %4047 = vmatpush2.bf16.msra.mxu0 0
    %4048 = vmatprep.subr.bf16.mxu0 0
    %4049 = vmatpush2.bf16.msra.mxu0 0
    %4050 = vmatprep.subr.bf16.mxu0 0
    %4051 = vmatpush2.bf16.msra.mxu0 0
    %4052 = vmatprep.subr.bf16.mxu0 0
    %4053 = vmatpush2.bf16.msra.mxu0 0
    %4054 = vmatprep.subr.bf16.mxu0 0
    %4055 = vmatpush2.bf16.msra.mxu0 0
    %4056 = vmatprep.mubr.bf16.mxu0 0
    %4057 = vmatmul.mubr.bf16.gmra.mxu0 %v4022
    %v4058 = vpop.f32.mrf.mxu0
    %v4059 = vadd.f32 %v4019, %v4058
    %v4060 = vpop.f32.mrf.mxu0
    %v4061 = vpop.f32.mrf.mxu0
    %v4062 = vadd.f32 %v4019, %v4061
    %v4063 = vpop.f32.mrf.mxu0
    %4064 = vdwg.mxu0
    %v4067 = vcombine.high %v4059, %v4059
    %v4069 = vunpack.c.l.s4 1966171168
    %v4070 = vunpack.c.0.s8 %v4069
    %v4071 = vlaneseq
    %v4072 = vshrl.u32 %v4071, 7
    %v4073 = vsub.s32 %v4070, %v4072
    %v4074 = vrot.slane %v4059, %v4073
    %v4076 = vunpack.c.l.s4 1966171168
    %v4077 = vunpack.c.0.s8 %v4076
    %v4078 = vlaneseq
    %v4079 = vshrl.u32 %v4078, 7
    %v4080 = vsub.s32 %v4077, %v4079
    %v4081 = vrot.slane %v4067, %v4080
    %v4082 = vcombine.high %v4074, %v4074
    %v4083 = vcombine.high %v4081, %v4081
    %v4085 = vunpack.c.l.s4 1966171168
    %v4086 = vunpack.c.0.s8 %v4085
    %v4087 = vlaneseq
    %v4088 = vshrl.u32 %v4087, 7
    %v4089 = vsub.s32 %v4086, %v4088
    %v4090 = vrot.slane %v4074, %v4089
    %v4092 = vunpack.c.l.s4 1966171168
    %v4093 = vunpack.c.0.s8 %v4092
    %v4094 = vlaneseq
    %v4095 = vshrl.u32 %v4094, 7
    %v4096 = vsub.s32 %v4093, %v4095
    %v4097 = vrot.slane %v4081, %v4096
    %v4099 = vunpack.c.l.s4 1966171168
    %v4100 = vunpack.c.0.s8 %v4099
    %v4101 = vlaneseq
    %v4102 = vshrl.u32 %v4101, 7
    %v4103 = vsub.s32 %v4100, %v4102
    %v4104 = vrot.slane %v4082, %v4103
    %v4106 = vunpack.c.l.s4 1966171168
    %v4107 = vunpack.c.0.s8 %v4106
    %v4108 = vlaneseq
    %v4109 = vshrl.u32 %v4108, 7
    %v4110 = vsub.s32 %v4107, %v4109
    %v4111 = vrot.slane %v4083, %v4110
    %v4112 = vcombine.high %v4090, %v4090
    %v4113 = vcombine.high %v4097, %v4097
    %v4114 = vcombine.high %v4104, %v4104
    %v4115 = vcombine.high %v4111, %v4111
    %v4116 = vcombine.high %v4062, %v4062
    %v4118 = vunpack.c.l.s4 1966171168
    %v4119 = vunpack.c.0.s8 %v4118
    %v4120 = vlaneseq
    %v4121 = vshrl.u32 %v4120, 7
    %v4122 = vsub.s32 %v4119, %v4121
    %v4123 = vrot.slane %v4062, %v4122
    %v4125 = vunpack.c.l.s4 1966171168
    %v4126 = vunpack.c.0.s8 %v4125
    %v4127 = vlaneseq
    %v4128 = vshrl.u32 %v4127, 7
    %v4129 = vsub.s32 %v4126, %v4128
    %v4130 = vrot.slane %v4116, %v4129
    %v4131 = vcombine.high %v4123, %v4123
    %v4132 = vcombine.high %v4130, %v4130
    %v4134 = vunpack.c.l.s4 1966171168
    %v4135 = vunpack.c.0.s8 %v4134
    %v4136 = vlaneseq
    %v4137 = vshrl.u32 %v4136, 7
    %v4138 = vsub.s32 %v4135, %v4137
    %v4139 = vrot.slane %v4123, %v4138
    %v4141 = vunpack.c.l.s4 1966171168
    %v4142 = vunpack.c.0.s8 %v4141
    %v4143 = vlaneseq
    %v4144 = vshrl.u32 %v4143, 7
    %v4145 = vsub.s32 %v4142, %v4144
    %v4146 = vrot.slane %v4130, %v4145
    %v4148 = vunpack.c.l.s4 1966171168
    %v4149 = vunpack.c.0.s8 %v4148
    %v4150 = vlaneseq
    %v4151 = vshrl.u32 %v4150, 7
    %v4152 = vsub.s32 %v4149, %v4151
    %v4153 = vrot.slane %v4131, %v4152
    %v4155 = vunpack.c.l.s4 1966171168
    %v4156 = vunpack.c.0.s8 %v4155
    %v4157 = vlaneseq
    %v4158 = vshrl.u32 %v4157, 7
    %v4159 = vsub.s32 %v4156, %v4158
    %v4160 = vrot.slane %v4132, %v4159
    %v4161 = vcombine.high %v4139, %v4139
    %v4162 = vcombine.high %v4146, %v4146
    %v4163 = vcombine.high %v4153, %v4153
    %v4164 = vcombine.high %v4160, %v4160
    %v4165 = vlaneseq
    %v4166 = vshrl.u32 %v4165, 7
    %v4167 = vsub.s32 0, %v4166
    %v4168 = vrot.slane %v4090, %v4167
    %v4169 = vlaneseq
    %v4170 = vshrl.u32 %v4169, 7
    %v4171 = vsub.s32 0, %v4170
    %v4172 = vrot.slane %v4104, %v4171
    %v4173 = vlaneseq
    %v4174 = vshrl.u32 %v4173, 7
    %v4175 = vsub.s32 0, %v4174
    %v4176 = vrot.slane %v4112, %v4175
    %v4177 = vlaneseq
    %v4178 = vshrl.u32 %v4177, 7
    %v4179 = vsub.s32 0, %v4178
    %v4180 = vrot.slane %v4114, %v4179
    %v4181 = vlaneseq
    %v4182 = vshrl.u32 %v4181, 7
    %v4183 = vsub.s32 0, %v4182
    %v4184 = vrot.slane %v4097, %v4183
    %v4185 = vlaneseq
    %v4186 = vshrl.u32 %v4185, 7
    %v4187 = vsub.s32 0, %v4186
    %v4188 = vrot.slane %v4111, %v4187
    %v4189 = vlaneseq
    %v4190 = vshrl.u32 %v4189, 7
    %v4191 = vsub.s32 0, %v4190
    %v4192 = vrot.slane %v4113, %v4191
    %v4193 = vlaneseq
    %v4194 = vshrl.u32 %v4193, 7
    %v4195 = vsub.s32 0, %v4194
    %v4196 = vrot.slane %v4115, %v4195
    %v4197 = vlaneseq
    %v4198 = vshrl.u32 %v4197, 7
    %v4199 = vsub.s32 0, %v4198
    %v4200 = vrot.slane %v4139, %v4199
    %v4201 = vlaneseq
    %v4202 = vshrl.u32 %v4201, 7
    %v4203 = vsub.s32 0, %v4202
    %v4204 = vrot.slane %v4153, %v4203
    %v4205 = vlaneseq
    %v4206 = vshrl.u32 %v4205, 7
    %v4207 = vsub.s32 0, %v4206
    %v4208 = vrot.slane %v4161, %v4207
    %v4209 = vlaneseq
    %v4210 = vshrl.u32 %v4209, 7
    %v4211 = vsub.s32 0, %v4210
    %v4212 = vrot.slane %v4163, %v4211
    %v4213 = vlaneseq
    %v4214 = vshrl.u32 %v4213, 7
    %v4215 = vsub.s32 0, %v4214
    %v4216 = vrot.slane %v4146, %v4215
    %v4217 = vlaneseq
    %v4218 = vshrl.u32 %v4217, 7
    %v4219 = vsub.s32 0, %v4218
    %v4220 = vrot.slane %v4160, %v4219
    %v4221 = vlaneseq
    %v4222 = vshrl.u32 %v4221, 7
    %v4223 = vsub.s32 0, %v4222
    %v4224 = vrot.slane %v4162, %v4223
    %v4225 = vlaneseq
    %v4226 = vshrl.u32 %v4225, 7
    %v4227 = vsub.s32 0, %v4226
    %v4228 = vrot.slane %v4164, %v4227
    %4229 = vrot.lane.b32.xlu0 %v4168, 64
    %v4230 = vpop.permute.xlu0 %4229
    %4231 = vrot.lane.b32.xlu0 %v4172, 64
    %v4232 = vpop.permute.xlu0 %4231
    %4233 = vrot.lane.b32.xlu0 %v4176, 64
    %v4234 = vpop.permute.xlu0 %4233
    %4235 = vrot.lane.b32.xlu0 %v4180, 64
    %v4236 = vpop.permute.xlu0 %4235
    %4237 = vrot.lane.b32.xlu0 %v4184, 64
    %v4238 = vpop.permute.xlu0 %4237
    %4239 = vrot.lane.b32.xlu0 %v4188, 64
    %v4240 = vpop.permute.xlu0 %4239
    %4241 = vrot.lane.b32.xlu0 %v4192, 64
    %v4242 = vpop.permute.xlu0 %4241
    %4243 = vrot.lane.b32.xlu0 %v4196, 64
    %v4244 = vpop.permute.xlu0 %4243
    %4245 = vrot.lane.b32.xlu0 %v4200, 64
    %v4246 = vpop.permute.xlu0 %4245
    %4247 = vrot.lane.b32.xlu0 %v4204, 64
    %v4248 = vpop.permute.xlu0 %4247
    %4249 = vrot.lane.b32.xlu0 %v4208, 64
    %v4250 = vpop.permute.xlu0 %4249
    %4251 = vrot.lane.b32.xlu0 %v4212, 64
    %v4252 = vpop.permute.xlu0 %4251
    %4253 = vrot.lane.b32.xlu0 %v4216, 64
    %v4254 = vpop.permute.xlu0 %4253
    %4255 = vrot.lane.b32.xlu0 %v4220, 64
    %v4256 = vpop.permute.xlu0 %4255
    %4257 = vrot.lane.b32.xlu0 %v4224, 64
    %v4258 = vpop.permute.xlu0 %4257
    %4259 = vrot.lane.b32.xlu0 %v4228, 64
    %v4260 = vpop.permute.xlu0 %4259
    %v4277 = vadd.f32 %v213, %v4230
    %v4278 = vadd.f32 %v216, %v4232
    %v4279 = vadd.f32 %v221, %v4234
    %v4280 = vadd.f32 %v224, %v4236
    %v4281 = vadd.f32 %v229, %v4238
    %v4282 = vadd.f32 %v232, %v4240
    %v4283 = vadd.f32 %v237, %v4242
    %v4284 = vadd.f32 %v240, %v4244
    %v4285 = vadd.f32 %v245, %v4246
    %v4286 = vadd.f32 %v248, %v4248
    %v4287 = vadd.f32 %v253, %v4250
    %v4288 = vadd.f32 %v256, %v4252
    %v4289 = vadd.f32 %v261, %v4254
    %v4290 = vadd.f32 %v264, %v4256
    %v4291 = vadd.f32 %v269, %v4258
    %v4292 = vadd.f32 %v272, %v4260
    %v4293 = vmax.f32 %v4277, 0.0
    %v4294 = vmax.f32 %v4278, 0.0
    %v4295 = vmax.f32 %v4279, 0.0
    %v4296 = vmax.f32 %v4280, 0.0
    %v4297 = vmax.f32 %v4281, 0.0
    %v4298 = vmax.f32 %v4282, 0.0
    %v4299 = vmax.f32 %v4283, 0.0
    %v4300 = vmax.f32 %v4284, 0.0
    %v4301 = vmax.f32 %v4285, 0.0
    %v4302 = vmax.f32 %v4286, 0.0
    %v4303 = vmax.f32 %v4287, 0.0
    %v4304 = vmax.f32 %v4288, 0.0
    %v4305 = vmax.f32 %v4289, 0.0
    %v4306 = vmax.f32 %v4290, 0.0
    %v4307 = vmax.f32 %v4291, 0.0
    %v4308 = vmax.f32 %v4292, 0.0
    %v4309 = vpack.c.bf16 %v4294, %v4293
    %v4310 = vpack.c.bf16 %v4296, %v4295
    %v4311 = vpack.c.bf16 %v4298, %v4297
    %v4312 = vpack.c.bf16 %v4300, %v4299
    %v4313 = vpack.c.bf16 %v4302, %v4301
    %v4314 = vpack.c.bf16 %v4304, %v4303
    %v4315 = vpack.c.bf16 %v4306, %v4305
    %v4316 = vpack.c.bf16 %v4308, %v4307
    %v4317 = vlaneseq
    %v4318 = vshrl.u32 %v4317, 7
    %v4319 = vsub.s32 0, %v4318
    %v4320 = vrot.slane %v3997, %v4319
    %4329 = vrot.lane.b32.xlu0 %v4309, 64
    %v4330 = vpop.permute.xlu0 %4329
    %4331 = vrot.lane.b32.xlu0 %v4310, 64
    %v4332 = vpop.permute.xlu0 %4331
    %4333 = vrot.lane.b32.xlu0 %v4311, 64
    %v4334 = vpop.permute.xlu0 %4333
    %4335 = vrot.lane.b32.xlu0 %v4312, 64
    %v4336 = vpop.permute.xlu0 %4335
    %4337 = vrot.lane.b32.xlu0 %v4313, 64
    %v4338 = vpop.permute.xlu0 %4337
    %4339 = vrot.lane.b32.xlu0 %v4314, 64
    %v4340 = vpop.permute.xlu0 %4339
    %4341 = vrot.lane.b32.xlu0 %v4315, 64
    %v4342 = vpop.permute.xlu0 %4341
    %4343 = vrot.lane.b32.xlu0 %v4316, 64
    %v4344 = vpop.permute.xlu0 %4343
    %v4349 = vunpack.c.l.b16 %v3992
    %v4350 = vunpack.c.l.b16 %v3993
    %v4351 = vunpack.c.l.b16 %v3994
    %v4352 = vunpack.c.l.b16 %v3995
    %v4353 = vpack.c.b16 %v4350, %v4349
    %v4354 = vpack.c.b16 %v4352, %v4351
    %v4358 = vsel %vm153, %v4330, 0
    %v4361 = vsel %vm153, %v4332, 0
    %v4364 = vsel %vm153, %v4334, 0
    %v4367 = vsel %vm153, %v4336, 0
    %v4370 = vsel %vm153, %v4338, 0
    %v4373 = vsel %vm153, %v4340, 0
    %v4376 = vsel %vm153, %v4342, 0
    %v4379 = vsel %vm153, %v4344, 0
    %4381 = vmatprep.subr.bf16.mxu0 0
    %4382 = vmatpush1.bf16.msra.mxu0 0
    %4383 = vmatprep.subr.bf16.mxu0 0
    %4384 = vmatpush1.bf16.msra.mxu0 0
    %4385 = vmatprep.subr.bf16.mxu0 0
    %4386 = vmatpush1.bf16.msra.mxu0 0
    %4387 = vmatprep.subr.bf16.mxu0 0
    %4388 = vmatpush1.bf16.msra.mxu0 0
    %4389 = vmatprep.subr.bf16.mxu0 0
    %4390 = vmatpush1.bf16.msra.mxu0 0
    %4391 = vmatprep.subr.bf16.mxu0 0
    %4392 = vmatpush1.bf16.msra.mxu0 0
    %4393 = vmatprep.subr.bf16.mxu0 0
    %4394 = vmatpush1.bf16.msra.mxu0 %v4354
    %4395 = vmatprep.subr.bf16.mxu0 0
    %4396 = vmatpush1.bf16.msra.mxu0 %v4353
    %4397 = vmatprep.subr.bf16.mxu0 0
    %4398 = vmatpush2.bf16.msra.mxu0 0
    %4399 = vmatprep.subr.bf16.mxu0 0
    %4400 = vmatpush2.bf16.msra.mxu0 0
    %4401 = vmatprep.subr.bf16.mxu0 0
    %4402 = vmatpush2.bf16.msra.mxu0 0
    %4403 = vmatprep.subr.bf16.mxu0 0
    %4404 = vmatpush2.bf16.msra.mxu0 0
    %4405 = vmatprep.subr.bf16.mxu0 0
    %4406 = vmatpush2.bf16.msra.mxu0 0
    %4407 = vmatprep.subr.bf16.mxu0 0
    %4408 = vmatpush2.bf16.msra.mxu0 0
    %4409 = vmatprep.subr.bf16.mxu0 0
    %4410 = vmatpush2.bf16.msra.mxu0 0
    %4411 = vmatprep.subr.bf16.mxu0 0
    %4412 = vmatpush2.bf16.msra.mxu0 0
    %4413 = vmatprep.mubr.bf16.mxu0 0
    %4414 = vmatmul.mubr.bf16.gmra.mxu0 %v4358
    %v4415 = vpop.f32.mrf.mxu0
    %v4416 = vadd.f32 %v4320, %v4415
    %v4417 = vpop.f32.mrf.mxu0
    %v4418 = vpop.f32.mrf.mxu0
    %v4419 = vadd.f32 %v4320, %v4418
    %v4420 = vpop.f32.mrf.mxu0
    %4421 = vmatprep.mubr.bf16.mxu0 0
    %4422 = vmatmul.mubr.bf16.gmra.mxu0 %v4361
    %v4423 = vpop.f32.mrf.mxu0
    %v4424 = vadd.f32 %v4320, %v4423
    %v4425 = vpop.f32.mrf.mxu0
    %v4426 = vpop.f32.mrf.mxu0
    %v4427 = vadd.f32 %v4320, %v4426
    %v4428 = vpop.f32.mrf.mxu0
    %4429 = vmatprep.mubr.bf16.mxu0 0
    %4430 = vmatmul.mubr.bf16.gmra.mxu0 %v4364
    %v4431 = vpop.f32.mrf.mxu0
    %v4432 = vadd.f32 %v4320, %v4431
    %v4433 = vpop.f32.mrf.mxu0
    %v4434 = vpop.f32.mrf.mxu0
    %v4435 = vadd.f32 %v4320, %v4434
    %v4436 = vpop.f32.mrf.mxu0
    %4437 = vmatprep.mubr.bf16.mxu0 0
    %4438 = vmatmul.mubr.bf16.gmra.mxu0 %v4367
    %v4439 = vpop.f32.mrf.mxu0
    %v4440 = vadd.f32 %v4320, %v4439
    %v4441 = vpop.f32.mrf.mxu0
    %v4442 = vpop.f32.mrf.mxu0
    %v4443 = vadd.f32 %v4320, %v4442
    %v4444 = vpop.f32.mrf.mxu0
    %4445 = vmatprep.mubr.bf16.mxu0 0
    %4446 = vmatmul.mubr.bf16.gmra.mxu0 %v4370
    %v4447 = vpop.f32.mrf.mxu0
    %v4448 = vadd.f32 %v4320, %v4447
    %v4449 = vpop.f32.mrf.mxu0
    %v4450 = vpop.f32.mrf.mxu0
    %v4451 = vadd.f32 %v4320, %v4450
    %v4452 = vpop.f32.mrf.mxu0
    %4453 = vmatprep.mubr.bf16.mxu0 0
    %4454 = vmatmul.mubr.bf16.gmra.mxu0 %v4373
    %v4455 = vpop.f32.mrf.mxu0
    %v4456 = vadd.f32 %v4320, %v4455
    %v4457 = vpop.f32.mrf.mxu0
    %v4458 = vpop.f32.mrf.mxu0
    %v4459 = vadd.f32 %v4320, %v4458
    %v4460 = vpop.f32.mrf.mxu0
    %4461 = vmatprep.mubr.bf16.mxu0 0
    %4462 = vmatmul.mubr.bf16.gmra.mxu0 %v4376
    %v4463 = vpop.f32.mrf.mxu0
    %v4464 = vadd.f32 %v4320, %v4463
    %v4465 = vpop.f32.mrf.mxu0
    %v4466 = vpop.f32.mrf.mxu0
    %v4467 = vadd.f32 %v4320, %v4466
    %v4468 = vpop.f32.mrf.mxu0
    %4469 = vmatprep.mubr.bf16.mxu0 0
    %4470 = vmatmul.mubr.bf16.gmra.mxu0 %v4379
    %v4471 = vpop.f32.mrf.mxu0
    %v4472 = vadd.f32 %v4320, %v4471
    %v4473 = vpop.f32.mrf.mxu0
    %v4474 = vpop.f32.mrf.mxu0
    %v4475 = vadd.f32 %v4320, %v4474
    %v4476 = vpop.f32.mrf.mxu0
    %4477 = vdwg.mxu0
    %v4478 = vmax.f32 %v4416, 0.0
    %v4479 = vmax.f32 %v4419, 0.0
    %v4480 = vmax.f32 %v4424, 0.0
    %v4481 = vmax.f32 %v4427, 0.0
    %v4482 = vmax.f32 %v4432, 0.0
    %v4483 = vmax.f32 %v4435, 0.0
    %v4484 = vmax.f32 %v4440, 0.0
    %v4485 = vmax.f32 %v4443, 0.0
    %v4486 = vmax.f32 %v4448, 0.0
    %v4487 = vmax.f32 %v4451, 0.0
    %v4488 = vmax.f32 %v4456, 0.0
    %v4489 = vmax.f32 %v4459, 0.0
    %v4490 = vmax.f32 %v4464, 0.0
    %v4491 = vmax.f32 %v4467, 0.0
    %v4492 = vmax.f32 %v4472, 0.0
    %v4493 = vmax.f32 %v4475, 0.0
    %4495 = vrot.lane.b32.xlu0 %v4320, 112
    %v4496 = vpop.permute.xlu0 %4495
    %v4498 = vmul.f32 %v4478, %v4496
    %v4499 = vmul.f32 %v4479, %v4496
    %v4500 = vmul.f32 %v4480, %v4496
    %v4501 = vmul.f32 %v4481, %v4496
    %v4502 = vmul.f32 %v4482, %v4496
    %v4503 = vmul.f32 %v4483, %v4496
    %v4504 = vmul.f32 %v4484, %v4496
    %v4505 = vmul.f32 %v4485, %v4496
    %v4506 = vmul.f32 %v4486, %v4496
    %v4507 = vmul.f32 %v4487, %v4496
    %v4508 = vmul.f32 %v4488, %v4496
    %v4509 = vmul.f32 %v4489, %v4496
    %v4510 = vmul.f32 %v4490, %v4496
    %v4511 = vmul.f32 %v4491, %v4496
    %v4512 = vmul.f32 %v4492, %v4496
    %v4513 = vmul.f32 %v4493, %v4496
    %v4514 = vsel %vm739, %v4498, 0.0
    %4515 = vadd.xlane.f32.xlu0 %v4514
    %v4516 = vpop.xlane.xlu0 %4515
    %v4517 = vsel %vm739, %v4499, 0.0
    %4518 = vadd.xlane.f32.xlu0 %v4517
    %v4519 = vpop.xlane.xlu0 %4518
    %v4520 = vsel %vm739, %v4500, 0.0
    %4521 = vadd.xlane.f32.xlu0 %v4520
    %v4522 = vpop.xlane.xlu0 %4521
    %v4523 = vsel %vm739, %v4501, 0.0
    %4524 = vadd.xlane.f32.xlu0 %v4523
    %v4525 = vpop.xlane.xlu0 %4524
    %v4526 = vsel %vm739, %v4502, 0.0
    %4527 = vadd.xlane.f32.xlu0 %v4526
    %v4528 = vpop.xlane.xlu0 %4527
    %v4529 = vsel %vm739, %v4503, 0.0
    %4530 = vadd.xlane.f32.xlu0 %v4529
    %v4531 = vpop.xlane.xlu0 %4530
    %v4532 = vsel %vm739, %v4504, 0.0
    %4533 = vadd.xlane.f32.xlu0 %v4532
    %v4534 = vpop.xlane.xlu0 %4533
    %v4535 = vsel %vm739, %v4505, 0.0
    %4536 = vadd.xlane.f32.xlu0 %v4535
    %v4537 = vpop.xlane.xlu0 %4536
    %v4538 = vsel %vm739, %v4506, 0.0
    %4539 = vadd.xlane.f32.xlu0 %v4538
    %v4540 = vpop.xlane.xlu0 %4539
    %v4541 = vsel %vm739, %v4507, 0.0
    %4542 = vadd.xlane.f32.xlu0 %v4541
    %v4543 = vpop.xlane.xlu0 %4542
    %v4544 = vsel %vm739, %v4508, 0.0
    %4545 = vadd.xlane.f32.xlu0 %v4544
    %v4546 = vpop.xlane.xlu0 %4545
    %v4547 = vsel %vm739, %v4509, 0.0
    %4548 = vadd.xlane.f32.xlu0 %v4547
    %v4549 = vpop.xlane.xlu0 %4548
    %v4550 = vsel %vm739, %v4510, 0.0
    %4551 = vadd.xlane.f32.xlu0 %v4550
    %v4552 = vpop.xlane.xlu0 %4551
    %v4553 = vsel %vm739, %v4511, 0.0
    %4554 = vadd.xlane.f32.xlu0 %v4553
    %v4555 = vpop.xlane.xlu0 %4554
    %v4556 = vsel %vm739, %v4512, 0.0
    %4557 = vadd.xlane.f32.xlu0 %v4556
    %v4558 = vpop.xlane.xlu0 %4557
    %v4559 = vsel %vm739, %v4513, 0.0
    %4560 = vadd.xlane.f32.xlu0 %v4559
    %v4561 = vpop.xlane.xlu0 %4560
    %4563 = vrot.lane.b32.xlu0 %v3997, 96
    %v4564 = vpop.permute.xlu0 %4563
    %s4565 = vtos %v4564
    %v4566 = vstv %s4565
    %v4568 = vadd.f32 %v4516, %v4566
    %v4569 = vadd.f32 %v4519, %v4566
    %v4570 = vadd.f32 %v4522, %v4566
    %v4571 = vadd.f32 %v4525, %v4566
    %v4572 = vadd.f32 %v4528, %v4566
    %v4573 = vadd.f32 %v4531, %v4566
    %v4574 = vadd.f32 %v4534, %v4566
    %v4575 = vadd.f32 %v4537, %v4566
    %v4576 = vadd.f32 %v4540, %v4566
    %v4577 = vadd.f32 %v4543, %v4566
    %v4578 = vadd.f32 %v4546, %v4566
    %v4579 = vadd.f32 %v4549, %v4566
    %v4580 = vadd.f32 %v4552, %v4566
    %v4581 = vadd.f32 %v4555, %v4566
    %v4582 = vadd.f32 %v4558, %v4566
    %v4583 = vadd.f32 %v4561, %v4566
    %vm4584 = vcmp.gt.f32.partialorder %v3972, 0.0
    %vm4585 = vcmp.gt.f32.partialorder %v3973, 0.0
    %vm4586 = vcmp.gt.f32.partialorder %v3974, 0.0
    %vm4587 = vcmp.gt.f32.partialorder %v3975, 0.0
    %vm4588 = vcmp.gt.f32.partialorder %v3976, 0.0
    %vm4589 = vcmp.gt.f32.partialorder %v3977, 0.0
    %vm4590 = vcmp.gt.f32.partialorder %v3978, 0.0
    %vm4591 = vcmp.gt.f32.partialorder %v3979, 0.0
    %vm4592 = vcmp.gt.f32.partialorder %v3980, 0.0
    %vm4593 = vcmp.gt.f32.partialorder %v3981, 0.0
    %vm4594 = vcmp.gt.f32.partialorder %v3982, 0.0
    %vm4595 = vcmp.gt.f32.partialorder %v3983, 0.0
    %vm4596 = vcmp.gt.f32.partialorder %v3984, 0.0
    %vm4597 = vcmp.gt.f32.partialorder %v3985, 0.0
    %vm4598 = vcmp.gt.f32.partialorder %v3986, 0.0
    %vm4599 = vcmp.gt.f32.partialorder %v3987, 0.0
    %v4616 = vlaneseq
    %v4617 = vshrl.u32 %v4616, 7
    %v4618 = vsub.s32 %v68, %v4617
    %v4619 = vrot.slane %v4568, %v4618
    %v4620 = vlaneseq
    %v4621 = vshrl.u32 %v4620, 7
    %v4622 = vsub.s32 %v68, %v4621
    %v4623 = vrot.slane %v4569, %v4622
    %v4624 = vlaneseq
    %v4625 = vshrl.u32 %v4624, 7
    %v4626 = vsub.s32 %v68, %v4625
    %v4627 = vrot.slane %v4570, %v4626
    %v4628 = vlaneseq
    %v4629 = vshrl.u32 %v4628, 7
    %v4630 = vsub.s32 %v68, %v4629
    %v4631 = vrot.slane %v4571, %v4630
    %v4632 = vlaneseq
    %v4633 = vshrl.u32 %v4632, 7
    %v4634 = vsub.s32 %v68, %v4633
    %v4635 = vrot.slane %v4572, %v4634
    %v4636 = vlaneseq
    %v4637 = vshrl.u32 %v4636, 7
    %v4638 = vsub.s32 %v68, %v4637
    %v4639 = vrot.slane %v4573, %v4638
    %v4640 = vlaneseq
    %v4641 = vshrl.u32 %v4640, 7
    %v4642 = vsub.s32 %v68, %v4641
    %v4643 = vrot.slane %v4574, %v4642
    %v4644 = vlaneseq
    %v4645 = vshrl.u32 %v4644, 7
    %v4646 = vsub.s32 %v68, %v4645
    %v4647 = vrot.slane %v4575, %v4646
    %v4648 = vlaneseq
    %v4649 = vshrl.u32 %v4648, 7
    %v4650 = vsub.s32 %v68, %v4649
    %v4651 = vrot.slane %v4576, %v4650
    %v4652 = vlaneseq
    %v4653 = vshrl.u32 %v4652, 7
    %v4654 = vsub.s32 %v68, %v4653
    %v4655 = vrot.slane %v4577, %v4654
    %v4656 = vlaneseq
    %v4657 = vshrl.u32 %v4656, 7
    %v4658 = vsub.s32 %v68, %v4657
    %v4659 = vrot.slane %v4578, %v4658
    %v4660 = vlaneseq
    %v4661 = vshrl.u32 %v4660, 7
    %v4662 = vsub.s32 %v68, %v4661
    %v4663 = vrot.slane %v4579, %v4662
    %v4664 = vlaneseq
    %v4665 = vshrl.u32 %v4664, 7
    %v4666 = vsub.s32 %v68, %v4665
    %v4667 = vrot.slane %v4580, %v4666
    %v4668 = vlaneseq
    %v4669 = vshrl.u32 %v4668, 7
    %v4670 = vsub.s32 %v68, %v4669
    %v4671 = vrot.slane %v4581, %v4670
    %v4672 = vlaneseq
    %v4673 = vshrl.u32 %v4672, 7
    %v4674 = vsub.s32 %v68, %v4673
    %v4675 = vrot.slane %v4582, %v4674
    %v4676 = vlaneseq
    %v4677 = vshrl.u32 %v4676, 7
    %v4678 = vsub.s32 %v68, %v4677
    %v4679 = vrot.slane %v4583, %v4678
    %v4696 = vsel %vm4584, %v4619, -1e+30
    %v4697 = vsel %vm4585, %v4623, -1e+30
    %v4698 = vsel %vm4586, %v4627, -1e+30
    %v4699 = vsel %vm4587, %v4631, -1e+30
    %v4700 = vsel %vm4588, %v4635, -1e+30
    %v4701 = vsel %vm4589, %v4639, -1e+30
    %v4702 = vsel %vm4590, %v4643, -1e+30
    %v4703 = vsel %vm4591, %v4647, -1e+30
    %v4704 = vsel %vm4592, %v4651, -1e+30
    %v4705 = vsel %vm4593, %v4655, -1e+30
    %v4706 = vsel %vm4594, %v4659, -1e+30
    %v4707 = vsel %vm4595, %v4663, -1e+30
    %v4708 = vsel %vm4596, %v4667, -1e+30
    %v4709 = vsel %vm4597, %v4671, -1e+30
    %v4710 = vsel %vm4598, %v4675, -1e+30
    %v4711 = vsel %vm4599, %v4679, -1e+30
    %v4728 = vrot.slane %v4697, 7
    %v4729 = vsel %vm955, %v4728, %v4696
    %v4730 = vrot.slane %v4698, 6
    %v4731 = vsel %vm958, %v4730, %v4729
    %v4732 = vrot.slane %v4699, 5
    %v4733 = vsel %vm961, %v4732, %v4731
    %v4734 = vrot.slane %v4700, 4
    %v4735 = vsel %vm964, %v4734, %v4733
    %v4736 = vrot.slane %v4701, 3
    %v4737 = vsel %vm967, %v4736, %v4735
    %v4738 = vrot.slane %v4702, 2
    %v4739 = vsel %vm970, %v4738, %v4737
    %v4740 = vrot.slane %v4703, 1
    %v4741 = vsel %vm973, %v4740, %v4739
    %v4742 = vrot.slane %v4705, 7
    %v4743 = vsel %vm955, %v4742, %v4704
    %v4744 = vrot.slane %v4706, 6
    %v4745 = vsel %vm958, %v4744, %v4743
    %v4746 = vrot.slane %v4707, 5
    %v4747 = vsel %vm961, %v4746, %v4745
    %v4748 = vrot.slane %v4708, 4
    %v4749 = vsel %vm964, %v4748, %v4747
    %v4750 = vrot.slane %v4709, 3
    %v4751 = vsel %vm967, %v4750, %v4749
    %v4752 = vrot.slane %v4710, 2
    %v4753 = vsel %vm970, %v4752, %v4751
    %v4754 = vrot.slane %v4711, 1
    %v4755 = vsel %vm973, %v4754, %v4753
    %v4758 = vsel %vm991, %v4741, -inf
    %4759 = vmax.xlane.f32.xlu0 %v4758
    %v4760 = vpop.xlane.xlu0 %4759
    %v4761 = vsel %vm991, %v4755, -inf
    %4762 = vmax.xlane.f32.xlu0 %v4761
    %v4763 = vpop.xlane.xlu0 %4762
    %v4766 = vrot.slane %v4760, 1
    %v4767 = vrot.slane %v4760, 2
    %v4768 = vrot.slane %v4760, 3
    %v4769 = vrot.slane %v4760, 4
    %v4770 = vrot.slane %v4760, 5
    %v4771 = vrot.slane %v4760, 6
    %v4772 = vrot.slane %v4760, 7
    %v4773 = vrot.slane %v4763, 1
    %v4774 = vrot.slane %v4763, 2
    %v4775 = vrot.slane %v4763, 3
    %v4776 = vrot.slane %v4763, 4
    %v4777 = vrot.slane %v4763, 5
    %v4778 = vrot.slane %v4763, 6
    %v4779 = vrot.slane %v4763, 7
    %v4796 = vsub.f32 %v4696, %v4760
    %v4797 = vsub.f32 %v4697, %v4766
    %v4798 = vsub.f32 %v4698, %v4767
    %v4799 = vsub.f32 %v4699, %v4768
    %v4800 = vsub.f32 %v4700, %v4769
    %v4801 = vsub.f32 %v4701, %v4770
    %v4802 = vsub.f32 %v4702, %v4771
    %v4803 = vsub.f32 %v4703, %v4772
    %v4804 = vsub.f32 %v4704, %v4763
    %v4805 = vsub.f32 %v4705, %v4773
    %v4806 = vsub.f32 %v4706, %v4774
    %v4807 = vsub.f32 %v4707, %v4775
    %v4808 = vsub.f32 %v4708, %v4776
    %v4809 = vsub.f32 %v4709, %v4777
    %v4810 = vsub.f32 %v4710, %v4778
    %v4811 = vsub.f32 %v4711, %v4779
    %v4812 = vmul.f32 %v4796, 1.442695
    %v4813 = vpow.pop %v4812
    %v4814 = vmul.f32 %v4797, 1.442695
    %v4815 = vpow.pop %v4814
    %v4816 = vmul.f32 %v4798, 1.442695
    %v4817 = vpow.pop %v4816
    %v4818 = vmul.f32 %v4799, 1.442695
    %v4819 = vpow.pop %v4818
    %v4820 = vmul.f32 %v4800, 1.442695
    %v4821 = vpow.pop %v4820
    %v4822 = vmul.f32 %v4801, 1.442695
    %v4823 = vpow.pop %v4822
    %v4824 = vmul.f32 %v4802, 1.442695
    %v4825 = vpow.pop %v4824
    %v4826 = vmul.f32 %v4803, 1.442695
    %v4827 = vpow.pop %v4826
    %v4828 = vmul.f32 %v4804, 1.442695
    %v4829 = vpow.pop %v4828
    %v4830 = vmul.f32 %v4805, 1.442695
    %v4831 = vpow.pop %v4830
    %v4832 = vmul.f32 %v4806, 1.442695
    %v4833 = vpow.pop %v4832
    %v4834 = vmul.f32 %v4807, 1.442695
    %v4835 = vpow.pop %v4834
    %v4836 = vmul.f32 %v4808, 1.442695
    %v4837 = vpow.pop %v4836
    %v4838 = vmul.f32 %v4809, 1.442695
    %v4839 = vpow.pop %v4838
    %v4840 = vmul.f32 %v4810, 1.442695
    %v4841 = vpow.pop %v4840
    %v4842 = vmul.f32 %v4811, 1.442695
    %v4843 = vpow.pop %v4842
    %v4844 = vsel %vm4584, %v4813, 0.0
    %v4845 = vsel %vm4585, %v4815, 0.0
    %v4846 = vsel %vm4586, %v4817, 0.0
    %v4847 = vsel %vm4587, %v4819, 0.0
    %v4848 = vsel %vm4588, %v4821, 0.0
    %v4849 = vsel %vm4589, %v4823, 0.0
    %v4850 = vsel %vm4590, %v4825, 0.0
    %v4851 = vsel %vm4591, %v4827, 0.0
    %v4852 = vsel %vm4592, %v4829, 0.0
    %v4853 = vsel %vm4593, %v4831, 0.0
    %v4854 = vsel %vm4594, %v4833, 0.0
    %v4855 = vsel %vm4595, %v4835, 0.0
    %v4856 = vsel %vm4596, %v4837, 0.0
    %v4857 = vsel %vm4597, %v4839, 0.0
    %v4858 = vsel %vm4598, %v4841, 0.0
    %v4859 = vsel %vm4599, %v4843, 0.0
    %v4876 = vrot.slane %v4845, 7
    %v4877 = vsel %vm955, %v4876, %v4844
    %v4878 = vrot.slane %v4846, 6
    %v4879 = vsel %vm958, %v4878, %v4877
    %v4880 = vrot.slane %v4847, 5
    %v4881 = vsel %vm961, %v4880, %v4879
    %v4882 = vrot.slane %v4848, 4
    %v4883 = vsel %vm964, %v4882, %v4881
    %v4884 = vrot.slane %v4849, 3
    %v4885 = vsel %vm967, %v4884, %v4883
    %v4886 = vrot.slane %v4850, 2
    %v4887 = vsel %vm970, %v4886, %v4885
    %v4888 = vrot.slane %v4851, 1
    %v4889 = vsel %vm973, %v4888, %v4887
    %v4890 = vrot.slane %v4853, 7
    %v4891 = vsel %vm955, %v4890, %v4852
    %v4892 = vrot.slane %v4854, 6
    %v4893 = vsel %vm958, %v4892, %v4891
    %v4894 = vrot.slane %v4855, 5
    %v4895 = vsel %vm961, %v4894, %v4893
    %v4896 = vrot.slane %v4856, 4
    %v4897 = vsel %vm964, %v4896, %v4895
    %v4898 = vrot.slane %v4857, 3
    %v4899 = vsel %vm967, %v4898, %v4897
    %v4900 = vrot.slane %v4858, 2
    %v4901 = vsel %vm970, %v4900, %v4899
    %v4902 = vrot.slane %v4859, 1
    %v4903 = vsel %vm973, %v4902, %v4901
    %v4906 = vsel %vm991, %v4889, 0.0
    %4907 = vadd.xlane.f32.xlu0 %v4906
    %v4908 = vpop.xlane.xlu0 %4907
    %v4909 = vsel %vm991, %v4903, 0.0
    %4910 = vadd.xlane.f32.xlu0 %v4909
    %v4911 = vpop.xlane.xlu0 %4910
    %v4912 = vmax.f32 %v4908, 1e-30
    %v4913 = vmax.f32 %v4911, 1e-30
    %v4916 = vrot.slane %v4912, 1
    %v4917 = vrot.slane %v4912, 2
    %v4918 = vrot.slane %v4912, 3
    %v4919 = vrot.slane %v4912, 4
    %v4920 = vrot.slane %v4912, 5
    %v4921 = vrot.slane %v4912, 6
    %v4922 = vrot.slane %v4912, 7
    %v4923 = vrot.slane %v4913, 1
    %v4924 = vrot.slane %v4913, 2
    %v4925 = vrot.slane %v4913, 3
    %v4926 = vrot.slane %v4913, 4
    %v4927 = vrot.slane %v4913, 5
    %v4928 = vrot.slane %v4913, 6
    %v4929 = vrot.slane %v4913, 7
    %v4946 = vrcp.pop %v4912
    %v4947 = vmul.f32 %v4844, %v4946
    %v4948 = vrcp.pop %v4916
    %v4949 = vmul.f32 %v4845, %v4948
    %v4950 = vrcp.pop %v4917
    %v4951 = vmul.f32 %v4846, %v4950
    %v4952 = vrcp.pop %v4918
    %v4953 = vmul.f32 %v4847, %v4952
    %v4954 = vrcp.pop %v4919
    %v4955 = vmul.f32 %v4848, %v4954
    %v4956 = vrcp.pop %v4920
    %v4957 = vmul.f32 %v4849, %v4956
    %v4958 = vrcp.pop %v4921
    %v4959 = vmul.f32 %v4850, %v4958
    %v4960 = vrcp.pop %v4922
    %v4961 = vmul.f32 %v4851, %v4960
    %v4962 = vrcp.pop %v4913
    %v4963 = vmul.f32 %v4852, %v4962
    %v4964 = vrcp.pop %v4923
    %v4965 = vmul.f32 %v4853, %v4964
    %v4966 = vrcp.pop %v4924
    %v4967 = vmul.f32 %v4854, %v4966
    %v4968 = vrcp.pop %v4925
    %v4969 = vmul.f32 %v4855, %v4968
    %v4970 = vrcp.pop %v4926
    %v4971 = vmul.f32 %v4856, %v4970
    %v4972 = vrcp.pop %v4927
    %v4973 = vmul.f32 %v4857, %v4972
    %v4974 = vrcp.pop %v4928
    %v4975 = vmul.f32 %v4858, %v4974
    %v4976 = vrcp.pop %v4929
    %v4977 = vmul.f32 %v4859, %v4976
    %v4994 = vrot.slane %v3973, 7
    %v4995 = vsel %vm955, %v4994, %v3972
    %v4996 = vrot.slane %v3974, 6
    %v4997 = vsel %vm958, %v4996, %v4995
    %v4998 = vrot.slane %v3975, 5
    %v4999 = vsel %vm961, %v4998, %v4997
    %v5000 = vrot.slane %v3976, 4
    %v5001 = vsel %vm964, %v5000, %v4999
    %v5002 = vrot.slane %v3977, 3
    %v5003 = vsel %vm967, %v5002, %v5001
    %v5004 = vrot.slane %v3978, 2
    %v5005 = vsel %vm970, %v5004, %v5003
    %v5006 = vrot.slane %v3979, 1
    %v5007 = vsel %vm973, %v5006, %v5005
    %v5008 = vrot.slane %v3981, 7
    %v5009 = vsel %vm955, %v5008, %v3980
    %v5010 = vrot.slane %v3982, 6
    %v5011 = vsel %vm958, %v5010, %v5009
    %v5012 = vrot.slane %v3983, 5
    %v5013 = vsel %vm961, %v5012, %v5011
    %v5014 = vrot.slane %v3984, 4
    %v5015 = vsel %vm964, %v5014, %v5013
    %v5016 = vrot.slane %v3985, 3
    %v5017 = vsel %vm967, %v5016, %v5015
    %v5018 = vrot.slane %v3986, 2
    %v5019 = vsel %vm970, %v5018, %v5017
    %v5020 = vrot.slane %v3987, 1
    %v5021 = vsel %vm973, %v5020, %v5019
    %v5024 = vsel %vm991, %v5007, 0.0
    %5025 = vadd.xlane.f32.xlu0 %v5024
    %v5026 = vpop.xlane.xlu0 %5025
    %v5027 = vsel %vm991, %v5021, 0.0
    %5028 = vadd.xlane.f32.xlu0 %v5027
    %v5029 = vpop.xlane.xlu0 %5028
    %v5030 = vmax.f32 %v5026, 1.0
    %v5031 = vmax.f32 %v5029, 1.0
    %v5032 = vmul.f32 %v4947, 0.95
    %v5033 = vmul.f32 %v4949, 0.95
    %v5034 = vmul.f32 %v4951, 0.95
    %v5035 = vmul.f32 %v4953, 0.95
    %v5036 = vmul.f32 %v4955, 0.95
    %v5037 = vmul.f32 %v4957, 0.95
    %v5038 = vmul.f32 %v4959, 0.95
    %v5039 = vmul.f32 %v4961, 0.95
    %v5040 = vmul.f32 %v4963, 0.95
    %v5041 = vmul.f32 %v4965, 0.95
    %v5042 = vmul.f32 %v4967, 0.95
    %v5043 = vmul.f32 %v4969, 0.95
    %v5044 = vmul.f32 %v4971, 0.95
    %v5045 = vmul.f32 %v4973, 0.95
    %v5046 = vmul.f32 %v4975, 0.95
    %v5047 = vmul.f32 %v4977, 0.95
    %v5048 = vrcp.pop %v5030
    %v5049 = vmul.f32 0.05, %v5048
    %v5050 = vrcp.pop %v5031
    %v5051 = vmul.f32 0.05, %v5050
    %v5054 = vrot.slane %v5049, 1
    %v5055 = vrot.slane %v5049, 2
    %v5056 = vrot.slane %v5049, 3
    %v5057 = vrot.slane %v5049, 4
    %v5058 = vrot.slane %v5049, 5
    %v5059 = vrot.slane %v5049, 6
    %v5060 = vrot.slane %v5049, 7
    %v5061 = vrot.slane %v5051, 1
    %v5062 = vrot.slane %v5051, 2
    %v5063 = vrot.slane %v5051, 3
    %v5064 = vrot.slane %v5051, 4
    %v5065 = vrot.slane %v5051, 5
    %v5066 = vrot.slane %v5051, 6
    %v5067 = vrot.slane %v5051, 7
    %v5084 = vadd.f32 %v5032, %v5049
    %v5085 = vadd.f32 %v5033, %v5054
    %v5086 = vadd.f32 %v5034, %v5055
    %v5087 = vadd.f32 %v5035, %v5056
    %v5088 = vadd.f32 %v5036, %v5057
    %v5089 = vadd.f32 %v5037, %v5058
    %v5090 = vadd.f32 %v5038, %v5059
    %v5091 = vadd.f32 %v5039, %v5060
    %v5092 = vadd.f32 %v5040, %v5051
    %v5093 = vadd.f32 %v5041, %v5061
    %v5094 = vadd.f32 %v5042, %v5062
    %v5095 = vadd.f32 %v5043, %v5063
    %v5096 = vadd.f32 %v5044, %v5064
    %v5097 = vadd.f32 %v5045, %v5065
    %v5098 = vadd.f32 %v5046, %v5066
    %v5099 = vadd.f32 %v5047, %v5067
    %v5100 = vsel %vm4584, %v5084, 0.0
    %v5101 = vsel %vm4585, %v5085, 0.0
    %v5102 = vsel %vm4586, %v5086, 0.0
    %v5103 = vsel %vm4587, %v5087, 0.0
    %v5104 = vsel %vm4588, %v5088, 0.0
    %v5105 = vsel %vm4589, %v5089, 0.0
    %v5106 = vsel %vm4590, %v5090, 0.0
    %v5107 = vsel %vm4591, %v5091, 0.0
    %v5108 = vsel %vm4592, %v5092, 0.0
    %v5109 = vsel %vm4593, %v5093, 0.0
    %v5110 = vsel %vm4594, %v5094, 0.0
    %v5111 = vsel %vm4595, %v5095, 0.0
    %v5112 = vsel %vm4596, %v5096, 0.0
    %v5113 = vsel %vm4597, %v5097, 0.0
    %v5114 = vsel %vm4598, %v5098, 0.0
    %v5115 = vsel %vm4599, %v5099, 0.0
    %v5132 = vrot.slane %v5101, 7
    %v5133 = vsel %vm955, %v5132, %v5100
    %v5134 = vrot.slane %v5102, 6
    %v5135 = vsel %vm958, %v5134, %v5133
    %v5136 = vrot.slane %v5103, 5
    %v5137 = vsel %vm961, %v5136, %v5135
    %v5138 = vrot.slane %v5104, 4
    %v5139 = vsel %vm964, %v5138, %v5137
    %v5140 = vrot.slane %v5105, 3
    %v5141 = vsel %vm967, %v5140, %v5139
    %v5142 = vrot.slane %v5106, 2
    %v5143 = vsel %vm970, %v5142, %v5141
    %v5144 = vrot.slane %v5107, 1
    %v5145 = vsel %vm973, %v5144, %v5143
    %v5146 = vrot.slane %v5109, 7
    %v5147 = vsel %vm955, %v5146, %v5108
    %v5148 = vrot.slane %v5110, 6
    %v5149 = vsel %vm958, %v5148, %v5147
    %v5150 = vrot.slane %v5111, 5
    %v5151 = vsel %vm961, %v5150, %v5149
    %v5152 = vrot.slane %v5112, 4
    %v5153 = vsel %vm964, %v5152, %v5151
    %v5154 = vrot.slane %v5113, 3
    %v5155 = vsel %vm967, %v5154, %v5153
    %v5156 = vrot.slane %v5114, 2
    %v5157 = vsel %vm970, %v5156, %v5155
    %v5158 = vrot.slane %v5115, 1
    %v5159 = vsel %vm973, %v5158, %v5157
    %v5162 = vsel %vm991, %v5145, -inf
    %5163 = vmax.xlane.f32.xlu0 %v5162
    %v5164 = vpop.xlane.xlu0 %5163
    %v5165 = vsel %vm991, %v5159, -inf
    %5166 = vmax.xlane.f32.xlu0 %v5165
    %v5167 = vpop.xlane.xlu0 %5166
    %v5170 = vrot.slane %v5164, 1
    %v5171 = vrot.slane %v5164, 2
    %v5172 = vrot.slane %v5164, 3
    %v5173 = vrot.slane %v5164, 4
    %v5174 = vrot.slane %v5164, 5
    %v5175 = vrot.slane %v5164, 6
    %v5176 = vrot.slane %v5164, 7
    %v5177 = vrot.slane %v5167, 1
    %v5178 = vrot.slane %v5167, 2
    %v5179 = vrot.slane %v5167, 3
    %v5180 = vrot.slane %v5167, 4
    %v5181 = vrot.slane %v5167, 5
    %v5182 = vrot.slane %v5167, 6
    %v5183 = vrot.slane %v5167, 7
    %vm5200 = vcmp.ge.f32.partialorder %v5100, %v5164
    %vm5201 = vcmp.ge.f32.partialorder %v5101, %v5170
    %vm5202 = vcmp.ge.f32.partialorder %v5102, %v5171
    %vm5203 = vcmp.ge.f32.partialorder %v5103, %v5172
    %vm5204 = vcmp.ge.f32.partialorder %v5104, %v5173
    %vm5205 = vcmp.ge.f32.partialorder %v5105, %v5174
    %vm5206 = vcmp.ge.f32.partialorder %v5106, %v5175
    %vm5207 = vcmp.ge.f32.partialorder %v5107, %v5176
    %vm5208 = vcmp.ge.f32.partialorder %v5108, %v5167
    %vm5209 = vcmp.ge.f32.partialorder %v5109, %v5177
    %vm5210 = vcmp.ge.f32.partialorder %v5110, %v5178
    %vm5211 = vcmp.ge.f32.partialorder %v5111, %v5179
    %vm5212 = vcmp.ge.f32.partialorder %v5112, %v5180
    %vm5213 = vcmp.ge.f32.partialorder %v5113, %v5181
    %vm5214 = vcmp.ge.f32.partialorder %v5114, %v5182
    %vm5215 = vcmp.ge.f32.partialorder %v5115, %v5183
    %v5216 = vsel %vm5200, %v68, 1073741824
    %v5217 = vsel %vm5201, %v68, 1073741824
    %v5218 = vsel %vm5202, %v68, 1073741824
    %v5219 = vsel %vm5203, %v68, 1073741824
    %v5220 = vsel %vm5204, %v68, 1073741824
    %v5221 = vsel %vm5205, %v68, 1073741824
    %v5222 = vsel %vm5206, %v68, 1073741824
    %v5223 = vsel %vm5207, %v68, 1073741824
    %v5224 = vsel %vm5208, %v68, 1073741824
    %v5225 = vsel %vm5209, %v68, 1073741824
    %v5226 = vsel %vm5210, %v68, 1073741824
    %v5227 = vsel %vm5211, %v68, 1073741824
    %v5228 = vsel %vm5212, %v68, 1073741824
    %v5229 = vsel %vm5213, %v68, 1073741824
    %v5230 = vsel %vm5214, %v68, 1073741824
    %v5231 = vsel %vm5215, %v68, 1073741824
    %v5232 = vrot.slane %v5217, 7
    %v5233 = vsel %vm955, %v5232, %v5216
    %v5234 = vrot.slane %v5218, 6
    %v5235 = vsel %vm958, %v5234, %v5233
    %v5236 = vrot.slane %v5219, 5
    %v5237 = vsel %vm961, %v5236, %v5235
    %v5238 = vrot.slane %v5220, 4
    %v5239 = vsel %vm964, %v5238, %v5237
    %v5240 = vrot.slane %v5221, 3
    %v5241 = vsel %vm967, %v5240, %v5239
    %v5242 = vrot.slane %v5222, 2
    %v5243 = vsel %vm970, %v5242, %v5241
    %v5244 = vrot.slane %v5223, 1
    %v5245 = vsel %vm973, %v5244, %v5243
    %v5246 = vrot.slane %v5225, 7
    %v5247 = vsel %vm955, %v5246, %v5224
    %v5248 = vrot.slane %v5226, 6
    %v5249 = vsel %vm958, %v5248, %v5247
    %v5250 = vrot.slane %v5227, 5
    %v5251 = vsel %vm961, %v5250, %v5249
    %v5252 = vrot.slane %v5228, 4
    %v5253 = vsel %vm964, %v5252, %v5251
    %v5254 = vrot.slane %v5229, 3
    %v5255 = vsel %vm967, %v5254, %v5253
    %v5256 = vrot.slane %v5230, 2
    %v5257 = vsel %vm970, %v5256, %v5255
    %v5258 = vrot.slane %v5231, 1
    %v5259 = vsel %vm973, %v5258, %v5257
    %v5260 = vsel %vm991, %v5245, 2147483647
    %v5261 = vand.u32 %v5260, 65535
    %v5262 = vshra.s32 %v5260, 16
    %v5263 = vcvt.s32.f32 %v5261
    %v5264 = vcvt.s32.f32 %v5262
    %5265 = vmin.xlane.f32.xlu0 %v5264
    %v5266 = vpop.xlane.xlu0 %5265
    %vm5267 = vcmp.eq.f32.partialorder %v5264, %v5266
    %v5268 = vsel %vm5267, %v5263, inf
    %5269 = vmin.xlane.f32.xlu0 %v5268
    %v5270 = vpop.xlane.xlu0 %5269
    %v5271 = vcvt.f32.s32 %v5270
    %v5272 = vcvt.f32.s32 %v5266
    %v5273 = vshll.u32 %v5272, 16
    %v5274 = vadd.s32 %v5273, %v5271
    %v5275 = vsel %vm991, %v5259, 2147483647
    %v5276 = vand.u32 %v5275, 65535
    %v5277 = vshra.s32 %v5275, 16
    %v5278 = vcvt.s32.f32 %v5276
    %v5279 = vcvt.s32.f32 %v5277
    %5280 = vmin.xlane.f32.xlu0 %v5279
    %v5281 = vpop.xlane.xlu0 %5280
    %vm5282 = vcmp.eq.f32.partialorder %v5279, %v5281
    %v5283 = vsel %vm5282, %v5278, inf
    %5284 = vmin.xlane.f32.xlu0 %v5283
    %v5285 = vpop.xlane.xlu0 %5284
    %v5286 = vcvt.f32.s32 %v5285
    %v5287 = vcvt.f32.s32 %v5281
    %v5288 = vshll.u32 %v5287, 16
    %v5289 = vadd.s32 %v5288, %v5286
    %vm5290 = vcmp.eq.s32.totalorder %v68, %v5274
    %vm5291 = vcmp.eq.s32.totalorder %v68, %v5289
    %v5292 = vsel %vm5290, 1, 0
    %v5293 = vsel %vm5291, 1, 0
    %v5294 = vcvt.s32.f32 %v5292
    %v5295 = vcvt.s32.f32 %v5293
    %v5296 = vlaneseq
    %v5297 = vshrl.u32 %v5296, 7
    %v5298 = vsub.s32 0, %v5297
    %v5299 = vrot.slane %v5294, %v5298
    %5301 = vbcast.lane.b32.xlu0 %v5299, 256
    %v5302 = vpop.permute.xlu0 %5301
    %v5303 = vlaneseq
    %v5304 = vshrl.u32 %v5303, 7
    %v5305 = vsub.s32 1, %v5304
    %v5306 = vrot.slane %v5294, %v5305
    %5308 = vbcast.lane.b32.xlu0 %v5306, 256
    %v5309 = vpop.permute.xlu0 %5308
    %v5310 = vlaneseq
    %v5311 = vshrl.u32 %v5310, 7
    %v5312 = vsub.s32 2, %v5311
    %v5313 = vrot.slane %v5294, %v5312
    %5315 = vbcast.lane.b32.xlu0 %v5313, 256
    %v5316 = vpop.permute.xlu0 %5315
    %v5317 = vlaneseq
    %v5318 = vshrl.u32 %v5317, 7
    %v5319 = vsub.s32 3, %v5318
    %v5320 = vrot.slane %v5294, %v5319
    %5322 = vbcast.lane.b32.xlu0 %v5320, 256
    %v5323 = vpop.permute.xlu0 %5322
    %v5324 = vlaneseq
    %v5325 = vshrl.u32 %v5324, 7
    %v5326 = vsub.s32 4, %v5325
    %v5327 = vrot.slane %v5294, %v5326
    %5329 = vbcast.lane.b32.xlu0 %v5327, 256
    %v5330 = vpop.permute.xlu0 %5329
    %v5331 = vlaneseq
    %v5332 = vshrl.u32 %v5331, 7
    %v5333 = vsub.s32 5, %v5332
    %v5334 = vrot.slane %v5294, %v5333
    %5336 = vbcast.lane.b32.xlu0 %v5334, 256
    %v5337 = vpop.permute.xlu0 %5336
    %v5338 = vlaneseq
    %v5339 = vshrl.u32 %v5338, 7
    %v5340 = vsub.s32 6, %v5339
    %v5341 = vrot.slane %v5294, %v5340
    %5343 = vbcast.lane.b32.xlu0 %v5341, 256
    %v5344 = vpop.permute.xlu0 %5343
    %v5345 = vlaneseq
    %v5346 = vshrl.u32 %v5345, 7
    %v5347 = vsub.s32 7, %v5346
    %v5348 = vrot.slane %v5294, %v5347
    %5350 = vbcast.lane.b32.xlu0 %v5348, 256
    %v5351 = vpop.permute.xlu0 %5350
    %v5352 = vlaneseq
    %v5353 = vshrl.u32 %v5352, 7
    %v5354 = vsub.s32 0, %v5353
    %v5355 = vrot.slane %v5295, %v5354
    %5357 = vbcast.lane.b32.xlu0 %v5355, 256
    %v5358 = vpop.permute.xlu0 %5357
    %v5359 = vlaneseq
    %v5360 = vshrl.u32 %v5359, 7
    %v5361 = vsub.s32 1, %v5360
    %v5362 = vrot.slane %v5295, %v5361
    %5364 = vbcast.lane.b32.xlu0 %v5362, 256
    %v5365 = vpop.permute.xlu0 %5364
    %v5366 = vlaneseq
    %v5367 = vshrl.u32 %v5366, 7
    %v5368 = vsub.s32 2, %v5367
    %v5369 = vrot.slane %v5295, %v5368
    %5371 = vbcast.lane.b32.xlu0 %v5369, 256
    %v5372 = vpop.permute.xlu0 %5371
    %v5373 = vlaneseq
    %v5374 = vshrl.u32 %v5373, 7
    %v5375 = vsub.s32 3, %v5374
    %v5376 = vrot.slane %v5295, %v5375
    %5378 = vbcast.lane.b32.xlu0 %v5376, 256
    %v5379 = vpop.permute.xlu0 %5378
    %v5380 = vlaneseq
    %v5381 = vshrl.u32 %v5380, 7
    %v5382 = vsub.s32 4, %v5381
    %v5383 = vrot.slane %v5295, %v5382
    %5385 = vbcast.lane.b32.xlu0 %v5383, 256
    %v5386 = vpop.permute.xlu0 %5385
    %v5387 = vlaneseq
    %v5388 = vshrl.u32 %v5387, 7
    %v5389 = vsub.s32 5, %v5388
    %v5390 = vrot.slane %v5295, %v5389
    %5392 = vbcast.lane.b32.xlu0 %v5390, 256
    %v5393 = vpop.permute.xlu0 %5392
    %v5394 = vlaneseq
    %v5395 = vshrl.u32 %v5394, 7
    %v5396 = vsub.s32 6, %v5395
    %v5397 = vrot.slane %v5295, %v5396
    %5399 = vbcast.lane.b32.xlu0 %v5397, 256
    %v5400 = vpop.permute.xlu0 %5399
    %v5401 = vlaneseq
    %v5402 = vshrl.u32 %v5401, 7
    %v5403 = vsub.s32 7, %v5402
    %v5404 = vrot.slane %v5295, %v5403
    %5406 = vbcast.lane.b32.xlu0 %v5404, 256
    %v5407 = vpop.permute.xlu0 %5406
    %v5408 = vmul.f32 %v69, %v5302
    %v5409 = vmul.f32 %v70, %v5309
    %v5410 = vmul.f32 %v71, %v5316
    %v5411 = vmul.f32 %v72, %v5323
    %v5412 = vmul.f32 %v73, %v5330
    %v5413 = vmul.f32 %v74, %v5337
    %v5414 = vmul.f32 %v75, %v5344
    %v5415 = vmul.f32 %v76, %v5351
    %v5416 = vmul.f32 %v77, %v5358
    %v5417 = vmul.f32 %v78, %v5365
    %v5418 = vmul.f32 %v79, %v5372
    %v5419 = vmul.f32 %v80, %v5379
    %v5420 = vmul.f32 %v81, %v5386
    %v5421 = vmul.f32 %v82, %v5393
    %v5422 = vmul.f32 %v83, %v5400
    %v5423 = vmul.f32 %v84, %v5407
    %v5424 = vsel %vm153, %v5408, 0.0
    %v5425 = vrot.slane %v5424, 4
    %v5426 = vadd.f32 %v5424, %v5425
    %v5427 = vrot.slane %v5426, 2
    %v5428 = vadd.f32 %v5426, %v5427
    %v5429 = vrot.slane %v5428, 1
    %v5430 = vadd.f32 %v5428, %v5429
    %v5431 = vsel %vm153, %v5409, 0.0
    %v5432 = vrot.slane %v5431, 4
    %v5433 = vadd.f32 %v5431, %v5432
    %v5434 = vrot.slane %v5433, 2
    %v5435 = vadd.f32 %v5433, %v5434
    %v5436 = vrot.slane %v5435, 1
    %v5437 = vadd.f32 %v5435, %v5436
    %v5438 = vsel %vm153, %v5410, 0.0
    %v5439 = vrot.slane %v5438, 4
    %v5440 = vadd.f32 %v5438, %v5439
    %v5441 = vrot.slane %v5440, 2
    %v5442 = vadd.f32 %v5440, %v5441
    %v5443 = vrot.slane %v5442, 1
    %v5444 = vadd.f32 %v5442, %v5443
    %v5445 = vsel %vm153, %v5411, 0.0
    %v5446 = vrot.slane %v5445, 4
    %v5447 = vadd.f32 %v5445, %v5446
    %v5448 = vrot.slane %v5447, 2
    %v5449 = vadd.f32 %v5447, %v5448
    %v5450 = vrot.slane %v5449, 1
    %v5451 = vadd.f32 %v5449, %v5450
    %v5452 = vsel %vm153, %v5412, 0.0
    %v5453 = vrot.slane %v5452, 4
    %v5454 = vadd.f32 %v5452, %v5453
    %v5455 = vrot.slane %v5454, 2
    %v5456 = vadd.f32 %v5454, %v5455
    %v5457 = vrot.slane %v5456, 1
    %v5458 = vadd.f32 %v5456, %v5457
    %v5459 = vsel %vm153, %v5413, 0.0
    %v5460 = vrot.slane %v5459, 4
    %v5461 = vadd.f32 %v5459, %v5460
    %v5462 = vrot.slane %v5461, 2
    %v5463 = vadd.f32 %v5461, %v5462
    %v5464 = vrot.slane %v5463, 1
    %v5465 = vadd.f32 %v5463, %v5464
    %v5466 = vsel %vm153, %v5414, 0.0
    %v5467 = vrot.slane %v5466, 4
    %v5468 = vadd.f32 %v5466, %v5467
    %v5469 = vrot.slane %v5468, 2
    %v5470 = vadd.f32 %v5468, %v5469
    %v5471 = vrot.slane %v5470, 1
    %v5472 = vadd.f32 %v5470, %v5471
    %v5473 = vsel %vm153, %v5415, 0.0
    %v5474 = vrot.slane %v5473, 4
    %v5475 = vadd.f32 %v5473, %v5474
    %v5476 = vrot.slane %v5475, 2
    %v5477 = vadd.f32 %v5475, %v5476
    %v5478 = vrot.slane %v5477, 1
    %v5479 = vadd.f32 %v5477, %v5478
    %v5480 = vsel %vm153, %v5416, 0.0
    %v5481 = vrot.slane %v5480, 4
    %v5482 = vadd.f32 %v5480, %v5481
    %v5483 = vrot.slane %v5482, 2
    %v5484 = vadd.f32 %v5482, %v5483
    %v5485 = vrot.slane %v5484, 1
    %v5486 = vadd.f32 %v5484, %v5485
    %v5487 = vsel %vm153, %v5417, 0.0
    %v5488 = vrot.slane %v5487, 4
    %v5489 = vadd.f32 %v5487, %v5488
    %v5490 = vrot.slane %v5489, 2
    %v5491 = vadd.f32 %v5489, %v5490
    %v5492 = vrot.slane %v5491, 1
    %v5493 = vadd.f32 %v5491, %v5492
    %v5494 = vsel %vm153, %v5418, 0.0
    %v5495 = vrot.slane %v5494, 4
    %v5496 = vadd.f32 %v5494, %v5495
    %v5497 = vrot.slane %v5496, 2
    %v5498 = vadd.f32 %v5496, %v5497
    %v5499 = vrot.slane %v5498, 1
    %v5500 = vadd.f32 %v5498, %v5499
    %v5501 = vsel %vm153, %v5419, 0.0
    %v5502 = vrot.slane %v5501, 4
    %v5503 = vadd.f32 %v5501, %v5502
    %v5504 = vrot.slane %v5503, 2
    %v5505 = vadd.f32 %v5503, %v5504
    %v5506 = vrot.slane %v5505, 1
    %v5507 = vadd.f32 %v5505, %v5506
    %v5508 = vsel %vm153, %v5420, 0.0
    %v5509 = vrot.slane %v5508, 4
    %v5510 = vadd.f32 %v5508, %v5509
    %v5511 = vrot.slane %v5510, 2
    %v5512 = vadd.f32 %v5510, %v5511
    %v5513 = vrot.slane %v5512, 1
    %v5514 = vadd.f32 %v5512, %v5513
    %v5515 = vsel %vm153, %v5421, 0.0
    %v5516 = vrot.slane %v5515, 4
    %v5517 = vadd.f32 %v5515, %v5516
    %v5518 = vrot.slane %v5517, 2
    %v5519 = vadd.f32 %v5517, %v5518
    %v5520 = vrot.slane %v5519, 1
    %v5521 = vadd.f32 %v5519, %v5520
    %v5522 = vsel %vm153, %v5422, 0.0
    %v5523 = vrot.slane %v5522, 4
    %v5524 = vadd.f32 %v5522, %v5523
    %v5525 = vrot.slane %v5524, 2
    %v5526 = vadd.f32 %v5524, %v5525
    %v5527 = vrot.slane %v5526, 1
    %v5528 = vadd.f32 %v5526, %v5527
    %v5529 = vsel %vm153, %v5423, 0.0
    %v5530 = vrot.slane %v5529, 4
    %v5531 = vadd.f32 %v5529, %v5530
    %v5532 = vrot.slane %v5531, 2
    %v5533 = vadd.f32 %v5531, %v5532
    %v5534 = vrot.slane %v5533, 1
    %v5535 = vadd.f32 %v5533, %v5534
    %v5536 = vpack.c.bf16 %v5430, %v5430
    %v5537 = vpack.c.bf16 %v5437, %v5437
    %v5538 = vpack.c.bf16 %v5444, %v5444
    %v5539 = vpack.c.bf16 %v5451, %v5451
    %v5540 = vpack.c.bf16 %v5458, %v5458
    %v5541 = vpack.c.bf16 %v5465, %v5465
    %v5542 = vpack.c.bf16 %v5472, %v5472
    %v5543 = vpack.c.bf16 %v5479, %v5479
    %v5544 = vpack.c.bf16 %v5486, %v5486
    %v5545 = vpack.c.bf16 %v5493, %v5493
    %v5546 = vpack.c.bf16 %v5500, %v5500
    %v5547 = vpack.c.bf16 %v5507, %v5507
    %v5548 = vpack.c.bf16 %v5514, %v5514
    %v5549 = vpack.c.bf16 %v5521, %v5521
    %v5550 = vpack.c.bf16 %v5528, %v5528
    %v5551 = vpack.c.bf16 %v5535, %v5535
    %v5568 = vunpack.c.l.b16 %v5536
    %v5569 = vunpack.c.l.b16 %v5537
    %v5570 = vunpack.c.l.b16 %v5538
    %v5571 = vunpack.c.l.b16 %v5539
    %v5572 = vunpack.c.l.b16 %v5540
    %v5573 = vunpack.c.l.b16 %v5541
    %v5574 = vunpack.c.l.b16 %v5542
    %v5575 = vunpack.c.l.b16 %v5543
    %v5576 = vunpack.c.l.b16 %v5544
    %v5577 = vunpack.c.l.b16 %v5545
    %v5578 = vunpack.c.l.b16 %v5546
    %v5579 = vunpack.c.l.b16 %v5547
    %v5580 = vunpack.c.l.b16 %v5548
    %v5581 = vunpack.c.l.b16 %v5549
    %v5582 = vunpack.c.l.b16 %v5550
    %v5583 = vunpack.c.l.b16 %v5551
    %v5584 = vsel %vm955, %v5569, %v5568
    %v5585 = vsel %vm958, %v5570, %v5584
    %v5586 = vsel %vm961, %v5571, %v5585
    %v5587 = vsel %vm964, %v5572, %v5586
    %v5588 = vsel %vm967, %v5573, %v5587
    %v5589 = vsel %vm970, %v5574, %v5588
    %v5590 = vsel %vm973, %v5575, %v5589
    %v5591 = vsel %vm955, %v5577, %v5576
    %v5592 = vsel %vm958, %v5578, %v5591
    %v5593 = vsel %vm961, %v5579, %v5592
    %v5594 = vsel %vm964, %v5580, %v5593
    %v5595 = vsel %vm967, %v5581, %v5594
    %v5596 = vsel %vm970, %v5582, %v5595
    %v5597 = vsel %vm973, %v5583, %v5596
    %v5598 = vpack.c.b16 %v5597, %v5590
    %v5600 = vsel %vm153, %v5598, 0
    %5602 = vmatprep.subr.bf16.mxu0 0
    %5603 = vmatpush1.bf16.msra.mxu0 0
    %5604 = vmatprep.subr.bf16.mxu0 0
    %5605 = vmatpush1.bf16.msra.mxu0 0
    %5606 = vmatprep.subr.bf16.mxu0 0
    %5607 = vmatpush1.bf16.msra.mxu0 0
    %5608 = vmatprep.subr.bf16.mxu0 0
    %5609 = vmatpush1.bf16.msra.mxu0 0
    %5610 = vmatprep.subr.bf16.mxu0 0
    %5611 = vmatpush1.bf16.msra.mxu0 0
    %5612 = vmatprep.subr.bf16.mxu0 0
    %5613 = vmatpush1.bf16.msra.mxu0 0
    %5614 = vmatprep.subr.bf16.mxu0 0
    %5615 = vmatpush1.bf16.msra.mxu0 %v1846
    %5616 = vmatprep.subr.bf16.mxu0 0
    %5617 = vmatpush1.bf16.msra.mxu0 %v1845
    %5618 = vmatprep.subr.bf16.mxu0 0
    %5619 = vmatpush2.bf16.msra.mxu0 0
    %5620 = vmatprep.subr.bf16.mxu0 0
    %5621 = vmatpush2.bf16.msra.mxu0 0
    %5622 = vmatprep.subr.bf16.mxu0 0
    %5623 = vmatpush2.bf16.msra.mxu0 0
    %5624 = vmatprep.subr.bf16.mxu0 0
    %5625 = vmatpush2.bf16.msra.mxu0 0
    %5626 = vmatprep.subr.bf16.mxu0 0
    %5627 = vmatpush2.bf16.msra.mxu0 0
    %5628 = vmatprep.subr.bf16.mxu0 0
    %5629 = vmatpush2.bf16.msra.mxu0 0
    %5630 = vmatprep.subr.bf16.mxu0 0
    %5631 = vmatpush2.bf16.msra.mxu0 0
    %5632 = vmatprep.subr.bf16.mxu0 0
    %5633 = vmatpush2.bf16.msra.mxu0 0
    %5634 = vmatprep.mubr.bf16.mxu0 0
    %5635 = vmatmul.mubr.bf16.gmra.mxu0 %v5600
    %v5636 = vpop.f32.mrf.mxu0
    %v5637 = vadd.f32 %v1789, %v5636
    %v5638 = vpop.f32.mrf.mxu0
    %v5639 = vpop.f32.mrf.mxu0
    %v5640 = vadd.f32 %v1789, %v5639
    %v5641 = vpop.f32.mrf.mxu0
    %5642 = vdwg.mxu0
    %5643 = vmatprep.subr.bf16.mxu0 0
    %5644 = vmatpush1.bf16.msra.mxu0 0
    %5645 = vmatprep.subr.bf16.mxu0 0
    %5646 = vmatpush1.bf16.msra.mxu0 0
    %5647 = vmatprep.subr.bf16.mxu0 0
    %5648 = vmatpush1.bf16.msra.mxu0 0
    %5649 = vmatprep.subr.bf16.mxu0 0
    %5650 = vmatpush1.bf16.msra.mxu0 0
    %5651 = vmatprep.subr.bf16.mxu0 0
    %5652 = vmatpush1.bf16.msra.mxu0 0
    %5653 = vmatprep.subr.bf16.mxu0 0
    %5654 = vmatpush1.bf16.msra.mxu0 0
    %5655 = vmatprep.subr.bf16.mxu0 0
    %5656 = vmatpush1.bf16.msra.mxu0 %v1906
    %5657 = vmatprep.subr.bf16.mxu0 0
    %5658 = vmatpush1.bf16.msra.mxu0 %v1905
    %5659 = vmatprep.subr.bf16.mxu0 0
    %5660 = vmatpush2.bf16.msra.mxu0 0
    %5661 = vmatprep.subr.bf16.mxu0 0
    %5662 = vmatpush2.bf16.msra.mxu0 0
    %5663 = vmatprep.subr.bf16.mxu0 0
    %5664 = vmatpush2.bf16.msra.mxu0 0
    %5665 = vmatprep.subr.bf16.mxu0 0
    %5666 = vmatpush2.bf16.msra.mxu0 0
    %5667 = vmatprep.subr.bf16.mxu0 0
    %5668 = vmatpush2.bf16.msra.mxu0 0
    %5669 = vmatprep.subr.bf16.mxu0 0
    %5670 = vmatpush2.bf16.msra.mxu0 0
    %5671 = vmatprep.subr.bf16.mxu0 0
    %5672 = vmatpush2.bf16.msra.mxu0 0
    %5673 = vmatprep.subr.bf16.mxu0 0
    %5674 = vmatpush2.bf16.msra.mxu0 0
    %5675 = vmatprep.mubr.bf16.mxu0 0
    %5676 = vmatmul.mubr.bf16.gmra.mxu0 %v4022
    %v5677 = vpop.f32.mrf.mxu0
    %v5678 = vadd.f32 %v1896, %v5677
    %v5679 = vpop.f32.mrf.mxu0
    %v5680 = vpop.f32.mrf.mxu0
    %v5681 = vadd.f32 %v1896, %v5680
    %v5682 = vpop.f32.mrf.mxu0
    %5683 = vdwg.mxu0
    %v5684 = vadd.f32 %v5637, %v5678
    %v5685 = vadd.f32 %v5640, %v5681
    %v5686 = vxor.u32 %v5684, 2147483648
    %v5687 = vxor.u32 %v5685, 2147483648
    %v5688 = vmul.f32 %v5686, 1.442695
    %v5689 = vpow.pop %v5688
    %v5690 = vmul.f32 %v5687, 1.442695
    %v5691 = vpow.pop %v5690
    %v5692 = vadd.f32 %v5689, 1.0
    %v5693 = vadd.f32 %v5691, 1.0
    %v5694 = vrcp.pop %v5692
    %v5695 = vmul.f32 1.0, %v5694
    %v5696 = vrcp.pop %v5693
    %v5697 = vmul.f32 1.0, %v5696
    %5700 = vrot.lane.b32.xlu0 %v5678, 64
    %v5701 = vpop.permute.xlu0 %5700
    %5702 = vrot.lane.b32.xlu0 %v5681, 64
    %v5703 = vpop.permute.xlu0 %5702
    %v5706 = vmul.f32 %v5695, %v5701
    %v5707 = vmul.f32 %v5697, %v5703
    %5710 = vrot.lane.b32.xlu0 %v5706, 64
    %v5711 = vpop.permute.xlu0 %5710
    %5712 = vrot.lane.b32.xlu0 %v5707, 64
    %v5713 = vpop.permute.xlu0 %5712
    %v5716 = vadd.f32 %v5637, %v5711
    %v5717 = vadd.f32 %v5640, %v5713
    %v5718 = vtanh.pop %v5716
    %v5719 = vtanh.pop %v5717
    %v5720 = vsub.f32 1.0, %v5695
    %v5721 = vsub.f32 1.0, %v5697
    %5724 = vrot.lane.b32.xlu0 %v5718, 96
    %v5725 = vpop.permute.xlu0 %5724
    %5726 = vrot.lane.b32.xlu0 %v5719, 96
    %v5727 = vpop.permute.xlu0 %5726
    %v5730 = vmul.f32 %v5720, %v5725
    %v5731 = vmul.f32 %v5721, %v5727
    %v5732 = vmul.f32 %v5695, %v3750
    %v5733 = vmul.f32 %v5697, %v3751
    %v5734 = vadd.f32 %v5730, %v5732
    %v5735 = vadd.f32 %v5731, %v5733
    %vm5736 = vcmask 1046528
    %v5737 = vsel %vm5736, %v3169, %v3176
    %v5738 = vrot.slane %v3165, 1
    %v5739 = vsel %vm5736, %v3176, %v5738
    %v5742 = vmul.f32 %v1398, %v5737
    %v5743 = vmul.f32 %v1401, %v5739
    %v5744 = vmul.f32 %v5742, %v5164
    %v5745 = vmul.f32 %v5743, %v5167
    %vm5748 = vcmask 1041408
    %v5749 = vrot.slane %v5742, 6
    %v5750 = vrot.slane %v5743, 6
    %v5751 = vsel %vm5748, %v5749, %v5750
    %v5757 = vrot.slane %v5744, 6
    %v5758 = vrot.slane %v5745, 6
    %v5759 = vsel %vm5748, %v5757, %v5758
    %v5763 = vsel %vm3858, %v5749, %v5757
    %v5764 = vsel %vm3859, %v5751, %v5759
    %v5765 = vsel %vm3860, %v5750, %v5758
    %v5766 = vsel %vm3858, 1, 0
    %v5767 = vsel %vm3859, 1, 0
    %v5768 = vsel %vm3860, 1, 0
    %vm5769 = vcmp.eq.s32.totalorder %v5766, 1
    %vm5770 = vcmp.eq.s32.totalorder %v5767, 1
    %vm5771 = vcmp.eq.s32.totalorder %v5768, 1
    %v5774 = vrot.slane %v3750, 6
    %v5775 = vrot.slane %v3751, 6
    %v5776 = vsel %vm5748, %v5774, %v5775
    %5777 = vrot.lane.b32.xlu0 %v5774, 96
    %v5778 = vpop.permute.xlu0 %5777
    %5779 = vrot.lane.b32.xlu0 %v5776, 96
    %v5780 = vpop.permute.xlu0 %5779
    %5781 = vrot.lane.b32.xlu0 %v5775, 96
    %v5782 = vpop.permute.xlu0 %5781
    %v5788 = vrot.slane %v5734, 6
    %v5789 = vrot.slane %v5735, 6
    %v5790 = vsel %vm5748, %v5788, %v5789
    %5791 = vrot.lane.b32.xlu0 %v5788, 96
    %v5792 = vpop.permute.xlu0 %5791
    %5793 = vrot.lane.b32.xlu0 %v5790, 96
    %v5794 = vpop.permute.xlu0 %5793
    %5795 = vrot.lane.b32.xlu0 %v5789, 96
    %v5796 = vpop.permute.xlu0 %5795
    %v5800 = vsel %vm5769, %v5778, %v5792
    %v5801 = vsel %vm5770, %v5780, %v5794
    %v5802 = vsel %vm5771, %v5782, %v5796
    %v5803 = vcvt.s32.f32 %v1508
    %v5804 = vcvt.s32.f32 %v1523
    %v5805 = vcvt.s32.f32 %v3272
    %v5806 = vcvt.s32.f32 %v3287
    %v5807 = vcvt.s32.f32 %v3302
    %v5808 = vcvt.s32.f32 %v5274
    %v5809 = vcvt.s32.f32 %v5289
    %v5810 = vcvt.s32.f32 %v5766
    %v5811 = vcvt.s32.f32 %v5767
    %v5812 = vcvt.s32.f32 %v5768
    %v5816 = vrot.slane %v3930, 1
    %v5817 = vrot.slane %v3933, 1
    %v5818 = vsel %vm5736, %v5816, %v5817
    %v5819 = vrot.slane %v3937, 1
    %v5820 = vsel %vm5736, %v5817, %v5819
    %vm5827 = vcmask 1040384
    %v5828 = vrot.slane %v5805, 7
    %v5829 = vrot.slane %v5806, 7
    %v5830 = vsel %vm5827, %v5828, %v5829
    %v5831 = vrot.slane %v5807, 7
    %v5832 = vsel %vm5827, %v5829, %v5831
    %v5836 = vsel %vm3858, %v5818, %v5828
    %v5837 = vsel %vm3859, %v5820, %v5830
    %v5838 = vsel %vm3860, %v5819, %v5832
    %v5841 = vrot.slane %v5803, 6
    %v5842 = vrot.slane %v5804, 6
    %v5843 = vsel %vm5748, %v5841, %v5842
    %v5847 = vsel %vm3858, %v5828, %v5841
    %v5848 = vsel %vm3859, %v5830, %v5843
    %v5849 = vsel %vm3860, %v5832, %v5842
    %v5852 = vrot.slane %v5808, 6
    %v5853 = vrot.slane %v5809, 6
    %v5854 = vsel %vm5748, %v5852, %v5853
    %v5858 = vsel %vm3858, %v5841, %v5852
    %v5859 = vsel %vm3859, %v5843, %v5854
    %v5860 = vsel %vm3860, %v5842, %v5853
    %5864 = vrot.lane.b32.xlu0 %v5800, 1
    %v5865 = vpop.permute.xlu0 %5864
    %5866 = vrot.lane.b32.xlu0 %v5801, 1
    %v5867 = vpop.permute.xlu0 %5866
    %5868 = vrot.lane.b32.xlu0 %v5802, 1
    %v5869 = vpop.permute.xlu0 %5868
    %5876 = vrot.lane.b32.xlu0 %v5836, 34
    %v5877 = vpop.permute.xlu0 %5876
    %5878 = vrot.lane.b32.xlu0 %v5837, 34
    %v5879 = vpop.permute.xlu0 %5878
    %5880 = vrot.lane.b32.xlu0 %v5838, 34
    %v5881 = vpop.permute.xlu0 %5880
    %5888 = vrot.lane.b32.xlu0 %v5847, 35
    %v5889 = vpop.permute.xlu0 %5888
    %5890 = vrot.lane.b32.xlu0 %v5848, 35
    %v5891 = vpop.permute.xlu0 %5890
    %5892 = vrot.lane.b32.xlu0 %v5849, 35
    %v5893 = vpop.permute.xlu0 %5892
    %5900 = vrot.lane.b32.xlu0 %v5858, 36
    %v5901 = vpop.permute.xlu0 %5900
    %5902 = vrot.lane.b32.xlu0 %v5859, 36
    %v5903 = vpop.permute.xlu0 %5902
    %5904 = vrot.lane.b32.xlu0 %v5860, 36
    %v5905 = vpop.permute.xlu0 %5904
    %vm5909 = vcmask 7168
    %v5910 = vsel %vm5909, %v5763, %v5865
    %v5911 = vsel %vm5909, %v5764, %v5867
    %v5912 = vsel %vm5909, %v5765, %v5869
    %vm5913 = vcmask 269312
    %v5914 = vsel %vm5913, %v5910, %v5810
    %v5915 = vsel %vm5913, %v5911, %v5811
    %v5916 = vsel %vm5913, %v5912, %v5812
    %vm5917 = vcmask 277504
    %v5918 = vsel %vm5917, %v5914, %v5877
    %v5919 = vsel %vm5917, %v5915, %v5879
    %v5920 = vsel %vm5917, %v5916, %v5881
    %vm5921 = vcmask 285696
    %v5922 = vsel %vm5921, %v5918, %v5889
    %v5923 = vsel %vm5921, %v5919, %v5891
    %v5924 = vsel %vm5921, %v5920, %v5893
    %vm5925 = vcmask 293888
    %v5926 = vsel %vm5925, %v5922, %v5901
    %v5927 = vsel %vm5925, %v5923, %v5903
    %v5928 = vsel %vm5925, %v5924, %v5905
    %vm5929 = vcmask 302080
    %v5930 = vsel %vm5929, %v5926, 0.0
    %v5931 = vsel %vm5929, %v5927, 0.0
    %v5932 = vsel %vm5929, %v5928, 0.0
    %5933 = vst [vmem:[#allocation5 - $0x2] sm:$0xfc] %v5930
    %5934 = vst [vmem:[#allocation5 + $0x6] sm:$0xff] %v5931
    %5935 = vst [vmem:[#allocation5 + $0xe] sm:$0x3] %v5932
    // Predicated region
    $region22: #{tpu_custom_call.1} parent=1 // pred_check
      _
    $region23: #{tpu_custom_call.1} parent=1 // pred_check_branch
      %5937 = sbr.rel (0) target = $region25
    $region24: #{tpu_custom_call.1} parent=1 // pred_region
      %s5939 = ssub.s32 256, 256
      %5940 = vsyncadd [#allocation4], %s5939
      %s5941 = sshll.u32 [#allocation5], 4
      %s5942 = int_to_ptr.vmem [resolvable:$true] %s5941
      %5947 = dma.vmem_to_hbm [thread:$0]  %s5942, 256, %s4, [#allocation4], 128, 128, 8
    $region25: #{tpu_custom_call.1} parent=1 // pred_fallthru
      _
    // Predicated region
    $region26: #{tpu_custom_call.1} parent=1 // pred_check
      _
    $region27: #{tpu_custom_call.1} parent=1 // pred_check_branch
      %5949 = sbr.rel (0) target = $region29
    $region28: #{tpu_custom_call.1} parent=1 // pred_region
      %5950 = dma.done [#allocation4], 256
    $region29: #{tpu_custom_call.1} parent=1 // pred_fallthru
      _
    %5951 = vsyncpa [#allocation3], 1
    %5952 = vsyncpa [#allocation4], 1

</llo_original>
